<compile_context>
chip_gen: v6e
topology: v6e:2x2x1
jax: 0.10.0
libtpu: 0.0.40
codegen_flags: <defaults>
</compile_context>

<pallas_src>
import math

import jax
import jax.numpy as jnp
from jax import lax
from jax.experimental import pallas as pl
from jax.experimental.pallas import tpu as pltpu


# ----------------------------------------------------------------------------
# Fused Pallas kernel (2 bidirectional LSTM layers + FC head)
# ----------------------------------------------------------------------------

def make_fused_kernel(S, B, H):
    H2 = 2 * H

    def kernel(x_ref, w1f_ref, w1b_ref, b1_ref, wh1_ref,
               w2f_ref, w2b_ref, b2_ref, wh2_ref,
               fcw_ref, fcb_ref, out_ref,
               gxf_scr, gxb_scr, out1_scr):
        f32 = jnp.float32

        def run_bidir(wh, emit):
            """Fused fwd+bwd recurrence reading gate-x from the scratch buffers."""
            h = jnp.zeros((B, H2), f32)
            c = jnp.zeros((B, H2), f32)
            for s in range(S):                       # fully unrolled (S static)
                # fwd gates come from timestep s, bwd gates from timestep S-1-s.
                gx = (gxf_scr[pl.ds(s * B, B), :]
                      + gxb_scr[pl.ds((S - 1 - s) * B, B), :])
                gates = gx + jnp.dot(h, wh, preferred_element_type=f32)
                i = jax.nn.sigmoid(gates[:, 0 * H2:1 * H2])
                f = jax.nn.sigmoid(gates[:, 1 * H2:2 * H2])
                g = jnp.tanh(gates[:, 2 * H2:3 * H2])
                o = jax.nn.sigmoid(gates[:, 3 * H2:4 * H2])
                c = f * c + i * g
                h = o * jnp.tanh(c)
                emit(s, h)

        # ----------------------------- layer 1 -----------------------------
        x = x_ref[...]                                               # [S*B, D]
        # Hoisted input projection (one matmul per direction, bias folded in).
        gxf_scr[...] = (jnp.dot(x, w1f_ref[...], preferred_element_type=f32)
                        + b1_ref[...])
        gxb_scr[...] = jnp.dot(x, w1b_ref[...], preferred_element_type=f32)
        wh1 = wh1_ref[...]                                           # hoisted load

        def emit1(s, h):
            # fwd output at time s, bwd output at time S-1-s; the stored halves
            # keep their natural lane positions (match layer-2 input layout).
            out1_scr[pl.ds(s * B, B), pl.ds(0, H)] = h[:, 0:H]
            out1_scr[pl.ds((S - 1 - s) * B, B), pl.ds(H, H)] = h[:, H:H2]

        run_bidir(wh1, emit1)

        # ----------------------------- layer 2 -----------------------------
        l1 = out1_scr[...]                                           # [S*B, 2H]
        gxf_scr[...] = (jnp.dot(l1, w2f_ref[...], preferred_element_type=f32)
                        + b2_ref[...])
        gxb_scr[...] = jnp.dot(l1, w2b_ref[...], preferred_element_type=f32)
        wh2 = wh2_ref[...]

        last = {}

        def emit2(s, h):
            # Only out[:, -1, :] is consumed downstream:
            #   fwd half of last timestep == fwd state after step S-1,
            #   bwd half of last timestep == bwd state after its first step.
            if s == 0:
                last["bwd"] = h
            if s == S - 1:
                last["fwd"] = h

        run_bidir(wh2, emit2)

        # ----------------------------- FC head -----------------------------
        lane = lax.broadcasted_iota(jnp.int32, (B, H2), 1)
        feat = jnp.where(lane < H, last["fwd"], last["bwd"])        # [B, 2H]
        logits = (jnp.sum(feat * fcw_ref[...], axis=1, keepdims=True)
                  + fcb_ref[...])                                    # [B, 1]
        out_ref[...] = jax.nn.sigmoid(logits)
        # TODO(synk): dropout (p=0.3) between layers / before fc is identity in
        # eval mode and therefore not emitted.

    return kernel


# ----------------------------------------------------------------------------
# Parameter packing: per-direction torch-layout params -> fused gate layout
#   combined columns: [i_f i_b | f_f f_b | g_f g_b | o_f o_b], each H wide.
# ----------------------------------------------------------------------------

def pack_layer(lp, H):
    H8 = 8 * H

    def place(w_ih, w_hh, b, d):
        din = w_ih.shape[0]
        wx = jnp.zeros((din, H8), jnp.float32)
        wh = jnp.zeros((H, H8), jnp.float32)
        bc = jnp.zeros((H8,), jnp.float32)
        for k in range(4):                       # PyTorch gate order i,f,g,o
            src = slice(k * H, (k + 1) * H)
            dst = slice((2 * k + d) * H, (2 * k + d + 1) * H)
            wx = wx.at[:, dst].set(w_ih[:, src])
            wh = wh.at[:, dst].set(w_hh[:, src])
            bc = bc.at[dst].set(b[src])
        return wx, wh, bc

    pf, pb = lp["fwd"], lp["bwd"]
    wxf, whf, bf = place(pf["w_ih"], pf["w_hh"], pf["b"][0], 0)
    wxb, whb, bb = place(pb["w_ih"], pb["w_hh"], pb["b"][0], 1)
    wh = jnp.concatenate([whf, whb], axis=0)     # [2H, 8H], block-structured
    bc = (bf + bb).reshape(1, H8)
    return wxf, wxb, bc, wh


# ----------------------------------------------------------------------------
# Wrapper
# ----------------------------------------------------------------------------

def strong_transition_lstm_forward(x, params):
    """x: [B, S, input_dim] (batch-first, like the PyTorch module). Returns [B]."""
    assert len(params["lstm"]) == 2, "fused kernel is specialized for num_layers=2"
    B, S, D = x.shape
    H = params["lstm"][0]["fwd"]["w_hh"].shape[0]

    x_flat = jnp.transpose(x, (1, 0, 2)).reshape(S * B, D).astype(jnp.float32)
    w1f, w1b, b1, wh1 = pack_layer(params["lstm"][0], H)
    w2f, w2b, b2, wh2 = pack_layer(params["lstm"][1], H)
    fcw = params["fc_w"].reshape(1, 2 * H).astype(jnp.float32)
    fcb = params["fc_b"].reshape(1, 1).astype(jnp.float32)

    vmem = pl.BlockSpec(memory_space=pltpu.MemorySpace.VMEM)
    out = pl.pallas_call(
        make_fused_kernel(S, B, H),
        out_shape=jax.ShapeDtypeStruct((B, 1), jnp.float32),
        in_specs=[vmem] * 11,
        out_specs=vmem,
        scratch_shapes=[
            pltpu.VMEM((S * B, 8 * H), jnp.float32),   # gate-x, fwd columns
            pltpu.VMEM((S * B, 8 * H), jnp.float32),   # gate-x, bwd columns
            pltpu.VMEM((S * B, 2 * H), jnp.float32),   # layer-1 bidirectional output
        ],
    )(x_flat, w1f, w1b, b1, wh1, w2f, w2b, b2, wh2, fcw, fcb)
    return out[:, 0]                                   # squeeze(1)


# ----------------------------------------------------------------------------
# Deterministic parameter init (mirrors xavier_uniform_ + bias scheme)
# ----------------------------------------------------------------------------

def xavier_uniform_t(key, torch_shape):
    """Xavier-uniform for a torch weight [out, in]; returned transposed [in, out]."""
    fan_out, fan_in = torch_shape
    bound = math.sqrt(6.0 / (fan_in + fan_out))
    return jax.random.uniform(key, (fan_in, fan_out), jnp.float32, -bound, bound)


def init_params(key, input_dim, hidden_dim, num_layers):
    params = {"lstm": []}
    H = hidden_dim
    for layer in range(num_layers):
        in_dim = input_dim if layer == 0 else 2 * H
        layer_p = {}
        for direction in ("fwd", "bwd"):
            key, k1, k2 = jax.random.split(key, 3)
            w_ih = xavier_uniform_t(k1, (4 * H, in_dim))      # [in_dim, 4H]
            w_hh = xavier_uniform_t(k2, (4 * H, H))           # [H, 4H]
            # b_ih and b_hh are zeros with forget slice [H:2H] = 1.0 each;
            # combined bias therefore has 2.0 in the forget segment.
            b = jnp.zeros((4 * H,), jnp.float32).at[H:2 * H].set(2.0).reshape(1, 4 * H)
            layer_p[direction] = {"w_ih": w_ih, "w_hh": w_hh, "b": b}
        params["lstm"].append(layer_p)
    key, kf = jax.random.split(key)
    params["fc_w"] = xavier_uniform_t(kf, (1, 2 * H))         # [2H, 1]
    params["fc_b"] = jnp.zeros((1, 1), jnp.float32)
    return params


# ----------------------------------------------------------------------------
# Pure-JAX reference (per-direction math) for a sanity check
# ----------------------------------------------------------------------------

def ref_lstm_dir(x_tm, w_ih, w_hh, b):
    S, B, _ = x_tm.shape
    H = w_hh.shape[0]
    h = jnp.zeros((B, H), jnp.float32)
    c = jnp.zeros((B, H), jnp.float32)
    outs = []
    for t in range(S):
        g = x_tm[t] @ w_ih + h @ w_hh + b
        i = jax.nn.sigmoid(g[:, :H])
        f = jax.nn.sigmoid(g[:, H:2 * H])
        gg = jnp.tanh(g[:, 2 * H:3 * H])
        o = jax.nn.sigmoid(g[:, 3 * H:])
        c = f * c + i * gg
        h = o * jnp.tanh(c)
        outs.append(h)
    return jnp.stack(outs, axis=0)


def ref_forward(x, params):
    h_in = jnp.transpose(x, (1, 0, 2)).astype(jnp.float32)
    for lp in params["lstm"]:
        of = ref_lstm_dir(h_in, lp["fwd"]["w_ih"], lp["fwd"]["w_hh"], lp["fwd"]["b"])
        ob = ref_lstm_dir(h_in[::-1], lp["bwd"]["w_ih"], lp["bwd"]["w_hh"], lp["bwd"]["b"])[::-1]
        h_in = jnp.concatenate([of, ob], axis=-1)
    last = h_in[-1]
    return jax.nn.sigmoid(last @ params["fc_w"] + params["fc_b"])[:, 0]


# ----------------------------------------------------------------------------
# Main
# ----------------------------------------------------------------------------

if __name__ == "__main__":
    # Small shapes consistent with the module: feature_dim=29, num_classes=3
    # -> input_dim=32, hidden_dim=32, num_layers=2, batch=2, seq=8.
    feature_dim, num_classes = 29, 3
    input_dim = feature_dim + num_classes
    hidden_dim = 32
    num_layers = 2
    B, S = 2, 8

    key = jax.random.PRNGKey(0)
    key, kx, kp = jax.random.split(key, 3)
    x = jax.random.normal(kx, (B, S, input_dim), jnp.float32)
    params = init_params(kp, input_dim, hidden_dim, num_layers)

    out = strong_transition_lstm_forward(x, params)
    out = jax.block_until_ready(out)
    assert out.shape == (B,), out.shape

    ref = jax.block_until_ready(ref_forward(x, params))
    assert jnp.allclose(out, ref, atol=5e-3, rtol=5e-3), (out, ref)

    print("KERNEL_OK")
</pallas_src>

<mosaic_0001>
module attributes {stable_mosaic.version = 11 : i64} {
  func.func @kernel(%arg0: memref<16x32xf32, #tpu.memory_space<vmem>>, %arg1: memref<32x256xf32, #tpu.memory_space<vmem>>, %arg2: memref<32x256xf32, #tpu.memory_space<vmem>>, %arg3: memref<1x256xf32, #tpu.memory_space<vmem>>, %arg4: memref<64x256xf32, #tpu.memory_space<vmem>>, %arg5: memref<64x256xf32, #tpu.memory_space<vmem>>, %arg6: memref<64x256xf32, #tpu.memory_space<vmem>>, %arg7: memref<1x256xf32, #tpu.memory_space<vmem>>, %arg8: memref<64x256xf32, #tpu.memory_space<vmem>>, %arg9: memref<1x64xf32, #tpu.memory_space<vmem>>, %arg10: memref<1x1xf32, #tpu.memory_space<vmem>>, %arg11: memref<2x1xf32, #tpu.memory_space<vmem>>, %arg12: memref<16x256xf32, #tpu.memory_space<vmem>>, %arg13: memref<16x256xf32, #tpu.memory_space<vmem>>, %arg14: memref<16x64xf32, #tpu.memory_space<vmem>>) attributes {dimension_semantics = [], scalar_prefetch = 0 : i64, scratch_operands = 3 : i64, tpu.core_type = #tpu.core_type<tc>} {
    %c0 = arith.constant 0 : index
    %c0_0 = arith.constant 0 : index
    %0 = vector.load %arg0[%c0, %c0_0] : memref<16x32xf32, #tpu.memory_space<vmem>>, vector<16x32xf32>
    %c0_1 = arith.constant 0 : index
    %c0_2 = arith.constant 0 : index
    %1 = vector.load %arg1[%c0_1, %c0_2] : memref<32x256xf32, #tpu.memory_space<vmem>>, vector<32x256xf32>
    %cst = arith.constant dense<0.000000e+00> : vector<16x256xf32>
    %2 = tpu.matmul %0, %1, %cst {dimension_numbers = #tpu.dot_dimension_numbers<[1], [0], [0], [1], [0, 0, 1, 1], [], []>} : vector<16x32xf32>, vector<32x256xf32>, vector<16x256xf32> -> vector<16x256xf32>
    %c0_3 = arith.constant 0 : index
    %c0_4 = arith.constant 0 : index
    %3 = vector.load %arg3[%c0_3, %c0_4] : memref<1x256xf32, #tpu.memory_space<vmem>>, vector<1x256xf32>
    %4 = vector.broadcast %3 : vector<1x256xf32> to vector<16x256xf32>
    %5 = arith.addf %2, %4 : vector<16x256xf32>
    %c0_5 = arith.constant 0 : index
    %c0_6 = arith.constant 0 : index
    %6 = vector.load %arg12[%c0_5, %c0_6] : memref<16x256xf32, #tpu.memory_space<vmem>>, vector<16x256xf32>
    tpu.vector_store %arg12[%c0_5, %c0_6], %5 {strides = array<i32>} : memref<16x256xf32, #tpu.memory_space<vmem>>, vector<16x256xf32>,
    %c0_7 = arith.constant 0 : index
    %c0_8 = arith.constant 0 : index
    %7 = vector.load %arg2[%c0_7, %c0_8] : memref<32x256xf32, #tpu.memory_space<vmem>>, vector<32x256xf32>
    %cst_9 = arith.constant dense<0.000000e+00> : vector<16x256xf32>
    %8 = tpu.matmul %0, %7, %cst_9 {dimension_numbers = #tpu.dot_dimension_numbers<[1], [0], [0], [1], [0, 0, 1, 1], [], []>} : vector<16x32xf32>, vector<32x256xf32>, vector<16x256xf32> -> vector<16x256xf32>
    %c0_10 = arith.constant 0 : index
    %c0_11 = arith.constant 0 : index
    %9 = vector.load %arg13[%c0_10, %c0_11] : memref<16x256xf32, #tpu.memory_space<vmem>>, vector<16x256xf32>
    tpu.vector_store %arg13[%c0_10, %c0_11], %8 {strides = array<i32>} : memref<16x256xf32, #tpu.memory_space<vmem>>, vector<16x256xf32>,
    %c0_12 = arith.constant 0 : index
    %c0_13 = arith.constant 0 : index
    %10 = vector.load %arg4[%c0_12, %c0_13] : memref<64x256xf32, #tpu.memory_space<vmem>>, vector<64x256xf32>
    %cst_14 = arith.constant 0.000000e+00 : f32
    %11 = vector.broadcast %cst_14 : f32 to vector<2x64xf32>
    %cst_15 = arith.constant 0.000000e+00 : f32
    %12 = vector.broadcast %cst_15 : f32 to vector<2x64xf32>
    %c0_16 = arith.constant 0 : index
    %c0_17 = arith.constant 0 : index
    %13 = vector.load %arg12[%c0_16, %c0_17] : memref<16x256xf32, #tpu.memory_space<vmem>>, vector<2x256xf32>
    %c14 = arith.constant 14 : index
    %c0_18 = arith.constant 0 : index
    %14 = vector.load %arg13[%c14, %c0_18] : memref<16x256xf32, #tpu.memory_space<vmem>>, vector<2x256xf32>
    %15 = arith.addf %13, %14 : vector<2x256xf32>
    %cst_19 = arith.constant dense<0.000000e+00> : vector<2x256xf32>
    %16 = tpu.matmul %11, %10, %cst_19 {dimension_numbers = #tpu.dot_dimension_numbers<[1], [0], [0], [1], [0, 0, 1, 1], [], []>} : vector<2x64xf32>, vector<64x256xf32>, vector<2x256xf32> -> vector<2x256xf32>
    %17 = arith.addf %15, %16 : vector<2x256xf32>
    %18 = vector.extract_strided_slice %17 {offsets = [0, 0], sizes = [2, 64], strides = [1, 1]} : vector<2x256xf32> to vector<2x64xf32>
    %19 = arith.negf %18 : vector<2x64xf32>
    %20 = math.exp %19 : vector<2x64xf32>
    %cst_20 = arith.constant 1.000000e+00 : f32
    %21 = vector.broadcast %cst_20 : f32 to vector<2x64xf32>
    %22 = arith.addf %21, %20 : vector<2x64xf32>
    %23 = arith.divf %21, %22 : vector<2x64xf32>
    %24 = vector.extract_strided_slice %17 {offsets = [0, 64], sizes = [2, 64], strides = [1, 1]} : vector<2x256xf32> to vector<2x64xf32>
    %25 = arith.negf %24 : vector<2x64xf32>
    %26 = math.exp %25 : vector<2x64xf32>
    %cst_21 = arith.constant 1.000000e+00 : f32
    %27 = vector.broadcast %cst_21 : f32 to vector<2x64xf32>
    %28 = arith.addf %27, %26 : vector<2x64xf32>
    %29 = arith.divf %27, %28 : vector<2x64xf32>
    %30 = vector.extract_strided_slice %17 {offsets = [0, 128], sizes = [2, 64], strides = [1, 1]} : vector<2x256xf32> to vector<2x64xf32>
    %31 = math.tanh %30 : vector<2x64xf32>
    %32 = vector.extract_strided_slice %17 {offsets = [0, 192], sizes = [2, 64], strides = [1, 1]} : vector<2x256xf32> to vector<2x64xf32>
    %33 = arith.negf %32 : vector<2x64xf32>
    %34 = math.exp %33 : vector<2x64xf32>
    %cst_22 = arith.constant 1.000000e+00 : f32
    %35 = vector.broadcast %cst_22 : f32 to vector<2x64xf32>
    %36 = arith.addf %35, %34 : vector<2x64xf32>
    %37 = arith.divf %35, %36 : vector<2x64xf32>
    %38 = arith.mulf %29, %12 : vector<2x64xf32>
    %39 = arith.mulf %23, %31 : vector<2x64xf32>
    %40 = arith.addf %38, %39 : vector<2x64xf32>
    %41 = math.tanh %40 : vector<2x64xf32>
    %42 = arith.mulf %37, %41 : vector<2x64xf32>
    %43 = vector.extract_strided_slice %42 {offsets = [0, 0], sizes = [2, 32], strides = [1, 1]} : vector<2x64xf32> to vector<2x32xf32>
    %c0_23 = arith.constant 0 : index
    %c0_24 = arith.constant 0 : index
    %44 = vector.load %arg14[%c0_23, %c0_24] : memref<16x64xf32, #tpu.memory_space<vmem>>, vector<2x32xf32>
    tpu.vector_store %arg14[%c0_23, %c0_24], %43 {strides = array<i32>} : memref<16x64xf32, #tpu.memory_space<vmem>>, vector<2x32xf32>,
    %45 = vector.extract_strided_slice %42 {offsets = [0, 32], sizes = [2, 32], strides = [1, 1]} : vector<2x64xf32> to vector<2x32xf32>
    %c14_25 = arith.constant 14 : index
    %c32 = arith.constant 32 : index
    %46 = vector.load %arg14[%c14_25, %c32] : memref<16x64xf32, #tpu.memory_space<vmem>>, vector<2x32xf32>
    tpu.vector_store %arg14[%c14_25, %c32], %45 {strides = array<i32>} : memref<16x64xf32, #tpu.memory_space<vmem>>, vector<2x32xf32>,
    %c2 = arith.constant 2 : index
    %c0_26 = arith.constant 0 : index
    %47 = vector.load %arg12[%c2, %c0_26] : memref<16x256xf32, #tpu.memory_space<vmem>>, vector<2x256xf32>
    %c12 = arith.constant 12 : index
    %c0_27 = arith.constant 0 : index
    %48 = vector.load %arg13[%c12, %c0_27] : memref<16x256xf32, #tpu.memory_space<vmem>>, vector<2x256xf32>
    %49 = arith.addf %47, %48 : vector<2x256xf32>
    %cst_28 = arith.constant dense<0.000000e+00> : vector<2x256xf32>
    %50 = tpu.matmul %42, %10, %cst_28 {dimension_numbers = #tpu.dot_dimension_numbers<[1], [0], [0], [1], [0, 0, 1, 1], [], []>} : vector<2x64xf32>, vector<64x256xf32>, vector<2x256xf32> -> vector<2x256xf32>
    %51 = arith.addf %49, %50 : vector<2x256xf32>
    %52 = vector.extract_strided_slice %51 {offsets = [0, 0], sizes = [2, 64], strides = [1, 1]} : vector<2x256xf32> to vector<2x64xf32>
    %53 = arith.negf %52 : vector<2x64xf32>
    %54 = math.exp %53 : vector<2x64xf32>
    %cst_29 = arith.constant 1.000000e+00 : f32
    %55 = vector.broadcast %cst_29 : f32 to vector<2x64xf32>
    %56 = arith.addf %55, %54 : vector<2x64xf32>
    %57 = arith.divf %55, %56 : vector<2x64xf32>
    %58 = vector.extract_strided_slice %51 {offsets = [0, 64], sizes = [2, 64], strides = [1, 1]} : vector<2x256xf32> to vector<2x64xf32>
    %59 = arith.negf %58 : vector<2x64xf32>
    %60 = math.exp %59 : vector<2x64xf32>
    %cst_30 = arith.constant 1.000000e+00 : f32
    %61 = vector.broadcast %cst_30 : f32 to vector<2x64xf32>
    %62 = arith.addf %61, %60 : vector<2x64xf32>
    %63 = arith.divf %61, %62 : vector<2x64xf32>
    %64 = vector.extract_strided_slice %51 {offsets = [0, 128], sizes = [2, 64], strides = [1, 1]} : vector<2x256xf32> to vector<2x64xf32>
    %65 = math.tanh %64 : vector<2x64xf32>
    %66 = vector.extract_strided_slice %51 {offsets = [0, 192], sizes = [2, 64], strides = [1, 1]} : vector<2x256xf32> to vector<2x64xf32>
    %67 = arith.negf %66 : vector<2x64xf32>
    %68 = math.exp %67 : vector<2x64xf32>
    %cst_31 = arith.constant 1.000000e+00 : f32
    %69 = vector.broadcast %cst_31 : f32 to vector<2x64xf32>
    %70 = arith.addf %69, %68 : vector<2x64xf32>
    %71 = arith.divf %69, %70 : vector<2x64xf32>
    %72 = arith.mulf %63, %40 : vector<2x64xf32>
    %73 = arith.mulf %57, %65 : vector<2x64xf32>
    %74 = arith.addf %72, %73 : vector<2x64xf32>
    %75 = math.tanh %74 : vector<2x64xf32>
    %76 = arith.mulf %71, %75 : vector<2x64xf32>
    %77 = vector.extract_strided_slice %76 {offsets = [0, 0], sizes = [2, 32], strides = [1, 1]} : vector<2x64xf32> to vector<2x32xf32>
    %c2_32 = arith.constant 2 : index
    %c0_33 = arith.constant 0 : index
    %78 = vector.load %arg14[%c2_32, %c0_33] : memref<16x64xf32, #tpu.memory_space<vmem>>, vector<2x32xf32>
    tpu.vector_store %arg14[%c2_32, %c0_33], %77 {strides = array<i32>} : memref<16x64xf32, #tpu.memory_space<vmem>>, vector<2x32xf32>,
    %79 = vector.extract_strided_slice %76 {offsets = [0, 32], sizes = [2, 32], strides = [1, 1]} : vector<2x64xf32> to vector<2x32xf32>
    %c12_34 = arith.constant 12 : index
    %c32_35 = arith.constant 32 : index
    %80 = vector.load %arg14[%c12_34, %c32_35] : memref<16x64xf32, #tpu.memory_space<vmem>>, vector<2x32xf32>
    tpu.vector_store %arg14[%c12_34, %c32_35], %79 {strides = array<i32>} : memref<16x64xf32, #tpu.memory_space<vmem>>, vector<2x32xf32>,
    %c4 = arith.constant 4 : index
    %c0_36 = arith.constant 0 : index
    %81 = vector.load %arg12[%c4, %c0_36] : memref<16x256xf32, #tpu.memory_space<vmem>>, vector<2x256xf32>
    %c10 = arith.constant 10 : index
    %c0_37 = arith.constant 0 : index
    %82 = vector.load %arg13[%c10, %c0_37] : memref<16x256xf32, #tpu.memory_space<vmem>>, vector<2x256xf32>
    %83 = arith.addf %81, %82 : vector<2x256xf32>
    %cst_38 = arith.constant dense<0.000000e+00> : vector<2x256xf32>
    %84 = tpu.matmul %76, %10, %cst_38 {dimension_numbers = #tpu.dot_dimension_numbers<[1], [0], [0], [1], [0, 0, 1, 1], [], []>} : vector<2x64xf32>, vector<64x256xf32>, vector<2x256xf32> -> vector<2x256xf32>
    %85 = arith.addf %83, %84 : vector<2x256xf32>
    %86 = vector.extract_strided_slice %85 {offsets = [0, 0], sizes = [2, 64], strides = [1, 1]} : vector<2x256xf32> to vector<2x64xf32>
    %87 = arith.negf %86 : vector<2x64xf32>
    %88 = math.exp %87 : vector<2x64xf32>
    %cst_39 = arith.constant 1.000000e+00 : f32
    %89 = vector.broadcast %cst_39 : f32 to vector<2x64xf32>
    %90 = arith.addf %89, %88 : vector<2x64xf32>
    %91 = arith.divf %89, %90 : vector<2x64xf32>
    %92 = vector.extract_strided_slice %85 {offsets = [0, 64], sizes = [2, 64], strides = [1, 1]} : vector<2x256xf32> to vector<2x64xf32>
    %93 = arith.negf %92 : vector<2x64xf32>
    %94 = math.exp %93 : vector<2x64xf32>
    %cst_40 = arith.constant 1.000000e+00 : f32
    %95 = vector.broadcast %cst_40 : f32 to vector<2x64xf32>
    %96 = arith.addf %95, %94 : vector<2x64xf32>
    %97 = arith.divf %95, %96 : vector<2x64xf32>
    %98 = vector.extract_strided_slice %85 {offsets = [0, 128], sizes = [2, 64], strides = [1, 1]} : vector<2x256xf32> to vector<2x64xf32>
    %99 = math.tanh %98 : vector<2x64xf32>
    %100 = vector.extract_strided_slice %85 {offsets = [0, 192], sizes = [2, 64], strides = [1, 1]} : vector<2x256xf32> to vector<2x64xf32>
    %101 = arith.negf %100 : vector<2x64xf32>
    %102 = math.exp %101 : vector<2x64xf32>
    %cst_41 = arith.constant 1.000000e+00 : f32
    %103 = vector.broadcast %cst_41 : f32 to vector<2x64xf32>
    %104 = arith.addf %103, %102 : vector<2x64xf32>
    %105 = arith.divf %103, %104 : vector<2x64xf32>
    %106 = arith.mulf %97, %74 : vector<2x64xf32>
    %107 = arith.mulf %91, %99 : vector<2x64xf32>
    %108 = arith.addf %106, %107 : vector<2x64xf32>
    %109 = math.tanh %108 : vector<2x64xf32>
    %110 = arith.mulf %105, %109 : vector<2x64xf32>
    %111 = vector.extract_strided_slice %110 {offsets = [0, 0], sizes = [2, 32], strides = [1, 1]} : vector<2x64xf32> to vector<2x32xf32>
    %c4_42 = arith.constant 4 : index
    %c0_43 = arith.constant 0 : index
    %112 = vector.load %arg14[%c4_42, %c0_43] : memref<16x64xf32, #tpu.memory_space<vmem>>, vector<2x32xf32>
    tpu.vector_store %arg14[%c4_42, %c0_43], %111 {strides = array<i32>} : memref<16x64xf32, #tpu.memory_space<vmem>>, vector<2x32xf32>,
    %113 = vector.extract_strided_slice %110 {offsets = [0, 32], sizes = [2, 32], strides = [1, 1]} : vector<2x64xf32> to vector<2x32xf32>
    %c10_44 = arith.constant 10 : index
    %c32_45 = arith.constant 32 : index
    %114 = vector.load %arg14[%c10_44, %c32_45] : memref<16x64xf32, #tpu.memory_space<vmem>>, vector<2x32xf32>
    tpu.vector_store %arg14[%c10_44, %c32_45], %113 {strides = array<i32>} : memref<16x64xf32, #tpu.memory_space<vmem>>, vector<2x32xf32>,
    %c6 = arith.constant 6 : index
    %c0_46 = arith.constant 0 : index
    %115 = vector.load %arg12[%c6, %c0_46] : memref<16x256xf32, #tpu.memory_space<vmem>>, vector<2x256xf32>
    %c8 = arith.constant 8 : index
    %c0_47 = arith.constant 0 : index
    %116 = vector.load %arg13[%c8, %c0_47] : memref<16x256xf32, #tpu.memory_space<vmem>>, vector<2x256xf32>
    %117 = arith.addf %115, %116 : vector<2x256xf32>
    %cst_48 = arith.constant dense<0.000000e+00> : vector<2x256xf32>
    %118 = tpu.matmul %110, %10, %cst_48 {dimension_numbers = #tpu.dot_dimension_numbers<[1], [0], [0], [1], [0, 0, 1, 1], [], []>} : vector<2x64xf32>, vector<64x256xf32>, vector<2x256xf32> -> vector<2x256xf32>
    %119 = arith.addf %117, %118 : vector<2x256xf32>
    %120 = vector.extract_strided_slice %119 {offsets = [0, 0], sizes = [2, 64], strides = [1, 1]} : vector<2x256xf32> to vector<2x64xf32>
    %121 = arith.negf %120 : vector<2x64xf32>
    %122 = math.exp %121 : vector<2x64xf32>
    %cst_49 = arith.constant 1.000000e+00 : f32
    %123 = vector.broadcast %cst_49 : f32 to vector<2x64xf32>
    %124 = arith.addf %123, %122 : vector<2x64xf32>
    %125 = arith.divf %123, %124 : vector<2x64xf32>
    %126 = vector.extract_strided_slice %119 {offsets = [0, 64], sizes = [2, 64], strides = [1, 1]} : vector<2x256xf32> to vector<2x64xf32>
    %127 = arith.negf %126 : vector<2x64xf32>
    %128 = math.exp %127 : vector<2x64xf32>
    %cst_50 = arith.constant 1.000000e+00 : f32
    %129 = vector.broadcast %cst_50 : f32 to vector<2x64xf32>
    %130 = arith.addf %129, %128 : vector<2x64xf32>
    %131 = arith.divf %129, %130 : vector<2x64xf32>
    %132 = vector.extract_strided_slice %119 {offsets = [0, 128], sizes = [2, 64], strides = [1, 1]} : vector<2x256xf32> to vector<2x64xf32>
    %133 = math.tanh %132 : vector<2x64xf32>
    %134 = vector.extract_strided_slice %119 {offsets = [0, 192], sizes = [2, 64], strides = [1, 1]} : vector<2x256xf32> to vector<2x64xf32>
    %135 = arith.negf %134 : vector<2x64xf32>
    %136 = math.exp %135 : vector<2x64xf32>
    %cst_51 = arith.constant 1.000000e+00 : f32
    %137 = vector.broadcast %cst_51 : f32 to vector<2x64xf32>
    %138 = arith.addf %137, %136 : vector<2x64xf32>
    %139 = arith.divf %137, %138 : vector<2x64xf32>
    %140 = arith.mulf %131, %108 : vector<2x64xf32>
    %141 = arith.mulf %125, %133 : vector<2x64xf32>
    %142 = arith.addf %140, %141 : vector<2x64xf32>
    %143 = math.tanh %142 : vector<2x64xf32>
    %144 = arith.mulf %139, %143 : vector<2x64xf32>
    %145 = vector.extract_strided_slice %144 {offsets = [0, 0], sizes = [2, 32], strides = [1, 1]} : vector<2x64xf32> to vector<2x32xf32>
    %c6_52 = arith.constant 6 : index
    %c0_53 = arith.constant 0 : index
    %146 = vector.load %arg14[%c6_52, %c0_53] : memref<16x64xf32, #tpu.memory_space<vmem>>, vector<2x32xf32>
    tpu.vector_store %arg14[%c6_52, %c0_53], %145 {strides = array<i32>} : memref<16x64xf32, #tpu.memory_space<vmem>>, vector<2x32xf32>,
    %147 = vector.extract_strided_slice %144 {offsets = [0, 32], sizes = [2, 32], strides = [1, 1]} : vector<2x64xf32> to vector<2x32xf32>
    %c8_54 = arith.constant 8 : index
    %c32_55 = arith.constant 32 : index
    %148 = vector.load %arg14[%c8_54, %c32_55] : memref<16x64xf32, #tpu.memory_space<vmem>>, vector<2x32xf32>
    tpu.vector_store %arg14[%c8_54, %c32_55], %147 {strides = array<i32>} : memref<16x64xf32, #tpu.memory_space<vmem>>, vector<2x32xf32>,
    %c8_56 = arith.constant 8 : index
    %c0_57 = arith.constant 0 : index
    %149 = vector.load %arg12[%c8_56, %c0_57] : memref<16x256xf32, #tpu.memory_space<vmem>>, vector<2x256xf32>
    %c6_58 = arith.constant 6 : index
    %c0_59 = arith.constant 0 : index
    %150 = vector.load %arg13[%c6_58, %c0_59] : memref<16x256xf32, #tpu.memory_space<vmem>>, vector<2x256xf32>
    %151 = arith.addf %149, %150 : vector<2x256xf32>
    %cst_60 = arith.constant dense<0.000000e+00> : vector<2x256xf32>
    %152 = tpu.matmul %144, %10, %cst_60 {dimension_numbers = #tpu.dot_dimension_numbers<[1], [0], [0], [1], [0, 0, 1, 1], [], []>} : vector<2x64xf32>, vector<64x256xf32>, vector<2x256xf32> -> vector<2x256xf32>
    %153 = arith.addf %151, %152 : vector<2x256xf32>
    %154 = vector.extract_strided_slice %153 {offsets = [0, 0], sizes = [2, 64], strides = [1, 1]} : vector<2x256xf32> to vector<2x64xf32>
    %155 = arith.negf %154 : vector<2x64xf32>
    %156 = math.exp %155 : vector<2x64xf32>
    %cst_61 = arith.constant 1.000000e+00 : f32
    %157 = vector.broadcast %cst_61 : f32 to vector<2x64xf32>
    %158 = arith.addf %157, %156 : vector<2x64xf32>
    %159 = arith.divf %157, %158 : vector<2x64xf32>
    %160 = vector.extract_strided_slice %153 {offsets = [0, 64], sizes = [2, 64], strides = [1, 1]} : vector<2x256xf32> to vector<2x64xf32>
    %161 = arith.negf %160 : vector<2x64xf32>
    %162 = math.exp %161 : vector<2x64xf32>
    %cst_62 = arith.constant 1.000000e+00 : f32
    %163 = vector.broadcast %cst_62 : f32 to vector<2x64xf32>
    %164 = arith.addf %163, %162 : vector<2x64xf32>
    %165 = arith.divf %163, %164 : vector<2x64xf32>
    %166 = vector.extract_strided_slice %153 {offsets = [0, 128], sizes = [2, 64], strides = [1, 1]} : vector<2x256xf32> to vector<2x64xf32>
    %167 = math.tanh %166 : vector<2x64xf32>
    %168 = vector.extract_strided_slice %153 {offsets = [0, 192], sizes = [2, 64], strides = [1, 1]} : vector<2x256xf32> to vector<2x64xf32>
    %169 = arith.negf %168 : vector<2x64xf32>
    %170 = math.exp %169 : vector<2x64xf32>
    %cst_63 = arith.constant 1.000000e+00 : f32
    %171 = vector.broadcast %cst_63 : f32 to vector<2x64xf32>
    %172 = arith.addf %171, %170 : vector<2x64xf32>
    %173 = arith.divf %171, %172 : vector<2x64xf32>
    %174 = arith.mulf %165, %142 : vector<2x64xf32>
    %175 = arith.mulf %159, %167 : vector<2x64xf32>
    %176 = arith.addf %174, %175 : vector<2x64xf32>
    %177 = math.tanh %176 : vector<2x64xf32>
    %178 = arith.mulf %173, %177 : vector<2x64xf32>
    %179 = vector.extract_strided_slice %178 {offsets = [0, 0], sizes = [2, 32], strides = [1, 1]} : vector<2x64xf32> to vector<2x32xf32>
    %c8_64 = arith.constant 8 : index
    %c0_65 = arith.constant 0 : index
    %180 = vector.load %arg14[%c8_64, %c0_65] : memref<16x64xf32, #tpu.memory_space<vmem>>, vector<2x32xf32>
    tpu.vector_store %arg14[%c8_64, %c0_65], %179 {strides = array<i32>} : memref<16x64xf32, #tpu.memory_space<vmem>>, vector<2x32xf32>,
    %181 = vector.extract_strided_slice %178 {offsets = [0, 32], sizes = [2, 32], strides = [1, 1]} : vector<2x64xf32> to vector<2x32xf32>
    %c6_66 = arith.constant 6 : index
    %c32_67 = arith.constant 32 : index
    %182 = vector.load %arg14[%c6_66, %c32_67] : memref<16x64xf32, #tpu.memory_space<vmem>>, vector<2x32xf32>
    tpu.vector_store %arg14[%c6_66, %c32_67], %181 {strides = array<i32>} : memref<16x64xf32, #tpu.memory_space<vmem>>, vector<2x32xf32>,
    %c10_68 = arith.constant 10 : index
    %c0_69 = arith.constant 0 : index
    %183 = vector.load %arg12[%c10_68, %c0_69] : memref<16x256xf32, #tpu.memory_space<vmem>>, vector<2x256xf32>
    %c4_70 = arith.constant 4 : index
    %c0_71 = arith.constant 0 : index
    %184 = vector.load %arg13[%c4_70, %c0_71] : memref<16x256xf32, #tpu.memory_space<vmem>>, vector<2x256xf32>
    %185 = arith.addf %183, %184 : vector<2x256xf32>
    %cst_72 = arith.constant dense<0.000000e+00> : vector<2x256xf32>
    %186 = tpu.matmul %178, %10, %cst_72 {dimension_numbers = #tpu.dot_dimension_numbers<[1], [0], [0], [1], [0, 0, 1, 1], [], []>} : vector<2x64xf32>, vector<64x256xf32>, vector<2x256xf32> -> vector<2x256xf32>
    %187 = arith.addf %185, %186 : vector<2x256xf32>
    %188 = vector.extract_strided_slice %187 {offsets = [0, 0], sizes = [2, 64], strides = [1, 1]} : vector<2x256xf32> to vector<2x64xf32>
    %189 = arith.negf %188 : vector<2x64xf32>
    %190 = math.exp %189 : vector<2x64xf32>
    %cst_73 = arith.constant 1.000000e+00 : f32
    %191 = vector.broadcast %cst_73 : f32 to vector<2x64xf32>
    %192 = arith.addf %191, %190 : vector<2x64xf32>
    %193 = arith.divf %191, %192 : vector<2x64xf32>
    %194 = vector.extract_strided_slice %187 {offsets = [0, 64], sizes = [2, 64], strides = [1, 1]} : vector<2x256xf32> to vector<2x64xf32>
    %195 = arith.negf %194 : vector<2x64xf32>
    %196 = math.exp %195 : vector<2x64xf32>
    %cst_74 = arith.constant 1.000000e+00 : f32
    %197 = vector.broadcast %cst_74 : f32 to vector<2x64xf32>
    %198 = arith.addf %197, %196 : vector<2x64xf32>
    %199 = arith.divf %197, %198 : vector<2x64xf32>
    %200 = vector.extract_strided_slice %187 {offsets = [0, 128], sizes = [2, 64], strides = [1, 1]} : vector<2x256xf32> to vector<2x64xf32>
    %201 = math.tanh %200 : vector<2x64xf32>
    %202 = vector.extract_strided_slice %187 {offsets = [0, 192], sizes = [2, 64], strides = [1, 1]} : vector<2x256xf32> to vector<2x64xf32>
    %203 = arith.negf %202 : vector<2x64xf32>
    %204 = math.exp %203 : vector<2x64xf32>
    %cst_75 = arith.constant 1.000000e+00 : f32
    %205 = vector.broadcast %cst_75 : f32 to vector<2x64xf32>
    %206 = arith.addf %205, %204 : vector<2x64xf32>
    %207 = arith.divf %205, %206 : vector<2x64xf32>
    %208 = arith.mulf %199, %176 : vector<2x64xf32>
    %209 = arith.mulf %193, %201 : vector<2x64xf32>
    %210 = arith.addf %208, %209 : vector<2x64xf32>
    %211 = math.tanh %210 : vector<2x64xf32>
    %212 = arith.mulf %207, %211 : vector<2x64xf32>
    %213 = vector.extract_strided_slice %212 {offsets = [0, 0], sizes = [2, 32], strides = [1, 1]} : vector<2x64xf32> to vector<2x32xf32>
    %c10_76 = arith.constant 10 : index
    %c0_77 = arith.constant 0 : index
    %214 = vector.load %arg14[%c10_76, %c0_77] : memref<16x64xf32, #tpu.memory_space<vmem>>, vector<2x32xf32>
    tpu.vector_store %arg14[%c10_76, %c0_77], %213 {strides = array<i32>} : memref<16x64xf32, #tpu.memory_space<vmem>>, vector<2x32xf32>,
    %215 = vector.extract_strided_slice %212 {offsets = [0, 32], sizes = [2, 32], strides = [1, 1]} : vector<2x64xf32> to vector<2x32xf32>
    %c4_78 = arith.constant 4 : index
    %c32_79 = arith.constant 32 : index
    %216 = vector.load %arg14[%c4_78, %c32_79] : memref<16x64xf32, #tpu.memory_space<vmem>>, vector<2x32xf32>
    tpu.vector_store %arg14[%c4_78, %c32_79], %215 {strides = array<i32>} : memref<16x64xf32, #tpu.memory_space<vmem>>, vector<2x32xf32>,
    %c12_80 = arith.constant 12 : index
    %c0_81 = arith.constant 0 : index
    %217 = vector.load %arg12[%c12_80, %c0_81] : memref<16x256xf32, #tpu.memory_space<vmem>>, vector<2x256xf32>
    %c2_82 = arith.constant 2 : index
    %c0_83 = arith.constant 0 : index
    %218 = vector.load %arg13[%c2_82, %c0_83] : memref<16x256xf32, #tpu.memory_space<vmem>>, vector<2x256xf32>
    %219 = arith.addf %217, %218 : vector<2x256xf32>
    %cst_84 = arith.constant dense<0.000000e+00> : vector<2x256xf32>
    %220 = tpu.matmul %212, %10, %cst_84 {dimension_numbers = #tpu.dot_dimension_numbers<[1], [0], [0], [1], [0, 0, 1, 1], [], []>} : vector<2x64xf32>, vector<64x256xf32>, vector<2x256xf32> -> vector<2x256xf32>
    %221 = arith.addf %219, %220 : vector<2x256xf32>
    %222 = vector.extract_strided_slice %221 {offsets = [0, 0], sizes = [2, 64], strides = [1, 1]} : vector<2x256xf32> to vector<2x64xf32>
    %223 = arith.negf %222 : vector<2x64xf32>
    %224 = math.exp %223 : vector<2x64xf32>
    %cst_85 = arith.constant 1.000000e+00 : f32
    %225 = vector.broadcast %cst_85 : f32 to vector<2x64xf32>
    %226 = arith.addf %225, %224 : vector<2x64xf32>
    %227 = arith.divf %225, %226 : vector<2x64xf32>
    %228 = vector.extract_strided_slice %221 {offsets = [0, 64], sizes = [2, 64], strides = [1, 1]} : vector<2x256xf32> to vector<2x64xf32>
    %229 = arith.negf %228 : vector<2x64xf32>
    %230 = math.exp %229 : vector<2x64xf32>
    %cst_86 = arith.constant 1.000000e+00 : f32
    %231 = vector.broadcast %cst_86 : f32 to vector<2x64xf32>
    %232 = arith.addf %231, %230 : vector<2x64xf32>
    %233 = arith.divf %231, %232 : vector<2x64xf32>
    %234 = vector.extract_strided_slice %221 {offsets = [0, 128], sizes = [2, 64], strides = [1, 1]} : vector<2x256xf32> to vector<2x64xf32>
    %235 = math.tanh %234 : vector<2x64xf32>
    %236 = vector.extract_strided_slice %221 {offsets = [0, 192], sizes = [2, 64], strides = [1, 1]} : vector<2x256xf32> to vector<2x64xf32>
    %237 = arith.negf %236 : vector<2x64xf32>
    %238 = math.exp %237 : vector<2x64xf32>
    %cst_87 = arith.constant 1.000000e+00 : f32
    %239 = vector.broadcast %cst_87 : f32 to vector<2x64xf32>
    %240 = arith.addf %239, %238 : vector<2x64xf32>
    %241 = arith.divf %239, %240 : vector<2x64xf32>
    %242 = arith.mulf %233, %210 : vector<2x64xf32>
    %243 = arith.mulf %227, %235 : vector<2x64xf32>
    %244 = arith.addf %242, %243 : vector<2x64xf32>
    %245 = math.tanh %244 : vector<2x64xf32>
    %246 = arith.mulf %241, %245 : vector<2x64xf32>
    %247 = vector.extract_strided_slice %246 {offsets = [0, 0], sizes = [2, 32], strides = [1, 1]} : vector<2x64xf32> to vector<2x32xf32>
    %c12_88 = arith.constant 12 : index
    %c0_89 = arith.constant 0 : index
    %248 = vector.load %arg14[%c12_88, %c0_89] : memref<16x64xf32, #tpu.memory_space<vmem>>, vector<2x32xf32>
    tpu.vector_store %arg14[%c12_88, %c0_89], %247 {strides = array<i32>} : memref<16x64xf32, #tpu.memory_space<vmem>>, vector<2x32xf32>,
    %249 = vector.extract_strided_slice %246 {offsets = [0, 32], sizes = [2, 32], strides = [1, 1]} : vector<2x64xf32> to vector<2x32xf32>
    %c2_90 = arith.constant 2 : index
    %c32_91 = arith.constant 32 : index
    %250 = vector.load %arg14[%c2_90, %c32_91] : memref<16x64xf32, #tpu.memory_space<vmem>>, vector<2x32xf32>
    tpu.vector_store %arg14[%c2_90, %c32_91], %249 {strides = array<i32>} : memref<16x64xf32, #tpu.memory_space<vmem>>, vector<2x32xf32>,
    %c14_92 = arith.constant 14 : index
    %c0_93 = arith.constant 0 : index
    %251 = vector.load %arg12[%c14_92, %c0_93] : memref<16x256xf32, #tpu.memory_space<vmem>>, vector<2x256xf32>
    %c0_94 = arith.constant 0 : index
    %c0_95 = arith.constant 0 : index
    %252 = vector.load %arg13[%c0_94, %c0_95] : memref<16x256xf32, #tpu.memory_space<vmem>>, vector<2x256xf32>
    %253 = arith.addf %251, %252 : vector<2x256xf32>
    %cst_96 = arith.constant dense<0.000000e+00> : vector<2x256xf32>
    %254 = tpu.matmul %246, %10, %cst_96 {dimension_numbers = #tpu.dot_dimension_numbers<[1], [0], [0], [1], [0, 0, 1, 1], [], []>} : vector<2x64xf32>, vector<64x256xf32>, vector<2x256xf32> -> vector<2x256xf32>
    %255 = arith.addf %253, %254 : vector<2x256xf32>
    %256 = vector.extract_strided_slice %255 {offsets = [0, 0], sizes = [2, 64], strides = [1, 1]} : vector<2x256xf32> to vector<2x64xf32>
    %257 = arith.negf %256 : vector<2x64xf32>
    %258 = math.exp %257 : vector<2x64xf32>
    %cst_97 = arith.constant 1.000000e+00 : f32
    %259 = vector.broadcast %cst_97 : f32 to vector<2x64xf32>
    %260 = arith.addf %259, %258 : vector<2x64xf32>
    %261 = arith.divf %259, %260 : vector<2x64xf32>
    %262 = vector.extract_strided_slice %255 {offsets = [0, 64], sizes = [2, 64], strides = [1, 1]} : vector<2x256xf32> to vector<2x64xf32>
    %263 = arith.negf %262 : vector<2x64xf32>
    %264 = math.exp %263 : vector<2x64xf32>
    %cst_98 = arith.constant 1.000000e+00 : f32
    %265 = vector.broadcast %cst_98 : f32 to vector<2x64xf32>
    %266 = arith.addf %265, %264 : vector<2x64xf32>
    %267 = arith.divf %265, %266 : vector<2x64xf32>
    %268 = vector.extract_strided_slice %255 {offsets = [0, 128], sizes = [2, 64], strides = [1, 1]} : vector<2x256xf32> to vector<2x64xf32>
    %269 = math.tanh %268 : vector<2x64xf32>
    %270 = vector.extract_strided_slice %255 {offsets = [0, 192], sizes = [2, 64], strides = [1, 1]} : vector<2x256xf32> to vector<2x64xf32>
    %271 = arith.negf %270 : vector<2x64xf32>
    %272 = math.exp %271 : vector<2x64xf32>
    %cst_99 = arith.constant 1.000000e+00 : f32
    %273 = vector.broadcast %cst_99 : f32 to vector<2x64xf32>
    %274 = arith.addf %273, %272 : vector<2x64xf32>
    %275 = arith.divf %273, %274 : vector<2x64xf32>
    %276 = arith.mulf %267, %244 : vector<2x64xf32>
    %277 = arith.mulf %261, %269 : vector<2x64xf32>
    %278 = arith.addf %276, %277 : vector<2x64xf32>
    %279 = math.tanh %278 : vector<2x64xf32>
    %280 = arith.mulf %275, %279 : vector<2x64xf32>
    %281 = vector.extract_strided_slice %280 {offsets = [0, 0], sizes = [2, 32], strides = [1, 1]} : vector<2x64xf32> to vector<2x32xf32>
    %c14_100 = arith.constant 14 : index
    %c0_101 = arith.constant 0 : index
    %282 = vector.load %arg14[%c14_100, %c0_101] : memref<16x64xf32, #tpu.memory_space<vmem>>, vector<2x32xf32>
    tpu.vector_store %arg14[%c14_100, %c0_101], %281 {strides = array<i32>} : memref<16x64xf32, #tpu.memory_space<vmem>>, vector<2x32xf32>,
    %283 = vector.extract_strided_slice %280 {offsets = [0, 32], sizes = [2, 32], strides = [1, 1]} : vector<2x64xf32> to vector<2x32xf32>
    %c0_102 = arith.constant 0 : index
    %c32_103 = arith.constant 32 : index
    %284 = vector.load %arg14[%c0_102, %c32_103] : memref<16x64xf32, #tpu.memory_space<vmem>>, vector<2x32xf32>
    tpu.vector_store %arg14[%c0_102, %c32_103], %283 {strides = array<i32>} : memref<16x64xf32, #tpu.memory_space<vmem>>, vector<2x32xf32>,
    %c0_104 = arith.constant 0 : index
    %c0_105 = arith.constant 0 : index
    %285 = vector.load %arg14[%c0_104, %c0_105] : memref<16x64xf32, #tpu.memory_space<vmem>>, vector<16x64xf32>
    %c0_106 = arith.constant 0 : index
    %c0_107 = arith.constant 0 : index
    %286 = vector.load %arg5[%c0_106, %c0_107] : memref<64x256xf32, #tpu.memory_space<vmem>>, vector<64x256xf32>
    %cst_108 = arith.constant dense<0.000000e+00> : vector<16x256xf32>
    %287 = tpu.matmul %285, %286, %cst_108 {dimension_numbers = #tpu.dot_dimension_numbers<[1], [0], [0], [1], [0, 0, 1, 1], [], []>} : vector<16x64xf32>, vector<64x256xf32>, vector<16x256xf32> -> vector<16x256xf32>
    %c0_109 = arith.constant 0 : index
    %c0_110 = arith.constant 0 : index
    %288 = vector.load %arg7[%c0_109, %c0_110] : memref<1x256xf32, #tpu.memory_space<vmem>>, vector<1x256xf32>
    %289 = vector.broadcast %288 : vector<1x256xf32> to vector<16x256xf32>
    %290 = arith.addf %287, %289 : vector<16x256xf32>
    %c0_111 = arith.constant 0 : index
    %c0_112 = arith.constant 0 : index
    %291 = vector.load %arg12[%c0_111, %c0_112] : memref<16x256xf32, #tpu.memory_space<vmem>>, vector<16x256xf32>
    tpu.vector_store %arg12[%c0_111, %c0_112], %290 {strides = array<i32>} : memref<16x256xf32, #tpu.memory_space<vmem>>, vector<16x256xf32>,
    %c0_113 = arith.constant 0 : index
    %c0_114 = arith.constant 0 : index
    %292 = vector.load %arg6[%c0_113, %c0_114] : memref<64x256xf32, #tpu.memory_space<vmem>>, vector<64x256xf32>
    %cst_115 = arith.constant dense<0.000000e+00> : vector<16x256xf32>
    %293 = tpu.matmul %285, %292, %cst_115 {dimension_numbers = #tpu.dot_dimension_numbers<[1], [0], [0], [1], [0, 0, 1, 1], [], []>} : vector<16x64xf32>, vector<64x256xf32>, vector<16x256xf32> -> vector<16x256xf32>
    %c0_116 = arith.constant 0 : index
    %c0_117 = arith.constant 0 : index
    %294 = vector.load %arg13[%c0_116, %c0_117] : memref<16x256xf32, #tpu.memory_space<vmem>>, vector<16x256xf32>
    tpu.vector_store %arg13[%c0_116, %c0_117], %293 {strides = array<i32>} : memref<16x256xf32, #tpu.memory_space<vmem>>, vector<16x256xf32>,
    %c0_118 = arith.constant 0 : index
    %c0_119 = arith.constant 0 : index
    %295 = vector.load %arg8[%c0_118, %c0_119] : memref<64x256xf32, #tpu.memory_space<vmem>>, vector<64x256xf32>
    %cst_120 = arith.constant 0.000000e+00 : f32
    %296 = vector.broadcast %cst_120 : f32 to vector<2x64xf32>
    %cst_121 = arith.constant 0.000000e+00 : f32
    %297 = vector.broadcast %cst_121 : f32 to vector<2x64xf32>
    %c0_122 = arith.constant 0 : index
    %c0_123 = arith.constant 0 : index
    %298 = vector.load %arg12[%c0_122, %c0_123] : memref<16x256xf32, #tpu.memory_space<vmem>>, vector<2x256xf32>
    %c14_124 = arith.constant 14 : index
    %c0_125 = arith.constant 0 : index
    %299 = vector.load %arg13[%c14_124, %c0_125] : memref<16x256xf32, #tpu.memory_space<vmem>>, vector<2x256xf32>
    %300 = arith.addf %298, %299 : vector<2x256xf32>
    %cst_126 = arith.constant dense<0.000000e+00> : vector<2x256xf32>
    %301 = tpu.matmul %296, %295, %cst_126 {dimension_numbers = #tpu.dot_dimension_numbers<[1], [0], [0], [1], [0, 0, 1, 1], [], []>} : vector<2x64xf32>, vector<64x256xf32>, vector<2x256xf32> -> vector<2x256xf32>
    %302 = arith.addf %300, %301 : vector<2x256xf32>
    %303 = vector.extract_strided_slice %302 {offsets = [0, 0], sizes = [2, 64], strides = [1, 1]} : vector<2x256xf32> to vector<2x64xf32>
    %304 = arith.negf %303 : vector<2x64xf32>
    %305 = math.exp %304 : vector<2x64xf32>
    %cst_127 = arith.constant 1.000000e+00 : f32
    %306 = vector.broadcast %cst_127 : f32 to vector<2x64xf32>
    %307 = arith.addf %306, %305 : vector<2x64xf32>
    %308 = arith.divf %306, %307 : vector<2x64xf32>
    %309 = vector.extract_strided_slice %302 {offsets = [0, 64], sizes = [2, 64], strides = [1, 1]} : vector<2x256xf32> to vector<2x64xf32>
    %310 = arith.negf %309 : vector<2x64xf32>
    %311 = math.exp %310 : vector<2x64xf32>
    %cst_128 = arith.constant 1.000000e+00 : f32
    %312 = vector.broadcast %cst_128 : f32 to vector<2x64xf32>
    %313 = arith.addf %312, %311 : vector<2x64xf32>
    %314 = arith.divf %312, %313 : vector<2x64xf32>
    %315 = vector.extract_strided_slice %302 {offsets = [0, 128], sizes = [2, 64], strides = [1, 1]} : vector<2x256xf32> to vector<2x64xf32>
    %316 = math.tanh %315 : vector<2x64xf32>
    %317 = vector.extract_strided_slice %302 {offsets = [0, 192], sizes = [2, 64], strides = [1, 1]} : vector<2x256xf32> to vector<2x64xf32>
    %318 = arith.negf %317 : vector<2x64xf32>
    %319 = math.exp %318 : vector<2x64xf32>
    %cst_129 = arith.constant 1.000000e+00 : f32
    %320 = vector.broadcast %cst_129 : f32 to vector<2x64xf32>
    %321 = arith.addf %320, %319 : vector<2x64xf32>
    %322 = arith.divf %320, %321 : vector<2x64xf32>
    %323 = arith.mulf %314, %297 : vector<2x64xf32>
    %324 = arith.mulf %308, %316 : vector<2x64xf32>
    %325 = arith.addf %323, %324 : vector<2x64xf32>
    %326 = math.tanh %325 : vector<2x64xf32>
    %327 = arith.mulf %322, %326 : vector<2x64xf32>
    %c2_130 = arith.constant 2 : index
    %c0_131 = arith.constant 0 : index
    %328 = vector.load %arg12[%c2_130, %c0_131] : memref<16x256xf32, #tpu.memory_space<vmem>>, vector<2x256xf32>
    %c12_132 = arith.constant 12 : index
    %c0_133 = arith.constant 0 : index
    %329 = vector.load %arg13[%c12_132, %c0_133] : memref<16x256xf32, #tpu.memory_space<vmem>>, vector<2x256xf32>
    %330 = arith.addf %328, %329 : vector<2x256xf32>
    %cst_134 = arith.constant dense<0.000000e+00> : vector<2x256xf32>
    %331 = tpu.matmul %327, %295, %cst_134 {dimension_numbers = #tpu.dot_dimension_numbers<[1], [0], [0], [1], [0, 0, 1, 1], [], []>} : vector<2x64xf32>, vector<64x256xf32>, vector<2x256xf32> -> vector<2x256xf32>
    %332 = arith.addf %330, %331 : vector<2x256xf32>
    %333 = vector.extract_strided_slice %332 {offsets = [0, 0], sizes = [2, 64], strides = [1, 1]} : vector<2x256xf32> to vector<2x64xf32>
    %334 = arith.negf %333 : vector<2x64xf32>
    %335 = math.exp %334 : vector<2x64xf32>
    %cst_135 = arith.constant 1.000000e+00 : f32
    %336 = vector.broadcast %cst_135 : f32 to vector<2x64xf32>
    %337 = arith.addf %336, %335 : vector<2x64xf32>
    %338 = arith.divf %336, %337 : vector<2x64xf32>
    %339 = vector.extract_strided_slice %332 {offsets = [0, 64], sizes = [2, 64], strides = [1, 1]} : vector<2x256xf32> to vector<2x64xf32>
    %340 = arith.negf %339 : vector<2x64xf32>
    %341 = math.exp %340 : vector<2x64xf32>
    %cst_136 = arith.constant 1.000000e+00 : f32
    %342 = vector.broadcast %cst_136 : f32 to vector<2x64xf32>
    %343 = arith.addf %342, %341 : vector<2x64xf32>
    %344 = arith.divf %342, %343 : vector<2x64xf32>
    %345 = vector.extract_strided_slice %332 {offsets = [0, 128], sizes = [2, 64], strides = [1, 1]} : vector<2x256xf32> to vector<2x64xf32>
    %346 = math.tanh %345 : vector<2x64xf32>
    %347 = vector.extract_strided_slice %332 {offsets = [0, 192], sizes = [2, 64], strides = [1, 1]} : vector<2x256xf32> to vector<2x64xf32>
    %348 = arith.negf %347 : vector<2x64xf32>
    %349 = math.exp %348 : vector<2x64xf32>
    %cst_137 = arith.constant 1.000000e+00 : f32
    %350 = vector.broadcast %cst_137 : f32 to vector<2x64xf32>
    %351 = arith.addf %350, %349 : vector<2x64xf32>
    %352 = arith.divf %350, %351 : vector<2x64xf32>
    %353 = arith.mulf %344, %325 : vector<2x64xf32>
    %354 = arith.mulf %338, %346 : vector<2x64xf32>
    %355 = arith.addf %353, %354 : vector<2x64xf32>
    %356 = math.tanh %355 : vector<2x64xf32>
    %357 = arith.mulf %352, %356 : vector<2x64xf32>
    %c4_138 = arith.constant 4 : index
    %c0_139 = arith.constant 0 : index
    %358 = vector.load %arg12[%c4_138, %c0_139] : memref<16x256xf32, #tpu.memory_space<vmem>>, vector<2x256xf32>
    %c10_140 = arith.constant 10 : index
    %c0_141 = arith.constant 0 : index
    %359 = vector.load %arg13[%c10_140, %c0_141] : memref<16x256xf32, #tpu.memory_space<vmem>>, vector<2x256xf32>
    %360 = arith.addf %358, %359 : vector<2x256xf32>
    %cst_142 = arith.constant dense<0.000000e+00> : vector<2x256xf32>
    %361 = tpu.matmul %357, %295, %cst_142 {dimension_numbers = #tpu.dot_dimension_numbers<[1], [0], [0], [1], [0, 0, 1, 1], [], []>} : vector<2x64xf32>, vector<64x256xf32>, vector<2x256xf32> -> vector<2x256xf32>
    %362 = arith.addf %360, %361 : vector<2x256xf32>
    %363 = vector.extract_strided_slice %362 {offsets = [0, 0], sizes = [2, 64], strides = [1, 1]} : vector<2x256xf32> to vector<2x64xf32>
    %364 = arith.negf %363 : vector<2x64xf32>
    %365 = math.exp %364 : vector<2x64xf32>
    %cst_143 = arith.constant 1.000000e+00 : f32
    %366 = vector.broadcast %cst_143 : f32 to vector<2x64xf32>
    %367 = arith.addf %366, %365 : vector<2x64xf32>
    %368 = arith.divf %366, %367 : vector<2x64xf32>
    %369 = vector.extract_strided_slice %362 {offsets = [0, 64], sizes = [2, 64], strides = [1, 1]} : vector<2x256xf32> to vector<2x64xf32>
    %370 = arith.negf %369 : vector<2x64xf32>
    %371 = math.exp %370 : vector<2x64xf32>
    %cst_144 = arith.constant 1.000000e+00 : f32
    %372 = vector.broadcast %cst_144 : f32 to vector<2x64xf32>
    %373 = arith.addf %372, %371 : vector<2x64xf32>
    %374 = arith.divf %372, %373 : vector<2x64xf32>
    %375 = vector.extract_strided_slice %362 {offsets = [0, 128], sizes = [2, 64], strides = [1, 1]} : vector<2x256xf32> to vector<2x64xf32>
    %376 = math.tanh %375 : vector<2x64xf32>
    %377 = vector.extract_strided_slice %362 {offsets = [0, 192], sizes = [2, 64], strides = [1, 1]} : vector<2x256xf32> to vector<2x64xf32>
    %378 = arith.negf %377 : vector<2x64xf32>
    %379 = math.exp %378 : vector<2x64xf32>
    %cst_145 = arith.constant 1.000000e+00 : f32
    %380 = vector.broadcast %cst_145 : f32 to vector<2x64xf32>
    %381 = arith.addf %380, %379 : vector<2x64xf32>
    %382 = arith.divf %380, %381 : vector<2x64xf32>
    %383 = arith.mulf %374, %355 : vector<2x64xf32>
    %384 = arith.mulf %368, %376 : vector<2x64xf32>
    %385 = arith.addf %383, %384 : vector<2x64xf32>
    %386 = math.tanh %385 : vector<2x64xf32>
    %387 = arith.mulf %382, %386 : vector<2x64xf32>
    %c6_146 = arith.constant 6 : index
    %c0_147 = arith.constant 0 : index
    %388 = vector.load %arg12[%c6_146, %c0_147] : memref<16x256xf32, #tpu.memory_space<vmem>>, vector<2x256xf32>
    %c8_148 = arith.constant 8 : index
    %c0_149 = arith.constant 0 : index
    %389 = vector.load %arg13[%c8_148, %c0_149] : memref<16x256xf32, #tpu.memory_space<vmem>>, vector<2x256xf32>
    %390 = arith.addf %388, %389 : vector<2x256xf32>
    %cst_150 = arith.constant dense<0.000000e+00> : vector<2x256xf32>
    %391 = tpu.matmul %387, %295, %cst_150 {dimension_numbers = #tpu.dot_dimension_numbers<[1], [0], [0], [1], [0, 0, 1, 1], [], []>} : vector<2x64xf32>, vector<64x256xf32>, vector<2x256xf32> -> vector<2x256xf32>
    %392 = arith.addf %390, %391 : vector<2x256xf32>
    %393 = vector.extract_strided_slice %392 {offsets = [0, 0], sizes = [2, 64], strides = [1, 1]} : vector<2x256xf32> to vector<2x64xf32>
    %394 = arith.negf %393 : vector<2x64xf32>
    %395 = math.exp %394 : vector<2x64xf32>
    %cst_151 = arith.constant 1.000000e+00 : f32
    %396 = vector.broadcast %cst_151 : f32 to vector<2x64xf32>
    %397 = arith.addf %396, %395 : vector<2x64xf32>
    %398 = arith.divf %396, %397 : vector<2x64xf32>
    %399 = vector.extract_strided_slice %392 {offsets = [0, 64], sizes = [2, 64], strides = [1, 1]} : vector<2x256xf32> to vector<2x64xf32>
    %400 = arith.negf %399 : vector<2x64xf32>
    %401 = math.exp %400 : vector<2x64xf32>
    %cst_152 = arith.constant 1.000000e+00 : f32
    %402 = vector.broadcast %cst_152 : f32 to vector<2x64xf32>
    %403 = arith.addf %402, %401 : vector<2x64xf32>
    %404 = arith.divf %402, %403 : vector<2x64xf32>
    %405 = vector.extract_strided_slice %392 {offsets = [0, 128], sizes = [2, 64], strides = [1, 1]} : vector<2x256xf32> to vector<2x64xf32>
    %406 = math.tanh %405 : vector<2x64xf32>
    %407 = vector.extract_strided_slice %392 {offsets = [0, 192], sizes = [2, 64], strides = [1, 1]} : vector<2x256xf32> to vector<2x64xf32>
    %408 = arith.negf %407 : vector<2x64xf32>
    %409 = math.exp %408 : vector<2x64xf32>
    %cst_153 = arith.constant 1.000000e+00 : f32
    %410 = vector.broadcast %cst_153 : f32 to vector<2x64xf32>
    %411 = arith.addf %410, %409 : vector<2x64xf32>
    %412 = arith.divf %410, %411 : vector<2x64xf32>
    %413 = arith.mulf %404, %385 : vector<2x64xf32>
    %414 = arith.mulf %398, %406 : vector<2x64xf32>
    %415 = arith.addf %413, %414 : vector<2x64xf32>
    %416 = math.tanh %415 : vector<2x64xf32>
    %417 = arith.mulf %412, %416 : vector<2x64xf32>
    %c8_154 = arith.constant 8 : index
    %c0_155 = arith.constant 0 : index
    %418 = vector.load %arg12[%c8_154, %c0_155] : memref<16x256xf32, #tpu.memory_space<vmem>>, vector<2x256xf32>
    %c6_156 = arith.constant 6 : index
    %c0_157 = arith.constant 0 : index
    %419 = vector.load %arg13[%c6_156, %c0_157] : memref<16x256xf32, #tpu.memory_space<vmem>>, vector<2x256xf32>
    %420 = arith.addf %418, %419 : vector<2x256xf32>
    %cst_158 = arith.constant dense<0.000000e+00> : vector<2x256xf32>
    %421 = tpu.matmul %417, %295, %cst_158 {dimension_numbers = #tpu.dot_dimension_numbers<[1], [0], [0], [1], [0, 0, 1, 1], [], []>} : vector<2x64xf32>, vector<64x256xf32>, vector<2x256xf32> -> vector<2x256xf32>
    %422 = arith.addf %420, %421 : vector<2x256xf32>
    %423 = vector.extract_strided_slice %422 {offsets = [0, 0], sizes = [2, 64], strides = [1, 1]} : vector<2x256xf32> to vector<2x64xf32>
    %424 = arith.negf %423 : vector<2x64xf32>
    %425 = math.exp %424 : vector<2x64xf32>
    %cst_159 = arith.constant 1.000000e+00 : f32
    %426 = vector.broadcast %cst_159 : f32 to vector<2x64xf32>
    %427 = arith.addf %426, %425 : vector<2x64xf32>
    %428 = arith.divf %426, %427 : vector<2x64xf32>
    %429 = vector.extract_strided_slice %422 {offsets = [0, 64], sizes = [2, 64], strides = [1, 1]} : vector<2x256xf32> to vector<2x64xf32>
    %430 = arith.negf %429 : vector<2x64xf32>
    %431 = math.exp %430 : vector<2x64xf32>
    %cst_160 = arith.constant 1.000000e+00 : f32
    %432 = vector.broadcast %cst_160 : f32 to vector<2x64xf32>
    %433 = arith.addf %432, %431 : vector<2x64xf32>
    %434 = arith.divf %432, %433 : vector<2x64xf32>
    %435 = vector.extract_strided_slice %422 {offsets = [0, 128], sizes = [2, 64], strides = [1, 1]} : vector<2x256xf32> to vector<2x64xf32>
    %436 = math.tanh %435 : vector<2x64xf32>
    %437 = vector.extract_strided_slice %422 {offsets = [0, 192], sizes = [2, 64], strides = [1, 1]} : vector<2x256xf32> to vector<2x64xf32>
    %438 = arith.negf %437 : vector<2x64xf32>
    %439 = math.exp %438 : vector<2x64xf32>
    %cst_161 = arith.constant 1.000000e+00 : f32
    %440 = vector.broadcast %cst_161 : f32 to vector<2x64xf32>
    %441 = arith.addf %440, %439 : vector<2x64xf32>
    %442 = arith.divf %440, %441 : vector<2x64xf32>
    %443 = arith.mulf %434, %415 : vector<2x64xf32>
    %444 = arith.mulf %428, %436 : vector<2x64xf32>
    %445 = arith.addf %443, %444 : vector<2x64xf32>
    %446 = math.tanh %445 : vector<2x64xf32>
    %447 = arith.mulf %442, %446 : vector<2x64xf32>
    %c10_162 = arith.constant 10 : index
    %c0_163 = arith.constant 0 : index
    %448 = vector.load %arg12[%c10_162, %c0_163] : memref<16x256xf32, #tpu.memory_space<vmem>>, vector<2x256xf32>
    %c4_164 = arith.constant 4 : index
    %c0_165 = arith.constant 0 : index
    %449 = vector.load %arg13[%c4_164, %c0_165] : memref<16x256xf32, #tpu.memory_space<vmem>>, vector<2x256xf32>
    %450 = arith.addf %448, %449 : vector<2x256xf32>
    %cst_166 = arith.constant dense<0.000000e+00> : vector<2x256xf32>
    %451 = tpu.matmul %447, %295, %cst_166 {dimension_numbers = #tpu.dot_dimension_numbers<[1], [0], [0], [1], [0, 0, 1, 1], [], []>} : vector<2x64xf32>, vector<64x256xf32>, vector<2x256xf32> -> vector<2x256xf32>
    %452 = arith.addf %450, %451 : vector<2x256xf32>
    %453 = vector.extract_strided_slice %452 {offsets = [0, 0], sizes = [2, 64], strides = [1, 1]} : vector<2x256xf32> to vector<2x64xf32>
    %454 = arith.negf %453 : vector<2x64xf32>
    %455 = math.exp %454 : vector<2x64xf32>
    %cst_167 = arith.constant 1.000000e+00 : f32
    %456 = vector.broadcast %cst_167 : f32 to vector<2x64xf32>
    %457 = arith.addf %456, %455 : vector<2x64xf32>
    %458 = arith.divf %456, %457 : vector<2x64xf32>
    %459 = vector.extract_strided_slice %452 {offsets = [0, 64], sizes = [2, 64], strides = [1, 1]} : vector<2x256xf32> to vector<2x64xf32>
    %460 = arith.negf %459 : vector<2x64xf32>
    %461 = math.exp %460 : vector<2x64xf32>
    %cst_168 = arith.constant 1.000000e+00 : f32
    %462 = vector.broadcast %cst_168 : f32 to vector<2x64xf32>
    %463 = arith.addf %462, %461 : vector<2x64xf32>
    %464 = arith.divf %462, %463 : vector<2x64xf32>
    %465 = vector.extract_strided_slice %452 {offsets = [0, 128], sizes = [2, 64], strides = [1, 1]} : vector<2x256xf32> to vector<2x64xf32>
    %466 = math.tanh %465 : vector<2x64xf32>
    %467 = vector.extract_strided_slice %452 {offsets = [0, 192], sizes = [2, 64], strides = [1, 1]} : vector<2x256xf32> to vector<2x64xf32>
    %468 = arith.negf %467 : vector<2x64xf32>
    %469 = math.exp %468 : vector<2x64xf32>
    %cst_169 = arith.constant 1.000000e+00 : f32
    %470 = vector.broadcast %cst_169 : f32 to vector<2x64xf32>
    %471 = arith.addf %470, %469 : vector<2x64xf32>
    %472 = arith.divf %470, %471 : vector<2x64xf32>
    %473 = arith.mulf %464, %445 : vector<2x64xf32>
    %474 = arith.mulf %458, %466 : vector<2x64xf32>
    %475 = arith.addf %473, %474 : vector<2x64xf32>
    %476 = math.tanh %475 : vector<2x64xf32>
    %477 = arith.mulf %472, %476 : vector<2x64xf32>
    %c12_170 = arith.constant 12 : index
    %c0_171 = arith.constant 0 : index
    %478 = vector.load %arg12[%c12_170, %c0_171] : memref<16x256xf32, #tpu.memory_space<vmem>>, vector<2x256xf32>
    %c2_172 = arith.constant 2 : index
    %c0_173 = arith.constant 0 : index
    %479 = vector.load %arg13[%c2_172, %c0_173] : memref<16x256xf32, #tpu.memory_space<vmem>>, vector<2x256xf32>
    %480 = arith.addf %478, %479 : vector<2x256xf32>
    %cst_174 = arith.constant dense<0.000000e+00> : vector<2x256xf32>
    %481 = tpu.matmul %477, %295, %cst_174 {dimension_numbers = #tpu.dot_dimension_numbers<[1], [0], [0], [1], [0, 0, 1, 1], [], []>} : vector<2x64xf32>, vector<64x256xf32>, vector<2x256xf32> -> vector<2x256xf32>
    %482 = arith.addf %480, %481 : vector<2x256xf32>
    %483 = vector.extract_strided_slice %482 {offsets = [0, 0], sizes = [2, 64], strides = [1, 1]} : vector<2x256xf32> to vector<2x64xf32>
    %484 = arith.negf %483 : vector<2x64xf32>
    %485 = math.exp %484 : vector<2x64xf32>
    %cst_175 = arith.constant 1.000000e+00 : f32
    %486 = vector.broadcast %cst_175 : f32 to vector<2x64xf32>
    %487 = arith.addf %486, %485 : vector<2x64xf32>
    %488 = arith.divf %486, %487 : vector<2x64xf32>
    %489 = vector.extract_strided_slice %482 {offsets = [0, 64], sizes = [2, 64], strides = [1, 1]} : vector<2x256xf32> to vector<2x64xf32>
    %490 = arith.negf %489 : vector<2x64xf32>
    %491 = math.exp %490 : vector<2x64xf32>
    %cst_176 = arith.constant 1.000000e+00 : f32
    %492 = vector.broadcast %cst_176 : f32 to vector<2x64xf32>
    %493 = arith.addf %492, %491 : vector<2x64xf32>
    %494 = arith.divf %492, %493 : vector<2x64xf32>
    %495 = vector.extract_strided_slice %482 {offsets = [0, 128], sizes = [2, 64], strides = [1, 1]} : vector<2x256xf32> to vector<2x64xf32>
    %496 = math.tanh %495 : vector<2x64xf32>
    %497 = vector.extract_strided_slice %482 {offsets = [0, 192], sizes = [2, 64], strides = [1, 1]} : vector<2x256xf32> to vector<2x64xf32>
    %498 = arith.negf %497 : vector<2x64xf32>
    %499 = math.exp %498 : vector<2x64xf32>
    %cst_177 = arith.constant 1.000000e+00 : f32
    %500 = vector.broadcast %cst_177 : f32 to vector<2x64xf32>
    %501 = arith.addf %500, %499 : vector<2x64xf32>
    %502 = arith.divf %500, %501 : vector<2x64xf32>
    %503 = arith.mulf %494, %475 : vector<2x64xf32>
    %504 = arith.mulf %488, %496 : vector<2x64xf32>
    %505 = arith.addf %503, %504 : vector<2x64xf32>
    %506 = math.tanh %505 : vector<2x64xf32>
    %507 = arith.mulf %502, %506 : vector<2x64xf32>
    %c14_178 = arith.constant 14 : index
    %c0_179 = arith.constant 0 : index
    %508 = vector.load %arg12[%c14_178, %c0_179] : memref<16x256xf32, #tpu.memory_space<vmem>>, vector<2x256xf32>
    %c0_180 = arith.constant 0 : index
    %c0_181 = arith.constant 0 : index
    %509 = vector.load %arg13[%c0_180, %c0_181] : memref<16x256xf32, #tpu.memory_space<vmem>>, vector<2x256xf32>
    %510 = arith.addf %508, %509 : vector<2x256xf32>
    %cst_182 = arith.constant dense<0.000000e+00> : vector<2x256xf32>
    %511 = tpu.matmul %507, %295, %cst_182 {dimension_numbers = #tpu.dot_dimension_numbers<[1], [0], [0], [1], [0, 0, 1, 1], [], []>} : vector<2x64xf32>, vector<64x256xf32>, vector<2x256xf32> -> vector<2x256xf32>
    %512 = arith.addf %510, %511 : vector<2x256xf32>
    %513 = vector.extract_strided_slice %512 {offsets = [0, 0], sizes = [2, 64], strides = [1, 1]} : vector<2x256xf32> to vector<2x64xf32>
    %514 = arith.negf %513 : vector<2x64xf32>
    %515 = math.exp %514 : vector<2x64xf32>
    %cst_183 = arith.constant 1.000000e+00 : f32
    %516 = vector.broadcast %cst_183 : f32 to vector<2x64xf32>
    %517 = arith.addf %516, %515 : vector<2x64xf32>
    %518 = arith.divf %516, %517 : vector<2x64xf32>
    %519 = vector.extract_strided_slice %512 {offsets = [0, 64], sizes = [2, 64], strides = [1, 1]} : vector<2x256xf32> to vector<2x64xf32>
    %520 = arith.negf %519 : vector<2x64xf32>
    %521 = math.exp %520 : vector<2x64xf32>
    %cst_184 = arith.constant 1.000000e+00 : f32
    %522 = vector.broadcast %cst_184 : f32 to vector<2x64xf32>
    %523 = arith.addf %522, %521 : vector<2x64xf32>
    %524 = arith.divf %522, %523 : vector<2x64xf32>
    %525 = vector.extract_strided_slice %512 {offsets = [0, 128], sizes = [2, 64], strides = [1, 1]} : vector<2x256xf32> to vector<2x64xf32>
    %526 = math.tanh %525 : vector<2x64xf32>
    %527 = vector.extract_strided_slice %512 {offsets = [0, 192], sizes = [2, 64], strides = [1, 1]} : vector<2x256xf32> to vector<2x64xf32>
    %528 = arith.negf %527 : vector<2x64xf32>
    %529 = math.exp %528 : vector<2x64xf32>
    %cst_185 = arith.constant 1.000000e+00 : f32
    %530 = vector.broadcast %cst_185 : f32 to vector<2x64xf32>
    %531 = arith.addf %530, %529 : vector<2x64xf32>
    %532 = arith.divf %530, %531 : vector<2x64xf32>
    %533 = arith.mulf %524, %505 : vector<2x64xf32>
    %534 = arith.mulf %518, %526 : vector<2x64xf32>
    %535 = arith.addf %533, %534 : vector<2x64xf32>
    %536 = math.tanh %535 : vector<2x64xf32>
    %537 = arith.mulf %532, %536 : vector<2x64xf32>
    %538 = tpu.iota {dimensions = array<i32: 1>} : vector<2x64xi32>
    %c32_i32 = arith.constant 32 : i32
    %539 = vector.broadcast %c32_i32 : i32 to vector<2x64xi32>
    %540 = arith.cmpi slt, %538, %539 : vector<2x64xi32>
    %541 = arith.select %540, %537, %327 : vector<2x64xi1>, vector<2x64xf32>
    %c0_186 = arith.constant 0 : index
    %c0_187 = arith.constant 0 : index
    %542 = vector.load %arg9[%c0_186, %c0_187] : memref<1x64xf32, #tpu.memory_space<vmem>>, vector<1x64xf32>
    %543 = vector.broadcast %542 : vector<1x64xf32> to vector<2x64xf32>
    %544 = arith.mulf %541, %543 : vector<2x64xf32>
    %cst_188 = arith.constant dense<0.000000e+00> : vector<2xf32>
    %545 = vector.multi_reduction <add>, %544, %cst_188 [1] : vector<2x64xf32> to vector<2xf32>
    %546 = vector.shape_cast %545 : vector<2xf32> to vector<2x1xf32>
    %c0_189 = arith.constant 0 : index
    %c0_190 = arith.constant 0 : index
    %547 = vector.load %arg10[%c0_189, %c0_190] : memref<1x1xf32, #tpu.memory_space<vmem>>, vector<1x1xf32>
    %548 = vector.broadcast %547 : vector<1x1xf32> to vector<2x1xf32>
    %549 = arith.addf %546, %548 : vector<2x1xf32>
    %550 = arith.negf %549 : vector<2x1xf32>
    %551 = math.exp %550 : vector<2x1xf32>
    %cst_191 = arith.constant 1.000000e+00 : f32
    %552 = vector.broadcast %cst_191 : f32 to vector<2x1xf32>
    %553 = arith.addf %552, %551 : vector<2x1xf32>
    %554 = arith.divf %552, %553 : vector<2x1xf32>
    %c0_192 = arith.constant 0 : index
    %c0_193 = arith.constant 0 : index
    %555 = vector.load %arg11[%c0_192, %c0_193] : memref<2x1xf32, #tpu.memory_space<vmem>>, vector<2x1xf32>
    tpu.vector_store %arg11[%c0_192, %c0_193], %554 {strides = array<i32>} : memref<2x1xf32, #tpu.memory_space<vmem>>, vector<2x1xf32>,
    return
  }
}

</mosaic_0001>

<llo_original>
// kernel: tpu_custom_call.1
$region0: #{tpu_custom_call.1}
  #allocation0 [shape = 'u32[]', space=smem, size = 0x4, offset = 0x4, fixed_abs, tag = 'smem constant byte address 0x4 - core index']
  #allocation1 [shape = 'u32[144,128]{1,0:T(1,128)}', space=vmem, size = 0x12000, scoped, tag = 'internal scratch']
  #allocation2 [shape = 'f32[16,256]{1,0:T(8,128)}', space=vmem, size = 0x4000, scoped, tag = 'scratch operand']
  #allocation3 [shape = 'f32[16,256]{1,0:T(8,128)}', space=vmem, size = 0x4000, scoped, tag = 'scratch operand']
  #allocation4 [shape = 'f32[16,64]{1,0:T(8,128)}', space=vmem, size = 0x2000, scoped, tag = 'scratch operand']
  #allocation5 [shape = 'f32[1,1]{1,0:T(1,128)S(1)}', space=vmem, size = 0x200, scoped, tag = 'scoped memory for tpu_custom_call.1']
  %s0 = inlined_call_operand.hbm [shape: f32[16,32], index: 0, kind: input, shape index: {}]
  %s1 = inlined_call_operand.hbm [shape: f32[32,256], index: 1, kind: input, shape index: {}]
  %s2 = inlined_call_operand.hbm [shape: f32[32,256], index: 2, kind: input, shape index: {}]
  %s3 = inlined_call_operand.vmem [shape: f32[1,256], index: 3, kind: input, shape index: {}]
  %s4 = inlined_call_operand.hbm [shape: f32[64,256], index: 4, kind: input, shape index: {}]
  %s5 = inlined_call_operand.hbm [shape: f32[64,256], index: 5, kind: input, shape index: {}]
  %s6 = inlined_call_operand.hbm [shape: f32[64,256], index: 6, kind: input, shape index: {}]
  %s7 = inlined_call_operand.vmem [shape: f32[1,256], index: 7, kind: input, shape index: {}]
  %s8 = inlined_call_operand.hbm [shape: f32[64,256], index: 8, kind: input, shape index: {}]
  %s9 = inlined_call_operand.vmem [shape: f32[1,64], index: 9, kind: input, shape index: {}]
  %s10 = inlined_call_operand.<no memory space> [shape: f32[1,1], index: 10, kind: input, shape index: {}]
  %s11 = inlined_call_operand.vmem [shape: f32[2,1], index: 11, kind: output, shape index: {}]
  %s12 = sld [smem:[#allocation0]]
  $region82: #{tpu_custom_call.1} parent=0
    _
  %s14 = ssub.s32 1, %s12
  %s15 = scalar_select 0, %s14, %s12
  %v16 = vstv %s10
  %17 = vst [vmem:[#allocation5] sm:$0x1] %v16
  $region1: #{tpu_custom_call.1} parent=0
    #allocation6 [shape = 'u8[8192]{0}', space=vmem, size = 0x2000, scoped, tag = 'input window, operand 0, single buffered']
    #allocation7 [shape = 's32[1]{0}', space=sflag, size = 0x4, scoped, tag = 'scoped memory for tpu_custom_call.1']
    #allocation8 [shape = 'u8[32768]{0}', space=vmem, size = 0x8000, scoped, tag = 'input window, operand 1, single buffered']
    #allocation9 [shape = 's32[1]{0}', space=sflag, size = 0x4, scoped, tag = 'scoped memory for tpu_custom_call.1']
    #allocation10 [shape = 'u8[32768]{0}', space=vmem, size = 0x8000, scoped, tag = 'input window, operand 2, single buffered']
    #allocation11 [shape = 'u8[65536]{0}', space=vmem, size = 0x10000, scoped, tag = 'input window, operand 4, single buffered']
    #allocation12 [shape = 's32[1]{0}', space=sflag, size = 0x4, scoped, tag = 'scoped memory for tpu_custom_call.1']
    #allocation13 [shape = 'u8[65536]{0}', space=vmem, size = 0x10000, scoped, tag = 'input window, operand 5, single buffered']
    #allocation14 [shape = 'u8[65536]{0}', space=vmem, size = 0x10000, scoped, tag = 'input window, operand 6, single buffered']
    #allocation15 [shape = 's32[1]{0}', space=sflag, size = 0x4, scoped, tag = 'scoped memory for tpu_custom_call.1']
    #allocation16 [shape = 'u8[65536]{0}', space=vmem, size = 0x10000, scoped, tag = 'input window, operand 8, single buffered']
    %18 = vsyncpa [#allocation7], 0
    %19 = vsyncpa [#allocation9], 0
    %20 = vsyncpa [#allocation12], 0
    %21 = vsyncpa [#allocation15], 0
    // Predicated region
    $region2: #{tpu_custom_call.1} parent=1 // pred_check
      _
    $region3: #{tpu_custom_call.1} parent=1 // pred_check_branch
      %23 = sbr.rel (0) target = $region5
    $region4: #{tpu_custom_call.1} parent=1 // pred_region
      %s25 = ssub.s32 256, 256
      %26 = vsyncadd [#allocation7], %s25
      %s27 = sshll.u32 [#allocation6], 4
      %s28 = int_to_ptr.vmem [resolvable:$true] %s27
      %33 = dma.hbm_to_vmem [thread:$0]  %s0, 256, %s28, [#allocation7], 128, 128, 8
    $region5: #{tpu_custom_call.1} parent=1 // pred_fallthru
      _
    // Predicated region
    $region6: #{tpu_custom_call.1} parent=1 // pred_check
      _
    $region7: #{tpu_custom_call.1} parent=1 // pred_check_branch
      %35 = sbr.rel (0) target = $region9
    $region8: #{tpu_custom_call.1} parent=1 // pred_region
      %s37 = ssub.s32 1024, 1024
      %38 = vsyncadd [#allocation9], %s37
      %s39 = sshll.u32 [#allocation8], 4
      %s40 = int_to_ptr.vmem [resolvable:$true] %s39
      %45 = dma.hbm_to_vmem [thread:$0]  %s1, 1024, %s40, [#allocation9], 256, 256, 16
    $region9: #{tpu_custom_call.1} parent=1 // pred_fallthru
      _
    // Predicated region
    $region10: #{tpu_custom_call.1} parent=1 // pred_check
      _
    $region11: #{tpu_custom_call.1} parent=1 // pred_check_branch
      %47 = sbr.rel (0) target = $region13
    $region12: #{tpu_custom_call.1} parent=1 // pred_region
      %s49 = ssub.s32 1024, 1024
      %50 = vsyncadd [#allocation9], %s49
      %s51 = sshll.u32 [#allocation10], 4
      %s52 = int_to_ptr.vmem [resolvable:$true] %s51
      %57 = dma.hbm_to_vmem [thread:$0]  %s2, 1024, %s52, [#allocation9], 256, 256, 16
    $region13: #{tpu_custom_call.1} parent=1 // pred_fallthru
      _
    // Predicated region
    $region14: #{tpu_custom_call.1} parent=1 // pred_check
      _
    $region15: #{tpu_custom_call.1} parent=1 // pred_check_branch
      %59 = sbr.rel (0) target = $region17
    $region16: #{tpu_custom_call.1} parent=1 // pred_region
      _
    $region17: #{tpu_custom_call.1} parent=1 // pred_fallthru
      _
    // Predicated region
    $region18: #{tpu_custom_call.1} parent=1 // pred_check
      _
    $region19: #{tpu_custom_call.1} parent=1 // pred_check_branch
      %61 = sbr.rel (0) target = $region21
    $region20: #{tpu_custom_call.1} parent=1 // pred_region
      %s63 = ssub.s32 2048, 2048
      %64 = vsyncadd [#allocation12], %s63
      %s65 = sshll.u32 [#allocation11], 4
      %s66 = int_to_ptr.vmem [resolvable:$true] %s65
      %71 = dma.hbm_to_vmem [thread:$0]  %s4, 2048, %s66, [#allocation12], 256, 256, 16
    $region21: #{tpu_custom_call.1} parent=1 // pred_fallthru
      _
    // Predicated region
    $region22: #{tpu_custom_call.1} parent=1 // pred_check
      _
    $region23: #{tpu_custom_call.1} parent=1 // pred_check_branch
      %73 = sbr.rel (0) target = $region25
    $region24: #{tpu_custom_call.1} parent=1 // pred_region
      %s75 = ssub.s32 2048, 2048
      %76 = vsyncadd [#allocation12], %s75
      %s77 = sshll.u32 [#allocation13], 4
      %s78 = int_to_ptr.vmem [resolvable:$true] %s77
      %83 = dma.hbm_to_vmem [thread:$0]  %s5, 2048, %s78, [#allocation12], 256, 256, 16
    $region25: #{tpu_custom_call.1} parent=1 // pred_fallthru
      _
    // Predicated region
    $region26: #{tpu_custom_call.1} parent=1 // pred_check
      _
    $region27: #{tpu_custom_call.1} parent=1 // pred_check_branch
      %85 = sbr.rel (0) target = $region29
    $region28: #{tpu_custom_call.1} parent=1 // pred_region
      %s87 = ssub.s32 2048, 2048
      %88 = vsyncadd [#allocation15], %s87
      %s89 = sshll.u32 [#allocation14], 4
      %s90 = int_to_ptr.vmem [resolvable:$true] %s89
      %95 = dma.hbm_to_vmem [thread:$0]  %s6, 2048, %s90, [#allocation15], 256, 256, 16
    $region29: #{tpu_custom_call.1} parent=1 // pred_fallthru
      _
    // Predicated region
    $region30: #{tpu_custom_call.1} parent=1 // pred_check
      _
    $region31: #{tpu_custom_call.1} parent=1 // pred_check_branch
      %97 = sbr.rel (0) target = $region33
    $region32: #{tpu_custom_call.1} parent=1 // pred_region
      _
    $region33: #{tpu_custom_call.1} parent=1 // pred_fallthru
      _
    // Predicated region
    $region34: #{tpu_custom_call.1} parent=1 // pred_check
      _
    $region35: #{tpu_custom_call.1} parent=1 // pred_check_branch
      %99 = sbr.rel (0) target = $region37
    $region36: #{tpu_custom_call.1} parent=1 // pred_region
      %s101 = ssub.s32 2048, 2048
      %102 = vsyncadd [#allocation15], %s101
      %s103 = sshll.u32 [#allocation16], 4
      %s104 = int_to_ptr.vmem [resolvable:$true] %s103
      %109 = dma.hbm_to_vmem [thread:$0]  %s8, 2048, %s104, [#allocation15], 256, 256, 16
    $region37: #{tpu_custom_call.1} parent=1 // pred_fallthru
      _
    // Predicated region
    $region38: #{tpu_custom_call.1} parent=1 // pred_check
      _
    $region39: #{tpu_custom_call.1} parent=1 // pred_check_branch
      %111 = sbr.rel (0) target = $region41
    $region40: #{tpu_custom_call.1} parent=1 // pred_region
      _
    $region41: #{tpu_custom_call.1} parent=1 // pred_fallthru
      _
    // Predicated region
    $region42: #{tpu_custom_call.1} parent=1 // pred_check
      _
    $region43: #{tpu_custom_call.1} parent=1 // pred_check_branch
      %113 = sbr.rel (0) target = $region45
    $region44: #{tpu_custom_call.1} parent=1 // pred_region
      _
    $region45: #{tpu_custom_call.1} parent=1 // pred_fallthru
      _
    // Predicated region
    $region46: #{tpu_custom_call.1} parent=1 // pred_check
      _
    $region47: #{tpu_custom_call.1} parent=1 // pred_check_branch
      %115 = sbr.rel (0) target = $region49
    $region48: #{tpu_custom_call.1} parent=1 // pred_region
      %116 = dma.done [#allocation7], 256
    $region49: #{tpu_custom_call.1} parent=1 // pred_fallthru
      _
    // Predicated region
    $region50: #{tpu_custom_call.1} parent=1 // pred_check
      _
    $region51: #{tpu_custom_call.1} parent=1 // pred_check_branch
      %118 = sbr.rel (0) target = $region53
    $region52: #{tpu_custom_call.1} parent=1 // pred_region
      %119 = dma.done [#allocation9], 1024
    $region53: #{tpu_custom_call.1} parent=1 // pred_fallthru
      _
    // Predicated region
    $region54: #{tpu_custom_call.1} parent=1 // pred_check
      _
    $region55: #{tpu_custom_call.1} parent=1 // pred_check_branch
      %121 = sbr.rel (0) target = $region57
    $region56: #{tpu_custom_call.1} parent=1 // pred_region
      %122 = dma.done [#allocation9], 1024
    $region57: #{tpu_custom_call.1} parent=1 // pred_fallthru
      _
    // Predicated region
    $region58: #{tpu_custom_call.1} parent=1 // pred_check
      _
    $region59: #{tpu_custom_call.1} parent=1 // pred_check_branch
      %124 = sbr.rel (0) target = $region61
    $region60: #{tpu_custom_call.1} parent=1 // pred_region
      %125 = dma.done [#allocation12], 2048
    $region61: #{tpu_custom_call.1} parent=1 // pred_fallthru
      _
    // Predicated region
    $region62: #{tpu_custom_call.1} parent=1 // pred_check
      _
    $region63: #{tpu_custom_call.1} parent=1 // pred_check_branch
      %127 = sbr.rel (0) target = $region65
    $region64: #{tpu_custom_call.1} parent=1 // pred_region
      %128 = dma.done [#allocation12], 2048
    $region65: #{tpu_custom_call.1} parent=1 // pred_fallthru
      _
    // Predicated region
    $region66: #{tpu_custom_call.1} parent=1 // pred_check
      _
    $region67: #{tpu_custom_call.1} parent=1 // pred_check_branch
      %130 = sbr.rel (0) target = $region69
    $region68: #{tpu_custom_call.1} parent=1 // pred_region
      %131 = dma.done [#allocation15], 2048
    $region69: #{tpu_custom_call.1} parent=1 // pred_fallthru
      _
    // Predicated region
    $region70: #{tpu_custom_call.1} parent=1 // pred_check
      _
    $region71: #{tpu_custom_call.1} parent=1 // pred_check_branch
      %133 = sbr.rel (0) target = $region73
    $region72: #{tpu_custom_call.1} parent=1 // pred_region
      %134 = dma.done [#allocation15], 2048
    $region73: #{tpu_custom_call.1} parent=1 // pred_fallthru
      _
    %v135 = vld [vmem:[#allocation6] sm:$0xff]
    %v136 = vld [vmem:[#allocation6 + $0x8] sm:$0xff]
    %v137 = vld [vmem:[#allocation8] sm:$0xff]
    %v138 = vld [vmem:[#allocation8 + $0x8] sm:$0xff]
    %v139 = vld [vmem:[#allocation8 + $0x10] sm:$0xff]
    %v140 = vld [vmem:[#allocation8 + $0x18] sm:$0xff]
    %v141 = vld [vmem:[#allocation8 + $0x20] sm:$0xff]
    %v142 = vld [vmem:[#allocation8 + $0x28] sm:$0xff]
    %v143 = vld [vmem:[#allocation8 + $0x30] sm:$0xff]
    %v144 = vld [vmem:[#allocation8 + $0x38] sm:$0xff]
    %v145 = vld [vmem:[%s3] sm:$0x3]
    %v147 = vlaneseq
    %v148 = vshrl.u32 %v147, 7
    %v149 = vsub.s32 0, %v148
    %v150 = vrot.slane %v145, %v149
    %v151 = vlaneseq
    %v152 = vshrl.u32 %v151, 7
    %v153 = vsub.s32 1, %v152
    %v154 = vrot.slane %v145, %v153
    %vm157 = vcmask 261120
    %v159 = vsel %vm157, %v135, 0
    %v162 = vsel %vm157, %v136, 0
    %164 = vmatprep.subr.mxu0 0.0
    %165 = vmatpush1.msra.mxu0 0.0
    %166 = vmatprep.subr.mxu0 0.0
    %167 = vmatpush1.msra.mxu0 0.0
    %168 = vmatprep.subr.mxu0 0.0
    %169 = vmatpush1.msra.mxu0 0.0
    %170 = vmatprep.subr.mxu0 0.0
    %171 = vmatpush1.msra.mxu0 0.0
    %172 = vmatprep.subr.mxu0 0.0
    %173 = vmatpush1.msra.mxu0 0.0
    %174 = vmatprep.subr.mxu0 0.0
    %175 = vmatpush1.msra.mxu0 0.0
    %176 = vmatprep.subr.mxu0 0.0
    %177 = vmatpush1.msra.mxu0 0.0
    %178 = vmatprep.subr.mxu0 0.0
    %179 = vmatpush1.msra.mxu0 0.0
    %180 = vmatprep.subr.mxu0 0.0
    %181 = vmatpush1.msra.mxu0 0.0
    %182 = vmatprep.subr.mxu0 0.0
    %183 = vmatpush1.msra.mxu0 0.0
    %184 = vmatprep.subr.mxu0 0.0
    %185 = vmatpush1.msra.mxu0 0.0
    %186 = vmatprep.subr.mxu0 0.0
    %187 = vmatpush1.msra.mxu0 0.0
    %188 = vmatprep.subr.mxu0 %v144
    %189 = vmatpush1.msra.mxu0 %v143
    %190 = vmatprep.subr.mxu0 %v142
    %191 = vmatpush1.msra.mxu0 %v141
    %192 = vmatprep.subr.mxu0 %v140
    %193 = vmatpush1.msra.mxu0 %v139
    %194 = vmatprep.subr.mxu0 %v138
    %195 = vmatpush1.msra.mxu0 %v137
    %196 = vmatprep.subr.mxu0 0.0
    %197 = vmatpush2.msra.mxu0 0.0
    %198 = vmatprep.subr.mxu0 0.0
    %199 = vmatpush2.msra.mxu0 0.0
    %200 = vmatprep.subr.mxu0 0.0
    %201 = vmatpush2.msra.mxu0 0.0
    %202 = vmatprep.subr.mxu0 0.0
    %203 = vmatpush2.msra.mxu0 0.0
    %204 = vmatprep.subr.mxu0 0.0
    %205 = vmatpush2.msra.mxu0 0.0
    %206 = vmatprep.subr.mxu0 0.0
    %207 = vmatpush2.msra.mxu0 0.0
    %208 = vmatprep.subr.mxu0 0.0
    %209 = vmatpush2.msra.mxu0 0.0
    %210 = vmatprep.subr.mxu0 0.0
    %211 = vmatpush2.msra.mxu0 0.0
    %212 = vmatprep.subr.mxu0 0.0
    %213 = vmatpush2.msra.mxu0 0.0
    %214 = vmatprep.subr.mxu0 0.0
    %215 = vmatpush2.msra.mxu0 0.0
    %216 = vmatprep.subr.mxu0 0.0
    %217 = vmatpush2.msra.mxu0 0.0
    %218 = vmatprep.subr.mxu0 0.0
    %219 = vmatpush2.msra.mxu0 0.0
    %220 = vmatprep.subr.mxu0 0.0
    %221 = vmatpush2.msra.mxu0 0.0
    %222 = vmatprep.subr.mxu0 0.0
    %223 = vmatpush2.msra.mxu0 0.0
    %224 = vmatprep.subr.mxu0 0.0
    %225 = vmatpush2.msra.mxu0 0.0
    %226 = vmatprep.subr.mxu0 0.0
    %227 = vmatpush2.msra.mxu0 0.0
    %228 = vmatprep.mubr.f32.mxu0 0.0
    %229 = vmatmul.mubr.f32.gmra.mxu0 %v159
    %v230 = vpop.f32.mrf.mxu0
    %v231 = vadd.f32 %v150, %v230
    %v232 = vpop.f32.mrf.mxu0
    %v233 = vadd.f32 %v154, %v232
    %234 = vmatprep.mubr.f32.mxu0 0.0
    %235 = vmatmul.mubr.f32.gmra.mxu0 %v162
    %v236 = vpop.f32.mrf.mxu0
    %v237 = vadd.f32 %v150, %v236
    %v238 = vpop.f32.mrf.mxu0
    %v239 = vadd.f32 %v154, %v238
    %240 = vdwg.mxu0
    %241 = vst [vmem:[#allocation2] sm:$0xff] %v231
    %242 = vst [vmem:[#allocation2 + $0x8] sm:$0xff] %v233
    %243 = vst [vmem:[#allocation2 + $0x10] sm:$0xff] %v237
    %244 = vst [vmem:[#allocation2 + $0x18] sm:$0xff] %v239
    %v245 = vld [vmem:[#allocation10] sm:$0xff]
    %v246 = vld [vmem:[#allocation10 + $0x8] sm:$0xff]
    %v247 = vld [vmem:[#allocation10 + $0x10] sm:$0xff]
    %v248 = vld [vmem:[#allocation10 + $0x18] sm:$0xff]
    %v249 = vld [vmem:[#allocation10 + $0x20] sm:$0xff]
    %v250 = vld [vmem:[#allocation10 + $0x28] sm:$0xff]
    %v251 = vld [vmem:[#allocation10 + $0x30] sm:$0xff]
    %v252 = vld [vmem:[#allocation10 + $0x38] sm:$0xff]
    %253 = vmatprep.subr.mxu0 0.0
    %254 = vmatpush1.msra.mxu0 0.0
    %255 = vmatprep.subr.mxu0 0.0
    %256 = vmatpush1.msra.mxu0 0.0
    %257 = vmatprep.subr.mxu0 0.0
    %258 = vmatpush1.msra.mxu0 0.0
    %259 = vmatprep.subr.mxu0 0.0
    %260 = vmatpush1.msra.mxu0 0.0
    %261 = vmatprep.subr.mxu0 0.0
    %262 = vmatpush1.msra.mxu0 0.0
    %263 = vmatprep.subr.mxu0 0.0
    %264 = vmatpush1.msra.mxu0 0.0
    %265 = vmatprep.subr.mxu0 0.0
    %266 = vmatpush1.msra.mxu0 0.0
    %267 = vmatprep.subr.mxu0 0.0
    %268 = vmatpush1.msra.mxu0 0.0
    %269 = vmatprep.subr.mxu0 0.0
    %270 = vmatpush1.msra.mxu0 0.0
    %271 = vmatprep.subr.mxu0 0.0
    %272 = vmatpush1.msra.mxu0 0.0
    %273 = vmatprep.subr.mxu0 0.0
    %274 = vmatpush1.msra.mxu0 0.0
    %275 = vmatprep.subr.mxu0 0.0
    %276 = vmatpush1.msra.mxu0 0.0
    %277 = vmatprep.subr.mxu0 %v252
    %278 = vmatpush1.msra.mxu0 %v251
    %279 = vmatprep.subr.mxu0 %v250
    %280 = vmatpush1.msra.mxu0 %v249
    %281 = vmatprep.subr.mxu0 %v248
    %282 = vmatpush1.msra.mxu0 %v247
    %283 = vmatprep.subr.mxu0 %v246
    %284 = vmatpush1.msra.mxu0 %v245
    %285 = vmatprep.subr.mxu0 0.0
    %286 = vmatpush2.msra.mxu0 0.0
    %287 = vmatprep.subr.mxu0 0.0
    %288 = vmatpush2.msra.mxu0 0.0
    %289 = vmatprep.subr.mxu0 0.0
    %290 = vmatpush2.msra.mxu0 0.0
    %291 = vmatprep.subr.mxu0 0.0
    %292 = vmatpush2.msra.mxu0 0.0
    %293 = vmatprep.subr.mxu0 0.0
    %294 = vmatpush2.msra.mxu0 0.0
    %295 = vmatprep.subr.mxu0 0.0
    %296 = vmatpush2.msra.mxu0 0.0
    %297 = vmatprep.subr.mxu0 0.0
    %298 = vmatpush2.msra.mxu0 0.0
    %299 = vmatprep.subr.mxu0 0.0
    %300 = vmatpush2.msra.mxu0 0.0
    %301 = vmatprep.subr.mxu0 0.0
    %302 = vmatpush2.msra.mxu0 0.0
    %303 = vmatprep.subr.mxu0 0.0
    %304 = vmatpush2.msra.mxu0 0.0
    %305 = vmatprep.subr.mxu0 0.0
    %306 = vmatpush2.msra.mxu0 0.0
    %307 = vmatprep.subr.mxu0 0.0
    %308 = vmatpush2.msra.mxu0 0.0
    %309 = vmatprep.subr.mxu0 0.0
    %310 = vmatpush2.msra.mxu0 0.0
    %311 = vmatprep.subr.mxu0 0.0
    %312 = vmatpush2.msra.mxu0 0.0
    %313 = vmatprep.subr.mxu0 0.0
    %314 = vmatpush2.msra.mxu0 0.0
    %315 = vmatprep.subr.mxu0 0.0
    %316 = vmatpush2.msra.mxu0 0.0
    %317 = vmatprep.mubr.f32.mxu0 0.0
    %318 = vmatmul.mubr.f32.gmra.mxu0 %v159
    %v319 = vpop.f32.mrf.mxu0
    %v320 = vadd.f32 0.0, %v319
    %v321 = vpop.f32.mrf.mxu0
    %v322 = vadd.f32 0.0, %v321
    %323 = vmatprep.mubr.f32.mxu0 0.0
    %324 = vmatmul.mubr.f32.gmra.mxu0 %v162
    %v325 = vpop.f32.mrf.mxu0
    %v326 = vadd.f32 0.0, %v325
    %v327 = vpop.f32.mrf.mxu0
    %v328 = vadd.f32 0.0, %v327
    %329 = vdwg.mxu0
    %330 = vst [vmem:[#allocation3] sm:$0xff] %v320
    %331 = vst [vmem:[#allocation3 + $0x8] sm:$0xff] %v322
    %332 = vst [vmem:[#allocation3 + $0x10] sm:$0xff] %v326
    %333 = vst [vmem:[#allocation3 + $0x18] sm:$0xff] %v328
    %v334 = vld [vmem:[#allocation11] sm:$0xff]
    %v335 = vld [vmem:[#allocation11 + $0x8] sm:$0xff]
    %v336 = vld [vmem:[#allocation11 + $0x10] sm:$0xff]
    %v337 = vld [vmem:[#allocation11 + $0x18] sm:$0xff]
    %v338 = vld [vmem:[#allocation11 + $0x20] sm:$0xff]
    %v339 = vld [vmem:[#allocation11 + $0x28] sm:$0xff]
    %v340 = vld [vmem:[#allocation11 + $0x30] sm:$0xff]
    %v341 = vld [vmem:[#allocation11 + $0x38] sm:$0xff]
    %v342 = vld [vmem:[#allocation11 + $0x40] sm:$0xff]
    %v343 = vld [vmem:[#allocation11 + $0x48] sm:$0xff]
    %v344 = vld [vmem:[#allocation11 + $0x50] sm:$0xff]
    %v345 = vld [vmem:[#allocation11 + $0x58] sm:$0xff]
    %v346 = vld [vmem:[#allocation11 + $0x60] sm:$0xff]
    %v347 = vld [vmem:[#allocation11 + $0x68] sm:$0xff]
    %v348 = vld [vmem:[#allocation11 + $0x70] sm:$0xff]
    %v349 = vld [vmem:[#allocation11 + $0x78] sm:$0xff]
    %v350 = vld [vmem:[#allocation2] sm:$0x3]
    %v351 = vld [vmem:[#allocation2 + $0x8] sm:$0x3]
    %v352 = vld [vmem:[#allocation3 + $0x10] sm:$0xc0]
    %v353 = vld [vmem:[#allocation3 + $0x18] sm:$0xc0]
    %v356 = vrot.slane %v352, 6
    %v357 = vrot.slane %v353, 6
    %v360 = vadd.f32 %v350, %v356
    %v361 = vadd.f32 %v351, %v357
    %vm362 = vcmask 523264
    %v364 = vsel %vm362, 0.0, 0
    %366 = vmatprep.subr.mxu0 0.0
    %367 = vmatpush1.msra.mxu0 0.0
    %368 = vmatprep.subr.mxu0 0.0
    %369 = vmatpush1.msra.mxu0 0.0
    %370 = vmatprep.subr.mxu0 0.0
    %371 = vmatpush1.msra.mxu0 0.0
    %372 = vmatprep.subr.mxu0 0.0
    %373 = vmatpush1.msra.mxu0 0.0
    %374 = vmatprep.subr.mxu0 0.0
    %375 = vmatpush1.msra.mxu0 0.0
    %376 = vmatprep.subr.mxu0 0.0
    %377 = vmatpush1.msra.mxu0 0.0
    %378 = vmatprep.subr.mxu0 0.0
    %379 = vmatpush1.msra.mxu0 0.0
    %380 = vmatprep.subr.mxu0 0.0
    %381 = vmatpush1.msra.mxu0 0.0
    %382 = vmatprep.subr.mxu0 %v349
    %383 = vmatpush1.msra.mxu0 %v348
    %384 = vmatprep.subr.mxu0 %v347
    %385 = vmatpush1.msra.mxu0 %v346
    %386 = vmatprep.subr.mxu0 %v345
    %387 = vmatpush1.msra.mxu0 %v344
    %388 = vmatprep.subr.mxu0 %v343
    %389 = vmatpush1.msra.mxu0 %v342
    %390 = vmatprep.subr.mxu0 %v341
    %391 = vmatpush1.msra.mxu0 %v340
    %392 = vmatprep.subr.mxu0 %v339
    %393 = vmatpush1.msra.mxu0 %v338
    %394 = vmatprep.subr.mxu0 %v337
    %395 = vmatpush1.msra.mxu0 %v336
    %396 = vmatprep.subr.mxu0 %v335
    %397 = vmatpush1.msra.mxu0 %v334
    %398 = vmatprep.subr.mxu0 0.0
    %399 = vmatpush2.msra.mxu0 0.0
    %400 = vmatprep.subr.mxu0 0.0
    %401 = vmatpush2.msra.mxu0 0.0
    %402 = vmatprep.subr.mxu0 0.0
    %403 = vmatpush2.msra.mxu0 0.0
    %404 = vmatprep.subr.mxu0 0.0
    %405 = vmatpush2.msra.mxu0 0.0
    %406 = vmatprep.subr.mxu0 0.0
    %407 = vmatpush2.msra.mxu0 0.0
    %408 = vmatprep.subr.mxu0 0.0
    %409 = vmatpush2.msra.mxu0 0.0
    %410 = vmatprep.subr.mxu0 0.0
    %411 = vmatpush2.msra.mxu0 0.0
    %412 = vmatprep.subr.mxu0 0.0
    %413 = vmatpush2.msra.mxu0 0.0
    %414 = vmatprep.subr.mxu0 0.0
    %415 = vmatpush2.msra.mxu0 0.0
    %416 = vmatprep.subr.mxu0 0.0
    %417 = vmatpush2.msra.mxu0 0.0
    %418 = vmatprep.subr.mxu0 0.0
    %419 = vmatpush2.msra.mxu0 0.0
    %420 = vmatprep.subr.mxu0 0.0
    %421 = vmatpush2.msra.mxu0 0.0
    %422 = vmatprep.subr.mxu0 0.0
    %423 = vmatpush2.msra.mxu0 0.0
    %424 = vmatprep.subr.mxu0 0.0
    %425 = vmatpush2.msra.mxu0 0.0
    %426 = vmatprep.subr.mxu0 0.0
    %427 = vmatpush2.msra.mxu0 0.0
    %428 = vmatprep.subr.mxu0 0.0
    %429 = vmatpush2.msra.mxu0 0.0
    %430 = vmatprep.mubr.f32.mxu0 0.0
    %431 = vmatmul.mubr.f32.gmra.mxu0 %v364
    %v432 = vpop.f32.mrf.mxu0
    %v433 = vadd.f32 0.0, %v432
    %v434 = vpop.f32.mrf.mxu0
    %v435 = vadd.f32 0.0, %v434
    %436 = vdwg.mxu0
    %v437 = vadd.f32 %v360, %v433
    %v438 = vadd.f32 %v361, %v435
    %v439 = vxor.u32 %v437, 2147483648
    %v440 = vmul.f32 %v439, 1.442695
    %v441 = vpow.pop %v440
    %v442 = vadd.f32 %v441, 1.0
    %v443 = vrcp.pop %v442
    %v444 = vmul.f32 1.0, %v443
    %v445 = vtanh.pop %v438
    %v446 = vxor.u32 %v438, 2147483648
    %v447 = vmul.f32 %v446, 1.442695
    %v448 = vpow.pop %v447
    %v449 = vadd.f32 %v448, 1.0
    %v450 = vrcp.pop %v449
    %v451 = vmul.f32 1.0, %v450
    %v452 = vmul.f32 %v444, 0.0
    %v453 = vmul.f32 %v444, %v445
    %455 = vrot.lane.b32.xlu0 %v453, 64
    %v456 = vpop.permute.xlu0 %455
    %v458 = vadd.f32 %v452, %v456
    %v459 = vtanh.pop %v458
    %v460 = vmul.f32 %v451, %v459
    %462 = vrot.lane.b32.xlu0 %v460, 64
    %v463 = vpop.permute.xlu0 %462
    %vm465 = vcmask 254976
    %466 = vst.msk [vmem:[#allocation4] sm:$0x3] %vm465, %v463
    %vm467 = vcmask 517376
    %468 = vst.msk [vmem:[#allocation4 + $0xe] sm:$0x3] %vm467, %v463
    %v469 = vld [vmem:[#allocation2] sm:$0xc]
    %v470 = vld [vmem:[#allocation2 + $0x8] sm:$0xc]
    %v471 = vld [vmem:[#allocation3 + $0x10] sm:$0x30]
    %v472 = vld [vmem:[#allocation3 + $0x18] sm:$0x30]
    %v475 = vrot.slane %v471, 2
    %v476 = vrot.slane %v472, 2
    %v479 = vadd.f32 %v469, %v475
    %v480 = vadd.f32 %v470, %v476
    %v481 = vsel %vm362, %v463, 0
    %483 = vmatprep.subr.mxu0 0.0
    %484 = vmatpush1.msra.mxu0 0.0
    %485 = vmatprep.subr.mxu0 0.0
    %486 = vmatpush1.msra.mxu0 0.0
    %487 = vmatprep.subr.mxu0 0.0
    %488 = vmatpush1.msra.mxu0 0.0
    %489 = vmatprep.subr.mxu0 0.0
    %490 = vmatpush1.msra.mxu0 0.0
    %491 = vmatprep.subr.mxu0 0.0
    %492 = vmatpush1.msra.mxu0 0.0
    %493 = vmatprep.subr.mxu0 0.0
    %494 = vmatpush1.msra.mxu0 0.0
    %495 = vmatprep.subr.mxu0 0.0
    %496 = vmatpush1.msra.mxu0 0.0
    %497 = vmatprep.subr.mxu0 0.0
    %498 = vmatpush1.msra.mxu0 0.0
    %499 = vmatprep.subr.mxu0 %v349
    %500 = vmatpush1.msra.mxu0 %v348
    %501 = vmatprep.subr.mxu0 %v347
    %502 = vmatpush1.msra.mxu0 %v346
    %503 = vmatprep.subr.mxu0 %v345
    %504 = vmatpush1.msra.mxu0 %v344
    %505 = vmatprep.subr.mxu0 %v343
    %506 = vmatpush1.msra.mxu0 %v342
    %507 = vmatprep.subr.mxu0 %v341
    %508 = vmatpush1.msra.mxu0 %v340
    %509 = vmatprep.subr.mxu0 %v339
    %510 = vmatpush1.msra.mxu0 %v338
    %511 = vmatprep.subr.mxu0 %v337
    %512 = vmatpush1.msra.mxu0 %v336
    %513 = vmatprep.subr.mxu0 %v335
    %514 = vmatpush1.msra.mxu0 %v334
    %515 = vmatprep.subr.mxu0 0.0
    %516 = vmatpush2.msra.mxu0 0.0
    %517 = vmatprep.subr.mxu0 0.0
    %518 = vmatpush2.msra.mxu0 0.0
    %519 = vmatprep.subr.mxu0 0.0
    %520 = vmatpush2.msra.mxu0 0.0
    %521 = vmatprep.subr.mxu0 0.0
    %522 = vmatpush2.msra.mxu0 0.0
    %523 = vmatprep.subr.mxu0 0.0
    %524 = vmatpush2.msra.mxu0 0.0
    %525 = vmatprep.subr.mxu0 0.0
    %526 = vmatpush2.msra.mxu0 0.0
    %527 = vmatprep.subr.mxu0 0.0
    %528 = vmatpush2.msra.mxu0 0.0
    %529 = vmatprep.subr.mxu0 0.0
    %530 = vmatpush2.msra.mxu0 0.0
    %531 = vmatprep.subr.mxu0 0.0
    %532 = vmatpush2.msra.mxu0 0.0
    %533 = vmatprep.subr.mxu0 0.0
    %534 = vmatpush2.msra.mxu0 0.0
    %535 = vmatprep.subr.mxu0 0.0
    %536 = vmatpush2.msra.mxu0 0.0
    %537 = vmatprep.subr.mxu0 0.0
    %538 = vmatpush2.msra.mxu0 0.0
    %539 = vmatprep.subr.mxu0 0.0
    %540 = vmatpush2.msra.mxu0 0.0
    %541 = vmatprep.subr.mxu0 0.0
    %542 = vmatpush2.msra.mxu0 0.0
    %543 = vmatprep.subr.mxu0 0.0
    %544 = vmatpush2.msra.mxu0 0.0
    %545 = vmatprep.subr.mxu0 0.0
    %546 = vmatpush2.msra.mxu0 0.0
    %547 = vmatprep.mubr.f32.mxu0 0.0
    %548 = vmatmul.mubr.f32.gmra.mxu0 %v481
    %v549 = vpop.f32.mrf.mxu0
    %v550 = vadd.f32 0.0, %v549
    %v551 = vpop.f32.mrf.mxu0
    %v552 = vadd.f32 0.0, %v551
    %553 = vdwg.mxu0
    %v556 = vrot.slane %v550, 6
    %v557 = vrot.slane %v552, 6
    %v560 = vadd.f32 %v479, %v556
    %v561 = vadd.f32 %v480, %v557
    %v562 = vxor.u32 %v560, 2147483648
    %v563 = vmul.f32 %v562, 1.442695
    %v564 = vpow.pop %v563
    %v565 = vadd.f32 %v564, 1.0
    %v566 = vrcp.pop %v565
    %v567 = vmul.f32 1.0, %v566
    %v568 = vtanh.pop %v561
    %v569 = vxor.u32 %v561, 2147483648
    %v570 = vmul.f32 %v569, 1.442695
    %v571 = vpow.pop %v570
    %v572 = vadd.f32 %v571, 1.0
    %v573 = vrcp.pop %v572
    %v574 = vmul.f32 1.0, %v573
    %v576 = vrot.slane %v458, 6
    %v578 = vmul.f32 %v567, %v576
    %v579 = vmul.f32 %v567, %v568
    %581 = vrot.lane.b32.xlu0 %v579, 64
    %v582 = vpop.permute.xlu0 %581
    %v584 = vadd.f32 %v578, %v582
    %v585 = vtanh.pop %v584
    %v586 = vmul.f32 %v574, %v585
    %588 = vrot.lane.b32.xlu0 %v586, 64
    %v589 = vpop.permute.xlu0 %588
    %vm591 = vcmask 257026
    %592 = vst.msk [vmem:[#allocation4] sm:$0xc] %vm591, %v589
    %vm593 = vcmask 519426
    %594 = vst.msk [vmem:[#allocation4 + $0xa] sm:$0xc] %vm593, %v589
    %v595 = vld [vmem:[#allocation2] sm:$0x30]
    %v596 = vld [vmem:[#allocation2 + $0x8] sm:$0x30]
    %v597 = vld [vmem:[#allocation3 + $0x10] sm:$0xc]
    %v598 = vld [vmem:[#allocation3 + $0x18] sm:$0xc]
    %v601 = vrot.slane %v597, 6
    %v602 = vrot.slane %v598, 6
    %v605 = vadd.f32 %v595, %v601
    %v606 = vadd.f32 %v596, %v602
    %v607 = vrot.slane %v586, 2
    %608 = vrot.lane.b32.xlu0 %v607, 64
    %v609 = vpop.permute.xlu0 %608
    %v610 = vsel %vm362, %v609, 0
    %612 = vmatprep.subr.mxu0 0.0
    %613 = vmatpush1.msra.mxu0 0.0
    %614 = vmatprep.subr.mxu0 0.0
    %615 = vmatpush1.msra.mxu0 0.0
    %616 = vmatprep.subr.mxu0 0.0
    %617 = vmatpush1.msra.mxu0 0.0
    %618 = vmatprep.subr.mxu0 0.0
    %619 = vmatpush1.msra.mxu0 0.0
    %620 = vmatprep.subr.mxu0 0.0
    %621 = vmatpush1.msra.mxu0 0.0
    %622 = vmatprep.subr.mxu0 0.0
    %623 = vmatpush1.msra.mxu0 0.0
    %624 = vmatprep.subr.mxu0 0.0
    %625 = vmatpush1.msra.mxu0 0.0
    %626 = vmatprep.subr.mxu0 0.0
    %627 = vmatpush1.msra.mxu0 0.0
    %628 = vmatprep.subr.mxu0 %v349
    %629 = vmatpush1.msra.mxu0 %v348
    %630 = vmatprep.subr.mxu0 %v347
    %631 = vmatpush1.msra.mxu0 %v346
    %632 = vmatprep.subr.mxu0 %v345
    %633 = vmatpush1.msra.mxu0 %v344
    %634 = vmatprep.subr.mxu0 %v343
    %635 = vmatpush1.msra.mxu0 %v342
    %636 = vmatprep.subr.mxu0 %v341
    %637 = vmatpush1.msra.mxu0 %v340
    %638 = vmatprep.subr.mxu0 %v339
    %639 = vmatpush1.msra.mxu0 %v338
    %640 = vmatprep.subr.mxu0 %v337
    %641 = vmatpush1.msra.mxu0 %v336
    %642 = vmatprep.subr.mxu0 %v335
    %643 = vmatpush1.msra.mxu0 %v334
    %644 = vmatprep.subr.mxu0 0.0
    %645 = vmatpush2.msra.mxu0 0.0
    %646 = vmatprep.subr.mxu0 0.0
    %647 = vmatpush2.msra.mxu0 0.0
    %648 = vmatprep.subr.mxu0 0.0
    %649 = vmatpush2.msra.mxu0 0.0
    %650 = vmatprep.subr.mxu0 0.0
    %651 = vmatpush2.msra.mxu0 0.0
    %652 = vmatprep.subr.mxu0 0.0
    %653 = vmatpush2.msra.mxu0 0.0
    %654 = vmatprep.subr.mxu0 0.0
    %655 = vmatpush2.msra.mxu0 0.0
    %656 = vmatprep.subr.mxu0 0.0
    %657 = vmatpush2.msra.mxu0 0.0
    %658 = vmatprep.subr.mxu0 0.0
    %659 = vmatpush2.msra.mxu0 0.0
    %660 = vmatprep.subr.mxu0 0.0
    %661 = vmatpush2.msra.mxu0 0.0
    %662 = vmatprep.subr.mxu0 0.0
    %663 = vmatpush2.msra.mxu0 0.0
    %664 = vmatprep.subr.mxu0 0.0
    %665 = vmatpush2.msra.mxu0 0.0
    %666 = vmatprep.subr.mxu0 0.0
    %667 = vmatpush2.msra.mxu0 0.0
    %668 = vmatprep.subr.mxu0 0.0
    %669 = vmatpush2.msra.mxu0 0.0
    %670 = vmatprep.subr.mxu0 0.0
    %671 = vmatpush2.msra.mxu0 0.0
    %672 = vmatprep.subr.mxu0 0.0
    %673 = vmatpush2.msra.mxu0 0.0
    %674 = vmatprep.subr.mxu0 0.0
    %675 = vmatpush2.msra.mxu0 0.0
    %676 = vmatprep.mubr.f32.mxu0 0.0
    %677 = vmatmul.mubr.f32.gmra.mxu0 %v610
    %v678 = vpop.f32.mrf.mxu0
    %v679 = vadd.f32 0.0, %v678
    %v680 = vpop.f32.mrf.mxu0
    %v681 = vadd.f32 0.0, %v680
    %682 = vdwg.mxu0
    %v685 = vrot.slane %v679, 4
    %v686 = vrot.slane %v681, 4
    %v689 = vadd.f32 %v605, %v685
    %v690 = vadd.f32 %v606, %v686
    %v691 = vxor.u32 %v689, 2147483648
    %v692 = vmul.f32 %v691, 1.442695
    %v693 = vpow.pop %v692
    %v694 = vadd.f32 %v693, 1.0
    %v695 = vrcp.pop %v694
    %v696 = vmul.f32 1.0, %v695
    %v697 = vtanh.pop %v690
    %v698 = vxor.u32 %v690, 2147483648
    %v699 = vmul.f32 %v698, 1.442695
    %v700 = vpow.pop %v699
    %v701 = vadd.f32 %v700, 1.0
    %v702 = vrcp.pop %v701
    %v703 = vmul.f32 1.0, %v702
    %v705 = vrot.slane %v584, 6
    %v707 = vmul.f32 %v696, %v705
    %v708 = vmul.f32 %v696, %v697
    %710 = vrot.lane.b32.xlu0 %v708, 64
    %v711 = vpop.permute.xlu0 %710
    %v713 = vadd.f32 %v707, %v711
    %v714 = vtanh.pop %v713
    %v715 = vmul.f32 %v703, %v714
    %717 = vrot.lane.b32.xlu0 %v715, 64
    %v718 = vpop.permute.xlu0 %717
    %vm720 = vcmask 259076
    %721 = vst.msk [vmem:[#allocation4] sm:$0x30] %vm720, %v718
    %vm722 = vcmask 521476
    %723 = vst.msk [vmem:[#allocation4 + $0x6] sm:$0x30] %vm722, %v718
    %v724 = vld [vmem:[#allocation2] sm:$0xc0]
    %v725 = vld [vmem:[#allocation2 + $0x8] sm:$0xc0]
    %v726 = vld [vmem:[#allocation3 + $0x10] sm:$0x3]
    %v727 = vld [vmem:[#allocation3 + $0x18] sm:$0x3]
    %v730 = vrot.slane %v726, 2
    %v731 = vrot.slane %v727, 2
    %v734 = vadd.f32 %v724, %v730
    %v735 = vadd.f32 %v725, %v731
    %v736 = vrot.slane %v715, 4
    %737 = vrot.lane.b32.xlu0 %v736, 64
    %v738 = vpop.permute.xlu0 %737
    %v739 = vsel %vm362, %v738, 0
    %741 = vmatprep.subr.mxu0 0.0
    %742 = vmatpush1.msra.mxu0 0.0
    %743 = vmatprep.subr.mxu0 0.0
    %744 = vmatpush1.msra.mxu0 0.0
    %745 = vmatprep.subr.mxu0 0.0
    %746 = vmatpush1.msra.mxu0 0.0
    %747 = vmatprep.subr.mxu0 0.0
    %748 = vmatpush1.msra.mxu0 0.0
    %749 = vmatprep.subr.mxu0 0.0
    %750 = vmatpush1.msra.mxu0 0.0
    %751 = vmatprep.subr.mxu0 0.0
    %752 = vmatpush1.msra.mxu0 0.0
    %753 = vmatprep.subr.mxu0 0.0
    %754 = vmatpush1.msra.mxu0 0.0
    %755 = vmatprep.subr.mxu0 0.0
    %756 = vmatpush1.msra.mxu0 0.0
    %757 = vmatprep.subr.mxu0 %v349
    %758 = vmatpush1.msra.mxu0 %v348
    %759 = vmatprep.subr.mxu0 %v347
    %760 = vmatpush1.msra.mxu0 %v346
    %761 = vmatprep.subr.mxu0 %v345
    %762 = vmatpush1.msra.mxu0 %v344
    %763 = vmatprep.subr.mxu0 %v343
    %764 = vmatpush1.msra.mxu0 %v342
    %765 = vmatprep.subr.mxu0 %v341
    %766 = vmatpush1.msra.mxu0 %v340
    %767 = vmatprep.subr.mxu0 %v339
    %768 = vmatpush1.msra.mxu0 %v338
    %769 = vmatprep.subr.mxu0 %v337
    %770 = vmatpush1.msra.mxu0 %v336
    %771 = vmatprep.subr.mxu0 %v335
    %772 = vmatpush1.msra.mxu0 %v334
    %773 = vmatprep.subr.mxu0 0.0
    %774 = vmatpush2.msra.mxu0 0.0
    %775 = vmatprep.subr.mxu0 0.0
    %776 = vmatpush2.msra.mxu0 0.0
    %777 = vmatprep.subr.mxu0 0.0
    %778 = vmatpush2.msra.mxu0 0.0
    %779 = vmatprep.subr.mxu0 0.0
    %780 = vmatpush2.msra.mxu0 0.0
    %781 = vmatprep.subr.mxu0 0.0
    %782 = vmatpush2.msra.mxu0 0.0
    %783 = vmatprep.subr.mxu0 0.0
    %784 = vmatpush2.msra.mxu0 0.0
    %785 = vmatprep.subr.mxu0 0.0
    %786 = vmatpush2.msra.mxu0 0.0
    %787 = vmatprep.subr.mxu0 0.0
    %788 = vmatpush2.msra.mxu0 0.0
    %789 = vmatprep.subr.mxu0 0.0
    %790 = vmatpush2.msra.mxu0 0.0
    %791 = vmatprep.subr.mxu0 0.0
    %792 = vmatpush2.msra.mxu0 0.0
    %793 = vmatprep.subr.mxu0 0.0
    %794 = vmatpush2.msra.mxu0 0.0
    %795 = vmatprep.subr.mxu0 0.0
    %796 = vmatpush2.msra.mxu0 0.0
    %797 = vmatprep.subr.mxu0 0.0
    %798 = vmatpush2.msra.mxu0 0.0
    %799 = vmatprep.subr.mxu0 0.0
    %800 = vmatpush2.msra.mxu0 0.0
    %801 = vmatprep.subr.mxu0 0.0
    %802 = vmatpush2.msra.mxu0 0.0
    %803 = vmatprep.subr.mxu0 0.0
    %804 = vmatpush2.msra.mxu0 0.0
    %805 = vmatprep.mubr.f32.mxu0 0.0
    %806 = vmatmul.mubr.f32.gmra.mxu0 %v739
    %v807 = vpop.f32.mrf.mxu0
    %v808 = vadd.f32 0.0, %v807
    %v809 = vpop.f32.mrf.mxu0
    %v810 = vadd.f32 0.0, %v809
    %811 = vdwg.mxu0
    %v814 = vrot.slane %v808, 2
    %v815 = vrot.slane %v810, 2
    %v818 = vadd.f32 %v734, %v814
    %v819 = vadd.f32 %v735, %v815
    %v820 = vxor.u32 %v818, 2147483648
    %v821 = vmul.f32 %v820, 1.442695
    %v822 = vpow.pop %v821
    %v823 = vadd.f32 %v822, 1.0
    %v824 = vrcp.pop %v823
    %v825 = vmul.f32 1.0, %v824
    %v826 = vtanh.pop %v819
    %v827 = vxor.u32 %v819, 2147483648
    %v828 = vmul.f32 %v827, 1.442695
    %v829 = vpow.pop %v828
    %v830 = vadd.f32 %v829, 1.0
    %v831 = vrcp.pop %v830
    %v832 = vmul.f32 1.0, %v831
    %v834 = vrot.slane %v713, 6
    %v836 = vmul.f32 %v825, %v834
    %v837 = vmul.f32 %v825, %v826
    %839 = vrot.lane.b32.xlu0 %v837, 64
    %v840 = vpop.permute.xlu0 %839
    %v842 = vadd.f32 %v836, %v840
    %v843 = vtanh.pop %v842
    %v844 = vmul.f32 %v832, %v843
    %846 = vrot.lane.b32.xlu0 %v844, 64
    %v847 = vpop.permute.xlu0 %846
    %vm849 = vcmask 261126
    %850 = vst.msk [vmem:[#allocation4] sm:$0xc0] %vm849, %v847
    %vm851 = vcmask 523526
    %852 = vst.msk [vmem:[#allocation4 + $0x2] sm:$0xc0] %vm851, %v847
    %v853 = vld [vmem:[#allocation2 + $0x10] sm:$0x3]
    %v854 = vld [vmem:[#allocation2 + $0x18] sm:$0x3]
    %v855 = vld [vmem:[#allocation3] sm:$0xc0]
    %v856 = vld [vmem:[#allocation3 + $0x8] sm:$0xc0]
    %v859 = vrot.slane %v855, 6
    %v860 = vrot.slane %v856, 6
    %v863 = vadd.f32 %v853, %v859
    %v864 = vadd.f32 %v854, %v860
    %v865 = vrot.slane %v844, 6
    %866 = vrot.lane.b32.xlu0 %v865, 64
    %v867 = vpop.permute.xlu0 %866
    %v868 = vsel %vm362, %v867, 0
    %870 = vmatprep.subr.mxu0 0.0
    %871 = vmatpush1.msra.mxu0 0.0
    %872 = vmatprep.subr.mxu0 0.0
    %873 = vmatpush1.msra.mxu0 0.0
    %874 = vmatprep.subr.mxu0 0.0
    %875 = vmatpush1.msra.mxu0 0.0
    %876 = vmatprep.subr.mxu0 0.0
    %877 = vmatpush1.msra.mxu0 0.0
    %878 = vmatprep.subr.mxu0 0.0
    %879 = vmatpush1.msra.mxu0 0.0
    %880 = vmatprep.subr.mxu0 0.0
    %881 = vmatpush1.msra.mxu0 0.0
    %882 = vmatprep.subr.mxu0 0.0
    %883 = vmatpush1.msra.mxu0 0.0
    %884 = vmatprep.subr.mxu0 0.0
    %885 = vmatpush1.msra.mxu0 0.0
    %886 = vmatprep.subr.mxu0 %v349
    %887 = vmatpush1.msra.mxu0 %v348
    %888 = vmatprep.subr.mxu0 %v347
    %889 = vmatpush1.msra.mxu0 %v346
    %890 = vmatprep.subr.mxu0 %v345
    %891 = vmatpush1.msra.mxu0 %v344
    %892 = vmatprep.subr.mxu0 %v343
    %893 = vmatpush1.msra.mxu0 %v342
    %894 = vmatprep.subr.mxu0 %v341
    %895 = vmatpush1.msra.mxu0 %v340
    %896 = vmatprep.subr.mxu0 %v339
    %897 = vmatpush1.msra.mxu0 %v338
    %898 = vmatprep.subr.mxu0 %v337
    %899 = vmatpush1.msra.mxu0 %v336
    %900 = vmatprep.subr.mxu0 %v335
    %901 = vmatpush1.msra.mxu0 %v334
    %902 = vmatprep.subr.mxu0 0.0
    %903 = vmatpush2.msra.mxu0 0.0
    %904 = vmatprep.subr.mxu0 0.0
    %905 = vmatpush2.msra.mxu0 0.0
    %906 = vmatprep.subr.mxu0 0.0
    %907 = vmatpush2.msra.mxu0 0.0
    %908 = vmatprep.subr.mxu0 0.0
    %909 = vmatpush2.msra.mxu0 0.0
    %910 = vmatprep.subr.mxu0 0.0
    %911 = vmatpush2.msra.mxu0 0.0
    %912 = vmatprep.subr.mxu0 0.0
    %913 = vmatpush2.msra.mxu0 0.0
    %914 = vmatprep.subr.mxu0 0.0
    %915 = vmatpush2.msra.mxu0 0.0
    %916 = vmatprep.subr.mxu0 0.0
    %917 = vmatpush2.msra.mxu0 0.0
    %918 = vmatprep.subr.mxu0 0.0
    %919 = vmatpush2.msra.mxu0 0.0
    %920 = vmatprep.subr.mxu0 0.0
    %921 = vmatpush2.msra.mxu0 0.0
    %922 = vmatprep.subr.mxu0 0.0
    %923 = vmatpush2.msra.mxu0 0.0
    %924 = vmatprep.subr.mxu0 0.0
    %925 = vmatpush2.msra.mxu0 0.0
    %926 = vmatprep.subr.mxu0 0.0
    %927 = vmatpush2.msra.mxu0 0.0
    %928 = vmatprep.subr.mxu0 0.0
    %929 = vmatpush2.msra.mxu0 0.0
    %930 = vmatprep.subr.mxu0 0.0
    %931 = vmatpush2.msra.mxu0 0.0
    %932 = vmatprep.subr.mxu0 0.0
    %933 = vmatpush2.msra.mxu0 0.0
    %934 = vmatprep.mubr.f32.mxu0 0.0
    %935 = vmatmul.mubr.f32.gmra.mxu0 %v868
    %v936 = vpop.f32.mrf.mxu0
    %v937 = vadd.f32 0.0, %v936
    %v938 = vpop.f32.mrf.mxu0
    %v939 = vadd.f32 0.0, %v938
    %940 = vdwg.mxu0
    %v941 = vadd.f32 %v863, %v937
    %v942 = vadd.f32 %v864, %v939
    %v943 = vxor.u32 %v941, 2147483648
    %v944 = vmul.f32 %v943, 1.442695
    %v945 = vpow.pop %v944
    %v946 = vadd.f32 %v945, 1.0
    %v947 = vrcp.pop %v946
    %v948 = vmul.f32 1.0, %v947
    %v949 = vtanh.pop %v942
    %v950 = vxor.u32 %v942, 2147483648
    %v951 = vmul.f32 %v950, 1.442695
    %v952 = vpow.pop %v951
    %v953 = vadd.f32 %v952, 1.0
    %v954 = vrcp.pop %v953
    %v955 = vmul.f32 1.0, %v954
    %v957 = vrot.slane %v842, 6
    %v959 = vmul.f32 %v948, %v957
    %v960 = vmul.f32 %v948, %v949
    %962 = vrot.lane.b32.xlu0 %v960, 64
    %v963 = vpop.permute.xlu0 %962
    %v965 = vadd.f32 %v959, %v963
    %v966 = vtanh.pop %v965
    %v967 = vmul.f32 %v955, %v966
    %969 = vrot.lane.b32.xlu0 %v967, 64
    %v970 = vpop.permute.xlu0 %969
    %972 = vst.msk [vmem:[#allocation4 + $0x8] sm:$0x3] %vm465, %v970
    %973 = vst.msk [vmem:[#allocation4 + $0x6] sm:$0x3] %vm467, %v970
    %v974 = vld [vmem:[#allocation2 + $0x10] sm:$0xc]
    %v975 = vld [vmem:[#allocation2 + $0x18] sm:$0xc]
    %v976 = vld [vmem:[#allocation3] sm:$0x30]
    %v977 = vld [vmem:[#allocation3 + $0x8] sm:$0x30]
    %v980 = vrot.slane %v976, 2
    %v981 = vrot.slane %v977, 2
    %v984 = vadd.f32 %v974, %v980
    %v985 = vadd.f32 %v975, %v981
    %v986 = vsel %vm362, %v970, 0
    %988 = vmatprep.subr.mxu0 0.0
    %989 = vmatpush1.msra.mxu0 0.0
    %990 = vmatprep.subr.mxu0 0.0
    %991 = vmatpush1.msra.mxu0 0.0
    %992 = vmatprep.subr.mxu0 0.0
    %993 = vmatpush1.msra.mxu0 0.0
    %994 = vmatprep.subr.mxu0 0.0
    %995 = vmatpush1.msra.mxu0 0.0
    %996 = vmatprep.subr.mxu0 0.0
    %997 = vmatpush1.msra.mxu0 0.0
    %998 = vmatprep.subr.mxu0 0.0
    %999 = vmatpush1.msra.mxu0 0.0
    %1000 = vmatprep.subr.mxu0 0.0
    %1001 = vmatpush1.msra.mxu0 0.0
    %1002 = vmatprep.subr.mxu0 0.0
    %1003 = vmatpush1.msra.mxu0 0.0
    %1004 = vmatprep.subr.mxu0 %v349
    %1005 = vmatpush1.msra.mxu0 %v348
    %1006 = vmatprep.subr.mxu0 %v347
    %1007 = vmatpush1.msra.mxu0 %v346
    %1008 = vmatprep.subr.mxu0 %v345
    %1009 = vmatpush1.msra.mxu0 %v344
    %1010 = vmatprep.subr.mxu0 %v343
    %1011 = vmatpush1.msra.mxu0 %v342
    %1012 = vmatprep.subr.mxu0 %v341
    %1013 = vmatpush1.msra.mxu0 %v340
    %1014 = vmatprep.subr.mxu0 %v339
    %1015 = vmatpush1.msra.mxu0 %v338
    %1016 = vmatprep.subr.mxu0 %v337
    %1017 = vmatpush1.msra.mxu0 %v336
    %1018 = vmatprep.subr.mxu0 %v335
    %1019 = vmatpush1.msra.mxu0 %v334
    %1020 = vmatprep.subr.mxu0 0.0
    %1021 = vmatpush2.msra.mxu0 0.0
    %1022 = vmatprep.subr.mxu0 0.0
    %1023 = vmatpush2.msra.mxu0 0.0
    %1024 = vmatprep.subr.mxu0 0.0
    %1025 = vmatpush2.msra.mxu0 0.0
    %1026 = vmatprep.subr.mxu0 0.0
    %1027 = vmatpush2.msra.mxu0 0.0
    %1028 = vmatprep.subr.mxu0 0.0
    %1029 = vmatpush2.msra.mxu0 0.0
    %1030 = vmatprep.subr.mxu0 0.0
    %1031 = vmatpush2.msra.mxu0 0.0
    %1032 = vmatprep.subr.mxu0 0.0
    %1033 = vmatpush2.msra.mxu0 0.0
    %1034 = vmatprep.subr.mxu0 0.0
    %1035 = vmatpush2.msra.mxu0 0.0
    %1036 = vmatprep.subr.mxu0 0.0
    %1037 = vmatpush2.msra.mxu0 0.0
    %1038 = vmatprep.subr.mxu0 0.0
    %1039 = vmatpush2.msra.mxu0 0.0
    %1040 = vmatprep.subr.mxu0 0.0
    %1041 = vmatpush2.msra.mxu0 0.0
    %1042 = vmatprep.subr.mxu0 0.0
    %1043 = vmatpush2.msra.mxu0 0.0
    %1044 = vmatprep.subr.mxu0 0.0
    %1045 = vmatpush2.msra.mxu0 0.0
    %1046 = vmatprep.subr.mxu0 0.0
    %1047 = vmatpush2.msra.mxu0 0.0
    %1048 = vmatprep.subr.mxu0 0.0
    %1049 = vmatpush2.msra.mxu0 0.0
    %1050 = vmatprep.subr.mxu0 0.0
    %1051 = vmatpush2.msra.mxu0 0.0
    %1052 = vmatprep.mubr.f32.mxu0 0.0
    %1053 = vmatmul.mubr.f32.gmra.mxu0 %v986
    %v1054 = vpop.f32.mrf.mxu0
    %v1055 = vadd.f32 0.0, %v1054
    %v1056 = vpop.f32.mrf.mxu0
    %v1057 = vadd.f32 0.0, %v1056
    %1058 = vdwg.mxu0
    %v1061 = vrot.slane %v1055, 6
    %v1062 = vrot.slane %v1057, 6
    %v1065 = vadd.f32 %v984, %v1061
    %v1066 = vadd.f32 %v985, %v1062
    %v1067 = vxor.u32 %v1065, 2147483648
    %v1068 = vmul.f32 %v1067, 1.442695
    %v1069 = vpow.pop %v1068
    %v1070 = vadd.f32 %v1069, 1.0
    %v1071 = vrcp.pop %v1070
    %v1072 = vmul.f32 1.0, %v1071
    %v1073 = vtanh.pop %v1066
    %v1074 = vxor.u32 %v1066, 2147483648
    %v1075 = vmul.f32 %v1074, 1.442695
    %v1076 = vpow.pop %v1075
    %v1077 = vadd.f32 %v1076, 1.0
    %v1078 = vrcp.pop %v1077
    %v1079 = vmul.f32 1.0, %v1078
    %v1081 = vrot.slane %v965, 6
    %v1083 = vmul.f32 %v1072, %v1081
    %v1084 = vmul.f32 %v1072, %v1073
    %1086 = vrot.lane.b32.xlu0 %v1084, 64
    %v1087 = vpop.permute.xlu0 %1086
    %v1089 = vadd.f32 %v1083, %v1087
    %v1090 = vtanh.pop %v1089
    %v1091 = vmul.f32 %v1079, %v1090
    %1093 = vrot.lane.b32.xlu0 %v1091, 64
    %v1094 = vpop.permute.xlu0 %1093
    %1096 = vst.msk [vmem:[#allocation4 + $0x8] sm:$0xc] %vm591, %v1094
    %1097 = vst.msk [vmem:[#allocation4 + $0x2] sm:$0xc] %vm593, %v1094
    %v1098 = vld [vmem:[#allocation2 + $0x10] sm:$0x30]
    %v1099 = vld [vmem:[#allocation2 + $0x18] sm:$0x30]
    %v1100 = vld [vmem:[#allocation3] sm:$0xc]
    %v1101 = vld [vmem:[#allocation3 + $0x8] sm:$0xc]
    %v1104 = vrot.slane %v1100, 6
    %v1105 = vrot.slane %v1101, 6
    %v1108 = vadd.f32 %v1098, %v1104
    %v1109 = vadd.f32 %v1099, %v1105
    %v1110 = vrot.slane %v1091, 2
    %1111 = vrot.lane.b32.xlu0 %v1110, 64
    %v1112 = vpop.permute.xlu0 %1111
    %v1113 = vsel %vm362, %v1112, 0
    %1115 = vmatprep.subr.mxu0 0.0
    %1116 = vmatpush1.msra.mxu0 0.0
    %1117 = vmatprep.subr.mxu0 0.0
    %1118 = vmatpush1.msra.mxu0 0.0
    %1119 = vmatprep.subr.mxu0 0.0
    %1120 = vmatpush1.msra.mxu0 0.0
    %1121 = vmatprep.subr.mxu0 0.0
    %1122 = vmatpush1.msra.mxu0 0.0
    %1123 = vmatprep.subr.mxu0 0.0
    %1124 = vmatpush1.msra.mxu0 0.0
    %1125 = vmatprep.subr.mxu0 0.0
    %1126 = vmatpush1.msra.mxu0 0.0
    %1127 = vmatprep.subr.mxu0 0.0
    %1128 = vmatpush1.msra.mxu0 0.0
    %1129 = vmatprep.subr.mxu0 0.0
    %1130 = vmatpush1.msra.mxu0 0.0
    %1131 = vmatprep.subr.mxu0 %v349
    %1132 = vmatpush1.msra.mxu0 %v348
    %1133 = vmatprep.subr.mxu0 %v347
    %1134 = vmatpush1.msra.mxu0 %v346
    %1135 = vmatprep.subr.mxu0 %v345
    %1136 = vmatpush1.msra.mxu0 %v344
    %1137 = vmatprep.subr.mxu0 %v343
    %1138 = vmatpush1.msra.mxu0 %v342
    %1139 = vmatprep.subr.mxu0 %v341
    %1140 = vmatpush1.msra.mxu0 %v340
    %1141 = vmatprep.subr.mxu0 %v339
    %1142 = vmatpush1.msra.mxu0 %v338
    %1143 = vmatprep.subr.mxu0 %v337
    %1144 = vmatpush1.msra.mxu0 %v336
    %1145 = vmatprep.subr.mxu0 %v335
    %1146 = vmatpush1.msra.mxu0 %v334
    %1147 = vmatprep.subr.mxu0 0.0
    %1148 = vmatpush2.msra.mxu0 0.0
    %1149 = vmatprep.subr.mxu0 0.0
    %1150 = vmatpush2.msra.mxu0 0.0
    %1151 = vmatprep.subr.mxu0 0.0
    %1152 = vmatpush2.msra.mxu0 0.0
    %1153 = vmatprep.subr.mxu0 0.0
    %1154 = vmatpush2.msra.mxu0 0.0
    %1155 = vmatprep.subr.mxu0 0.0
    %1156 = vmatpush2.msra.mxu0 0.0
    %1157 = vmatprep.subr.mxu0 0.0
    %1158 = vmatpush2.msra.mxu0 0.0
    %1159 = vmatprep.subr.mxu0 0.0
    %1160 = vmatpush2.msra.mxu0 0.0
    %1161 = vmatprep.subr.mxu0 0.0
    %1162 = vmatpush2.msra.mxu0 0.0
    %1163 = vmatprep.subr.mxu0 0.0
    %1164 = vmatpush2.msra.mxu0 0.0
    %1165 = vmatprep.subr.mxu0 0.0
    %1166 = vmatpush2.msra.mxu0 0.0
    %1167 = vmatprep.subr.mxu0 0.0
    %1168 = vmatpush2.msra.mxu0 0.0
    %1169 = vmatprep.subr.mxu0 0.0
    %1170 = vmatpush2.msra.mxu0 0.0
    %1171 = vmatprep.subr.mxu0 0.0
    %1172 = vmatpush2.msra.mxu0 0.0
    %1173 = vmatprep.subr.mxu0 0.0
    %1174 = vmatpush2.msra.mxu0 0.0
    %1175 = vmatprep.subr.mxu0 0.0
    %1176 = vmatpush2.msra.mxu0 0.0
    %1177 = vmatprep.subr.mxu0 0.0
    %1178 = vmatpush2.msra.mxu0 0.0
    %1179 = vmatprep.mubr.f32.mxu0 0.0
    %1180 = vmatmul.mubr.f32.gmra.mxu0 %v1113
    %v1181 = vpop.f32.mrf.mxu0
    %v1182 = vadd.f32 0.0, %v1181
    %v1183 = vpop.f32.mrf.mxu0
    %v1184 = vadd.f32 0.0, %v1183
    %1185 = vdwg.mxu0
    %v1188 = vrot.slane %v1182, 4
    %v1189 = vrot.slane %v1184, 4
    %v1192 = vadd.f32 %v1108, %v1188
    %v1193 = vadd.f32 %v1109, %v1189
    %v1194 = vxor.u32 %v1192, 2147483648
    %v1195 = vmul.f32 %v1194, 1.442695
    %v1196 = vpow.pop %v1195
    %v1197 = vadd.f32 %v1196, 1.0
    %v1198 = vrcp.pop %v1197
    %v1199 = vmul.f32 1.0, %v1198
    %v1200 = vtanh.pop %v1193
    %v1201 = vxor.u32 %v1193, 2147483648
    %v1202 = vmul.f32 %v1201, 1.442695
    %v1203 = vpow.pop %v1202
    %v1204 = vadd.f32 %v1203, 1.0
    %v1205 = vrcp.pop %v1204
    %v1206 = vmul.f32 1.0, %v1205
    %v1208 = vrot.slane %v1089, 6
    %v1210 = vmul.f32 %v1199, %v1208
    %v1211 = vmul.f32 %v1199, %v1200
    %1213 = vrot.lane.b32.xlu0 %v1211, 64
    %v1214 = vpop.permute.xlu0 %1213
    %v1216 = vadd.f32 %v1210, %v1214
    %v1217 = vtanh.pop %v1216
    %v1218 = vmul.f32 %v1206, %v1217
    %1220 = vrot.lane.b32.xlu0 %v1218, 64
    %v1221 = vpop.permute.xlu0 %1220
    %1223 = vst.msk [vmem:[#allocation4 + $0x8] sm:$0x30] %vm720, %v1221
    %1224 = vst.msk [vmem:[#allocation4 - $0x2] sm:$0x30] %vm722, %v1221
    %v1225 = vld [vmem:[#allocation2 + $0x10] sm:$0xc0]
    %v1226 = vld [vmem:[#allocation2 + $0x18] sm:$0xc0]
    %v1227 = vld [vmem:[#allocation3] sm:$0x3]
    %v1228 = vld [vmem:[#allocation3 + $0x8] sm:$0x3]
    %v1231 = vrot.slane %v1227, 2
    %v1232 = vrot.slane %v1228, 2
    %v1235 = vadd.f32 %v1225, %v1231
    %v1236 = vadd.f32 %v1226, %v1232
    %v1237 = vrot.slane %v1218, 4
    %1238 = vrot.lane.b32.xlu0 %v1237, 64
    %v1239 = vpop.permute.xlu0 %1238
    %v1240 = vsel %vm362, %v1239, 0
    %1242 = vmatprep.subr.mxu0 0.0
    %1243 = vmatpush1.msra.mxu0 0.0
    %1244 = vmatprep.subr.mxu0 0.0
    %1245 = vmatpush1.msra.mxu0 0.0
    %1246 = vmatprep.subr.mxu0 0.0
    %1247 = vmatpush1.msra.mxu0 0.0
    %1248 = vmatprep.subr.mxu0 0.0
    %1249 = vmatpush1.msra.mxu0 0.0
    %1250 = vmatprep.subr.mxu0 0.0
    %1251 = vmatpush1.msra.mxu0 0.0
    %1252 = vmatprep.subr.mxu0 0.0
    %1253 = vmatpush1.msra.mxu0 0.0
    %1254 = vmatprep.subr.mxu0 0.0
    %1255 = vmatpush1.msra.mxu0 0.0
    %1256 = vmatprep.subr.mxu0 0.0
    %1257 = vmatpush1.msra.mxu0 0.0
    %1258 = vmatprep.subr.mxu0 %v349
    %1259 = vmatpush1.msra.mxu0 %v348
    %1260 = vmatprep.subr.mxu0 %v347
    %1261 = vmatpush1.msra.mxu0 %v346
    %1262 = vmatprep.subr.mxu0 %v345
    %1263 = vmatpush1.msra.mxu0 %v344
    %1264 = vmatprep.subr.mxu0 %v343
    %1265 = vmatpush1.msra.mxu0 %v342
    %1266 = vmatprep.subr.mxu0 %v341
    %1267 = vmatpush1.msra.mxu0 %v340
    %1268 = vmatprep.subr.mxu0 %v339
    %1269 = vmatpush1.msra.mxu0 %v338
    %1270 = vmatprep.subr.mxu0 %v337
    %1271 = vmatpush1.msra.mxu0 %v336
    %1272 = vmatprep.subr.mxu0 %v335
    %1273 = vmatpush1.msra.mxu0 %v334
    %1274 = vmatprep.subr.mxu0 0.0
    %1275 = vmatpush2.msra.mxu0 0.0
    %1276 = vmatprep.subr.mxu0 0.0
    %1277 = vmatpush2.msra.mxu0 0.0
    %1278 = vmatprep.subr.mxu0 0.0
    %1279 = vmatpush2.msra.mxu0 0.0
    %1280 = vmatprep.subr.mxu0 0.0
    %1281 = vmatpush2.msra.mxu0 0.0
    %1282 = vmatprep.subr.mxu0 0.0
    %1283 = vmatpush2.msra.mxu0 0.0
    %1284 = vmatprep.subr.mxu0 0.0
    %1285 = vmatpush2.msra.mxu0 0.0
    %1286 = vmatprep.subr.mxu0 0.0
    %1287 = vmatpush2.msra.mxu0 0.0
    %1288 = vmatprep.subr.mxu0 0.0
    %1289 = vmatpush2.msra.mxu0 0.0
    %1290 = vmatprep.subr.mxu0 0.0
    %1291 = vmatpush2.msra.mxu0 0.0
    %1292 = vmatprep.subr.mxu0 0.0
    %1293 = vmatpush2.msra.mxu0 0.0
    %1294 = vmatprep.subr.mxu0 0.0
    %1295 = vmatpush2.msra.mxu0 0.0
    %1296 = vmatprep.subr.mxu0 0.0
    %1297 = vmatpush2.msra.mxu0 0.0
    %1298 = vmatprep.subr.mxu0 0.0
    %1299 = vmatpush2.msra.mxu0 0.0
    %1300 = vmatprep.subr.mxu0 0.0
    %1301 = vmatpush2.msra.mxu0 0.0
    %1302 = vmatprep.subr.mxu0 0.0
    %1303 = vmatpush2.msra.mxu0 0.0
    %1304 = vmatprep.subr.mxu0 0.0
    %1305 = vmatpush2.msra.mxu0 0.0
    %1306 = vmatprep.mubr.f32.mxu0 0.0
    %1307 = vmatmul.mubr.f32.gmra.mxu0 %v1240
    %v1308 = vpop.f32.mrf.mxu0
    %v1309 = vadd.f32 0.0, %v1308
    %v1310 = vpop.f32.mrf.mxu0
    %v1311 = vadd.f32 0.0, %v1310
    %1312 = vdwg.mxu0
    %v1315 = vrot.slane %v1309, 2
    %v1316 = vrot.slane %v1311, 2
    %v1319 = vadd.f32 %v1235, %v1315
    %v1320 = vadd.f32 %v1236, %v1316
    %v1321 = vxor.u32 %v1319, 2147483648
    %v1322 = vmul.f32 %v1321, 1.442695
    %v1323 = vpow.pop %v1322
    %v1324 = vadd.f32 %v1323, 1.0
    %v1325 = vrcp.pop %v1324
    %v1326 = vmul.f32 1.0, %v1325
    %v1327 = vtanh.pop %v1320
    %v1328 = vxor.u32 %v1320, 2147483648
    %v1329 = vmul.f32 %v1328, 1.442695
    %v1330 = vpow.pop %v1329
    %v1331 = vadd.f32 %v1330, 1.0
    %v1332 = vrcp.pop %v1331
    %v1333 = vmul.f32 1.0, %v1332
    %v1335 = vrot.slane %v1216, 6
    %v1337 = vmul.f32 %v1326, %v1335
    %v1338 = vmul.f32 %v1326, %v1327
    %1340 = vrot.lane.b32.xlu0 %v1338, 64
    %v1341 = vpop.permute.xlu0 %1340
    %v1343 = vadd.f32 %v1337, %v1341
    %v1344 = vtanh.pop %v1343
    %v1345 = vmul.f32 %v1333, %v1344
    %1347 = vrot.lane.b32.xlu0 %v1345, 64
    %v1348 = vpop.permute.xlu0 %1347
    %1350 = vst.msk [vmem:[#allocation4 + $0x8] sm:$0xc0] %vm849, %v1348
    %1351 = vst.msk [vmem:[#allocation4 - $0x6] sm:$0xc0] %vm851, %v1348
    %v1352 = vld [vmem:[#allocation4] sm:$0xff]
    %v1353 = vld [vmem:[#allocation4 + $0x8] sm:$0xff]
    %v1354 = vld [vmem:[#allocation13] sm:$0xff]
    %v1355 = vld [vmem:[#allocation13 + $0x8] sm:$0xff]
    %v1356 = vld [vmem:[#allocation13 + $0x10] sm:$0xff]
    %v1357 = vld [vmem:[#allocation13 + $0x18] sm:$0xff]
    %v1358 = vld [vmem:[#allocation13 + $0x20] sm:$0xff]
    %v1359 = vld [vmem:[#allocation13 + $0x28] sm:$0xff]
    %v1360 = vld [vmem:[#allocation13 + $0x30] sm:$0xff]
    %v1361 = vld [vmem:[#allocation13 + $0x38] sm:$0xff]
    %v1362 = vld [vmem:[#allocation13 + $0x40] sm:$0xff]
    %v1363 = vld [vmem:[#allocation13 + $0x48] sm:$0xff]
    %v1364 = vld [vmem:[#allocation13 + $0x50] sm:$0xff]
    %v1365 = vld [vmem:[#allocation13 + $0x58] sm:$0xff]
    %v1366 = vld [vmem:[#allocation13 + $0x60] sm:$0xff]
    %v1367 = vld [vmem:[#allocation13 + $0x68] sm:$0xff]
    %v1368 = vld [vmem:[#allocation13 + $0x70] sm:$0xff]
    %v1369 = vld [vmem:[#allocation13 + $0x78] sm:$0xff]
    %v1370 = vld [vmem:[%s7] sm:$0x3]
    %v1372 = vlaneseq
    %v1373 = vshrl.u32 %v1372, 7
    %v1374 = vsub.s32 0, %v1373
    %v1375 = vrot.slane %v1370, %v1374
    %v1376 = vlaneseq
    %v1377 = vshrl.u32 %v1376, 7
    %v1378 = vsub.s32 1, %v1377
    %v1379 = vrot.slane %v1370, %v1378
    %v1383 = vsel %vm362, %v1352, 0
    %v1386 = vsel %vm362, %v1353, 0
    %1388 = vmatprep.subr.mxu0 0.0
    %1389 = vmatpush1.msra.mxu0 0.0
    %1390 = vmatprep.subr.mxu0 0.0
    %1391 = vmatpush1.msra.mxu0 0.0
    %1392 = vmatprep.subr.mxu0 0.0
    %1393 = vmatpush1.msra.mxu0 0.0
    %1394 = vmatprep.subr.mxu0 0.0
    %1395 = vmatpush1.msra.mxu0 0.0
    %1396 = vmatprep.subr.mxu0 0.0
    %1397 = vmatpush1.msra.mxu0 0.0
    %1398 = vmatprep.subr.mxu0 0.0
    %1399 = vmatpush1.msra.mxu0 0.0
    %1400 = vmatprep.subr.mxu0 0.0
    %1401 = vmatpush1.msra.mxu0 0.0
    %1402 = vmatprep.subr.mxu0 0.0
    %1403 = vmatpush1.msra.mxu0 0.0
    %1404 = vmatprep.subr.mxu0 %v1369
    %1405 = vmatpush1.msra.mxu0 %v1368
    %1406 = vmatprep.subr.mxu0 %v1367
    %1407 = vmatpush1.msra.mxu0 %v1366
    %1408 = vmatprep.subr.mxu0 %v1365
    %1409 = vmatpush1.msra.mxu0 %v1364
    %1410 = vmatprep.subr.mxu0 %v1363
    %1411 = vmatpush1.msra.mxu0 %v1362
    %1412 = vmatprep.subr.mxu0 %v1361
    %1413 = vmatpush1.msra.mxu0 %v1360
    %1414 = vmatprep.subr.mxu0 %v1359
    %1415 = vmatpush1.msra.mxu0 %v1358
    %1416 = vmatprep.subr.mxu0 %v1357
    %1417 = vmatpush1.msra.mxu0 %v1356
    %1418 = vmatprep.subr.mxu0 %v1355
    %1419 = vmatpush1.msra.mxu0 %v1354
    %1420 = vmatprep.subr.mxu0 0.0
    %1421 = vmatpush2.msra.mxu0 0.0
    %1422 = vmatprep.subr.mxu0 0.0
    %1423 = vmatpush2.msra.mxu0 0.0
    %1424 = vmatprep.subr.mxu0 0.0
    %1425 = vmatpush2.msra.mxu0 0.0
    %1426 = vmatprep.subr.mxu0 0.0
    %1427 = vmatpush2.msra.mxu0 0.0
    %1428 = vmatprep.subr.mxu0 0.0
    %1429 = vmatpush2.msra.mxu0 0.0
    %1430 = vmatprep.subr.mxu0 0.0
    %1431 = vmatpush2.msra.mxu0 0.0
    %1432 = vmatprep.subr.mxu0 0.0
    %1433 = vmatpush2.msra.mxu0 0.0
    %1434 = vmatprep.subr.mxu0 0.0
    %1435 = vmatpush2.msra.mxu0 0.0
    %1436 = vmatprep.subr.mxu0 0.0
    %1437 = vmatpush2.msra.mxu0 0.0
    %1438 = vmatprep.subr.mxu0 0.0
    %1439 = vmatpush2.msra.mxu0 0.0
    %1440 = vmatprep.subr.mxu0 0.0
    %1441 = vmatpush2.msra.mxu0 0.0
    %1442 = vmatprep.subr.mxu0 0.0
    %1443 = vmatpush2.msra.mxu0 0.0
    %1444 = vmatprep.subr.mxu0 0.0
    %1445 = vmatpush2.msra.mxu0 0.0
    %1446 = vmatprep.subr.mxu0 0.0
    %1447 = vmatpush2.msra.mxu0 0.0
    %1448 = vmatprep.subr.mxu0 0.0
    %1449 = vmatpush2.msra.mxu0 0.0
    %1450 = vmatprep.subr.mxu0 0.0
    %1451 = vmatpush2.msra.mxu0 0.0
    %1452 = vmatprep.mubr.f32.mxu0 0.0
    %1453 = vmatmul.mubr.f32.gmra.mxu0 %v1383
    %v1454 = vpop.f32.mrf.mxu0
    %v1455 = vadd.f32 %v1375, %v1454
    %v1456 = vpop.f32.mrf.mxu0
    %v1457 = vadd.f32 %v1379, %v1456
    %1458 = vmatprep.mubr.f32.mxu0 0.0
    %1459 = vmatmul.mubr.f32.gmra.mxu0 %v1386
    %v1460 = vpop.f32.mrf.mxu0
    %v1461 = vadd.f32 %v1375, %v1460
    %v1462 = vpop.f32.mrf.mxu0
    %v1463 = vadd.f32 %v1379, %v1462
    %1464 = vdwg.mxu0
    %1465 = vst [vmem:[#allocation2] sm:$0xff] %v1455
    %1466 = vst [vmem:[#allocation2 + $0x8] sm:$0xff] %v1457
    %1467 = vst [vmem:[#allocation2 + $0x10] sm:$0xff] %v1461
    %1468 = vst [vmem:[#allocation2 + $0x18] sm:$0xff] %v1463
    %v1469 = vld [vmem:[#allocation14] sm:$0xff]
    %v1470 = vld [vmem:[#allocation14 + $0x8] sm:$0xff]
    %v1471 = vld [vmem:[#allocation14 + $0x10] sm:$0xff]
    %v1472 = vld [vmem:[#allocation14 + $0x18] sm:$0xff]
    %v1473 = vld [vmem:[#allocation14 + $0x20] sm:$0xff]
    %v1474 = vld [vmem:[#allocation14 + $0x28] sm:$0xff]
    %v1475 = vld [vmem:[#allocation14 + $0x30] sm:$0xff]
    %v1476 = vld [vmem:[#allocation14 + $0x38] sm:$0xff]
    %v1477 = vld [vmem:[#allocation14 + $0x40] sm:$0xff]
    %v1478 = vld [vmem:[#allocation14 + $0x48] sm:$0xff]
    %v1479 = vld [vmem:[#allocation14 + $0x50] sm:$0xff]
    %v1480 = vld [vmem:[#allocation14 + $0x58] sm:$0xff]
    %v1481 = vld [vmem:[#allocation14 + $0x60] sm:$0xff]
    %v1482 = vld [vmem:[#allocation14 + $0x68] sm:$0xff]
    %v1483 = vld [vmem:[#allocation14 + $0x70] sm:$0xff]
    %v1484 = vld [vmem:[#allocation14 + $0x78] sm:$0xff]
    %1485 = vmatprep.subr.mxu0 0.0
    %1486 = vmatpush1.msra.mxu0 0.0
    %1487 = vmatprep.subr.mxu0 0.0
    %1488 = vmatpush1.msra.mxu0 0.0
    %1489 = vmatprep.subr.mxu0 0.0
    %1490 = vmatpush1.msra.mxu0 0.0
    %1491 = vmatprep.subr.mxu0 0.0
    %1492 = vmatpush1.msra.mxu0 0.0
    %1493 = vmatprep.subr.mxu0 0.0
    %1494 = vmatpush1.msra.mxu0 0.0
    %1495 = vmatprep.subr.mxu0 0.0
    %1496 = vmatpush1.msra.mxu0 0.0
    %1497 = vmatprep.subr.mxu0 0.0
    %1498 = vmatpush1.msra.mxu0 0.0
    %1499 = vmatprep.subr.mxu0 0.0
    %1500 = vmatpush1.msra.mxu0 0.0
    %1501 = vmatprep.subr.mxu0 %v1484
    %1502 = vmatpush1.msra.mxu0 %v1483
    %1503 = vmatprep.subr.mxu0 %v1482
    %1504 = vmatpush1.msra.mxu0 %v1481
    %1505 = vmatprep.subr.mxu0 %v1480
    %1506 = vmatpush1.msra.mxu0 %v1479
    %1507 = vmatprep.subr.mxu0 %v1478
    %1508 = vmatpush1.msra.mxu0 %v1477
    %1509 = vmatprep.subr.mxu0 %v1476
    %1510 = vmatpush1.msra.mxu0 %v1475
    %1511 = vmatprep.subr.mxu0 %v1474
    %1512 = vmatpush1.msra.mxu0 %v1473
    %1513 = vmatprep.subr.mxu0 %v1472
    %1514 = vmatpush1.msra.mxu0 %v1471
    %1515 = vmatprep.subr.mxu0 %v1470
    %1516 = vmatpush1.msra.mxu0 %v1469
    %1517 = vmatprep.subr.mxu0 0.0
    %1518 = vmatpush2.msra.mxu0 0.0
    %1519 = vmatprep.subr.mxu0 0.0
    %1520 = vmatpush2.msra.mxu0 0.0
    %1521 = vmatprep.subr.mxu0 0.0
    %1522 = vmatpush2.msra.mxu0 0.0
    %1523 = vmatprep.subr.mxu0 0.0
    %1524 = vmatpush2.msra.mxu0 0.0
    %1525 = vmatprep.subr.mxu0 0.0
    %1526 = vmatpush2.msra.mxu0 0.0
    %1527 = vmatprep.subr.mxu0 0.0
    %1528 = vmatpush2.msra.mxu0 0.0
    %1529 = vmatprep.subr.mxu0 0.0
    %1530 = vmatpush2.msra.mxu0 0.0
    %1531 = vmatprep.subr.mxu0 0.0
    %1532 = vmatpush2.msra.mxu0 0.0
    %1533 = vmatprep.subr.mxu0 0.0
    %1534 = vmatpush2.msra.mxu0 0.0
    %1535 = vmatprep.subr.mxu0 0.0
    %1536 = vmatpush2.msra.mxu0 0.0
    %1537 = vmatprep.subr.mxu0 0.0
    %1538 = vmatpush2.msra.mxu0 0.0
    %1539 = vmatprep.subr.mxu0 0.0
    %1540 = vmatpush2.msra.mxu0 0.0
    %1541 = vmatprep.subr.mxu0 0.0
    %1542 = vmatpush2.msra.mxu0 0.0
    %1543 = vmatprep.subr.mxu0 0.0
    %1544 = vmatpush2.msra.mxu0 0.0
    %1545 = vmatprep.subr.mxu0 0.0
    %1546 = vmatpush2.msra.mxu0 0.0
    %1547 = vmatprep.subr.mxu0 0.0
    %1548 = vmatpush2.msra.mxu0 0.0
    %1549 = vmatprep.mubr.f32.mxu0 0.0
    %1550 = vmatmul.mubr.f32.gmra.mxu0 %v1383
    %v1551 = vpop.f32.mrf.mxu0
    %v1552 = vadd.f32 0.0, %v1551
    %v1553 = vpop.f32.mrf.mxu0
    %v1554 = vadd.f32 0.0, %v1553
    %1555 = vmatprep.mubr.f32.mxu0 0.0
    %1556 = vmatmul.mubr.f32.gmra.mxu0 %v1386
    %v1557 = vpop.f32.mrf.mxu0
    %v1558 = vadd.f32 0.0, %v1557
    %v1559 = vpop.f32.mrf.mxu0
    %v1560 = vadd.f32 0.0, %v1559
    %1561 = vdwg.mxu0
    %1562 = vst [vmem:[#allocation3] sm:$0xff] %v1552
    %1563 = vst [vmem:[#allocation3 + $0x8] sm:$0xff] %v1554
    %1564 = vst [vmem:[#allocation3 + $0x10] sm:$0xff] %v1558
    %1565 = vst [vmem:[#allocation3 + $0x18] sm:$0xff] %v1560
    %v1566 = vld [vmem:[#allocation16] sm:$0xff]
    %v1567 = vld [vmem:[#allocation16 + $0x8] sm:$0xff]
    %v1568 = vld [vmem:[#allocation16 + $0x10] sm:$0xff]
    %v1569 = vld [vmem:[#allocation16 + $0x18] sm:$0xff]
    %v1570 = vld [vmem:[#allocation16 + $0x20] sm:$0xff]
    %v1571 = vld [vmem:[#allocation16 + $0x28] sm:$0xff]
    %v1572 = vld [vmem:[#allocation16 + $0x30] sm:$0xff]
    %v1573 = vld [vmem:[#allocation16 + $0x38] sm:$0xff]
    %v1574 = vld [vmem:[#allocation16 + $0x40] sm:$0xff]
    %v1575 = vld [vmem:[#allocation16 + $0x48] sm:$0xff]
    %v1576 = vld [vmem:[#allocation16 + $0x50] sm:$0xff]
    %v1577 = vld [vmem:[#allocation16 + $0x58] sm:$0xff]
    %v1578 = vld [vmem:[#allocation16 + $0x60] sm:$0xff]
    %v1579 = vld [vmem:[#allocation16 + $0x68] sm:$0xff]
    %v1580 = vld [vmem:[#allocation16 + $0x70] sm:$0xff]
    %v1581 = vld [vmem:[#allocation16 + $0x78] sm:$0xff]
    %v1582 = vld [vmem:[#allocation2] sm:$0x3]
    %v1583 = vld [vmem:[#allocation2 + $0x8] sm:$0x3]
    %v1584 = vld [vmem:[#allocation3 + $0x10] sm:$0xc0]
    %v1585 = vld [vmem:[#allocation3 + $0x18] sm:$0xc0]
    %v1588 = vrot.slane %v1584, 6
    %v1589 = vrot.slane %v1585, 6
    %v1592 = vadd.f32 %v1582, %v1588
    %v1593 = vadd.f32 %v1583, %v1589
    %1594 = vmatprep.subr.mxu0 0.0
    %1595 = vmatpush1.msra.mxu0 0.0
    %1596 = vmatprep.subr.mxu0 0.0
    %1597 = vmatpush1.msra.mxu0 0.0
    %1598 = vmatprep.subr.mxu0 0.0
    %1599 = vmatpush1.msra.mxu0 0.0
    %1600 = vmatprep.subr.mxu0 0.0
    %1601 = vmatpush1.msra.mxu0 0.0
    %1602 = vmatprep.subr.mxu0 0.0
    %1603 = vmatpush1.msra.mxu0 0.0
    %1604 = vmatprep.subr.mxu0 0.0
    %1605 = vmatpush1.msra.mxu0 0.0
    %1606 = vmatprep.subr.mxu0 0.0
    %1607 = vmatpush1.msra.mxu0 0.0
    %1608 = vmatprep.subr.mxu0 0.0
    %1609 = vmatpush1.msra.mxu0 0.0
    %1610 = vmatprep.subr.mxu0 %v1581
    %1611 = vmatpush1.msra.mxu0 %v1580
    %1612 = vmatprep.subr.mxu0 %v1579
    %1613 = vmatpush1.msra.mxu0 %v1578
    %1614 = vmatprep.subr.mxu0 %v1577
    %1615 = vmatpush1.msra.mxu0 %v1576
    %1616 = vmatprep.subr.mxu0 %v1575
    %1617 = vmatpush1.msra.mxu0 %v1574
    %1618 = vmatprep.subr.mxu0 %v1573
    %1619 = vmatpush1.msra.mxu0 %v1572
    %1620 = vmatprep.subr.mxu0 %v1571
    %1621 = vmatpush1.msra.mxu0 %v1570
    %1622 = vmatprep.subr.mxu0 %v1569
    %1623 = vmatpush1.msra.mxu0 %v1568
    %1624 = vmatprep.subr.mxu0 %v1567
    %1625 = vmatpush1.msra.mxu0 %v1566
    %1626 = vmatprep.subr.mxu0 0.0
    %1627 = vmatpush2.msra.mxu0 0.0
    %1628 = vmatprep.subr.mxu0 0.0
    %1629 = vmatpush2.msra.mxu0 0.0
    %1630 = vmatprep.subr.mxu0 0.0
    %1631 = vmatpush2.msra.mxu0 0.0
    %1632 = vmatprep.subr.mxu0 0.0
    %1633 = vmatpush2.msra.mxu0 0.0
    %1634 = vmatprep.subr.mxu0 0.0
    %1635 = vmatpush2.msra.mxu0 0.0
    %1636 = vmatprep.subr.mxu0 0.0
    %1637 = vmatpush2.msra.mxu0 0.0
    %1638 = vmatprep.subr.mxu0 0.0
    %1639 = vmatpush2.msra.mxu0 0.0
    %1640 = vmatprep.subr.mxu0 0.0
    %1641 = vmatpush2.msra.mxu0 0.0
    %1642 = vmatprep.subr.mxu0 0.0
    %1643 = vmatpush2.msra.mxu0 0.0
    %1644 = vmatprep.subr.mxu0 0.0
    %1645 = vmatpush2.msra.mxu0 0.0
    %1646 = vmatprep.subr.mxu0 0.0
    %1647 = vmatpush2.msra.mxu0 0.0
    %1648 = vmatprep.subr.mxu0 0.0
    %1649 = vmatpush2.msra.mxu0 0.0
    %1650 = vmatprep.subr.mxu0 0.0
    %1651 = vmatpush2.msra.mxu0 0.0
    %1652 = vmatprep.subr.mxu0 0.0
    %1653 = vmatpush2.msra.mxu0 0.0
    %1654 = vmatprep.subr.mxu0 0.0
    %1655 = vmatpush2.msra.mxu0 0.0
    %1656 = vmatprep.subr.mxu0 0.0
    %1657 = vmatpush2.msra.mxu0 0.0
    %1658 = vmatprep.mubr.f32.mxu0 0.0
    %1659 = vmatmul.mubr.f32.gmra.mxu0 %v364
    %v1660 = vpop.f32.mrf.mxu0
    %v1661 = vadd.f32 0.0, %v1660
    %v1662 = vpop.f32.mrf.mxu0
    %v1663 = vadd.f32 0.0, %v1662
    %1664 = vdwg.mxu0
    %v1665 = vadd.f32 %v1592, %v1661
    %v1666 = vadd.f32 %v1593, %v1663
    %v1667 = vxor.u32 %v1665, 2147483648
    %v1668 = vmul.f32 %v1667, 1.442695
    %v1669 = vpow.pop %v1668
    %v1670 = vadd.f32 %v1669, 1.0
    %v1671 = vrcp.pop %v1670
    %v1672 = vmul.f32 1.0, %v1671
    %v1673 = vtanh.pop %v1666
    %v1674 = vxor.u32 %v1666, 2147483648
    %v1675 = vmul.f32 %v1674, 1.442695
    %v1676 = vpow.pop %v1675
    %v1677 = vadd.f32 %v1676, 1.0
    %v1678 = vrcp.pop %v1677
    %v1679 = vmul.f32 1.0, %v1678
    %v1680 = vmul.f32 %v1672, 0.0
    %v1681 = vmul.f32 %v1672, %v1673
    %1683 = vrot.lane.b32.xlu0 %v1681, 64
    %v1684 = vpop.permute.xlu0 %1683
    %v1686 = vadd.f32 %v1680, %v1684
    %v1687 = vtanh.pop %v1686
    %v1688 = vmul.f32 %v1679, %v1687
    %v1689 = vld [vmem:[#allocation2] sm:$0xc]
    %v1690 = vld [vmem:[#allocation2 + $0x8] sm:$0xc]
    %v1691 = vld [vmem:[#allocation3 + $0x10] sm:$0x30]
    %v1692 = vld [vmem:[#allocation3 + $0x18] sm:$0x30]
    %v1695 = vrot.slane %v1691, 2
    %v1696 = vrot.slane %v1692, 2
    %v1699 = vadd.f32 %v1689, %v1695
    %v1700 = vadd.f32 %v1690, %v1696
    %1702 = vrot.lane.b32.xlu0 %v1688, 64
    %v1703 = vpop.permute.xlu0 %1702
    %v1704 = vsel %vm362, %v1703, 0
    %1706 = vmatprep.subr.mxu0 0.0
    %1707 = vmatpush1.msra.mxu0 0.0
    %1708 = vmatprep.subr.mxu0 0.0
    %1709 = vmatpush1.msra.mxu0 0.0
    %1710 = vmatprep.subr.mxu0 0.0
    %1711 = vmatpush1.msra.mxu0 0.0
    %1712 = vmatprep.subr.mxu0 0.0
    %1713 = vmatpush1.msra.mxu0 0.0
    %1714 = vmatprep.subr.mxu0 0.0
    %1715 = vmatpush1.msra.mxu0 0.0
    %1716 = vmatprep.subr.mxu0 0.0
    %1717 = vmatpush1.msra.mxu0 0.0
    %1718 = vmatprep.subr.mxu0 0.0
    %1719 = vmatpush1.msra.mxu0 0.0
    %1720 = vmatprep.subr.mxu0 0.0
    %1721 = vmatpush1.msra.mxu0 0.0
    %1722 = vmatprep.subr.mxu0 %v1581
    %1723 = vmatpush1.msra.mxu0 %v1580
    %1724 = vmatprep.subr.mxu0 %v1579
    %1725 = vmatpush1.msra.mxu0 %v1578
    %1726 = vmatprep.subr.mxu0 %v1577
    %1727 = vmatpush1.msra.mxu0 %v1576
    %1728 = vmatprep.subr.mxu0 %v1575
    %1729 = vmatpush1.msra.mxu0 %v1574
    %1730 = vmatprep.subr.mxu0 %v1573
    %1731 = vmatpush1.msra.mxu0 %v1572
    %1732 = vmatprep.subr.mxu0 %v1571
    %1733 = vmatpush1.msra.mxu0 %v1570
    %1734 = vmatprep.subr.mxu0 %v1569
    %1735 = vmatpush1.msra.mxu0 %v1568
    %1736 = vmatprep.subr.mxu0 %v1567
    %1737 = vmatpush1.msra.mxu0 %v1566
    %1738 = vmatprep.subr.mxu0 0.0
    %1739 = vmatpush2.msra.mxu0 0.0
    %1740 = vmatprep.subr.mxu0 0.0
    %1741 = vmatpush2.msra.mxu0 0.0
    %1742 = vmatprep.subr.mxu0 0.0
    %1743 = vmatpush2.msra.mxu0 0.0
    %1744 = vmatprep.subr.mxu0 0.0
    %1745 = vmatpush2.msra.mxu0 0.0
    %1746 = vmatprep.subr.mxu0 0.0
    %1747 = vmatpush2.msra.mxu0 0.0
    %1748 = vmatprep.subr.mxu0 0.0
    %1749 = vmatpush2.msra.mxu0 0.0
    %1750 = vmatprep.subr.mxu0 0.0
    %1751 = vmatpush2.msra.mxu0 0.0
    %1752 = vmatprep.subr.mxu0 0.0
    %1753 = vmatpush2.msra.mxu0 0.0
    %1754 = vmatprep.subr.mxu0 0.0
    %1755 = vmatpush2.msra.mxu0 0.0
    %1756 = vmatprep.subr.mxu0 0.0
    %1757 = vmatpush2.msra.mxu0 0.0
    %1758 = vmatprep.subr.mxu0 0.0
    %1759 = vmatpush2.msra.mxu0 0.0
    %1760 = vmatprep.subr.mxu0 0.0
    %1761 = vmatpush2.msra.mxu0 0.0
    %1762 = vmatprep.subr.mxu0 0.0
    %1763 = vmatpush2.msra.mxu0 0.0
    %1764 = vmatprep.subr.mxu0 0.0
    %1765 = vmatpush2.msra.mxu0 0.0
    %1766 = vmatprep.subr.mxu0 0.0
    %1767 = vmatpush2.msra.mxu0 0.0
    %1768 = vmatprep.subr.mxu0 0.0
    %1769 = vmatpush2.msra.mxu0 0.0
    %1770 = vmatprep.mubr.f32.mxu0 0.0
    %1771 = vmatmul.mubr.f32.gmra.mxu0 %v1704
    %v1772 = vpop.f32.mrf.mxu0
    %v1773 = vadd.f32 0.0, %v1772
    %v1774 = vpop.f32.mrf.mxu0
    %v1775 = vadd.f32 0.0, %v1774
    %1776 = vdwg.mxu0
    %v1779 = vrot.slane %v1773, 6
    %v1780 = vrot.slane %v1775, 6
    %v1783 = vadd.f32 %v1699, %v1779
    %v1784 = vadd.f32 %v1700, %v1780
    %v1785 = vxor.u32 %v1783, 2147483648
    %v1786 = vmul.f32 %v1785, 1.442695
    %v1787 = vpow.pop %v1786
    %v1788 = vadd.f32 %v1787, 1.0
    %v1789 = vrcp.pop %v1788
    %v1790 = vmul.f32 1.0, %v1789
    %v1791 = vtanh.pop %v1784
    %v1792 = vxor.u32 %v1784, 2147483648
    %v1793 = vmul.f32 %v1792, 1.442695
    %v1794 = vpow.pop %v1793
    %v1795 = vadd.f32 %v1794, 1.0
    %v1796 = vrcp.pop %v1795
    %v1797 = vmul.f32 1.0, %v1796
    %v1799 = vrot.slane %v1686, 6
    %v1801 = vmul.f32 %v1790, %v1799
    %v1802 = vmul.f32 %v1790, %v1791
    %1804 = vrot.lane.b32.xlu0 %v1802, 64
    %v1805 = vpop.permute.xlu0 %1804
    %v1807 = vadd.f32 %v1801, %v1805
    %v1808 = vtanh.pop %v1807
    %v1809 = vmul.f32 %v1797, %v1808
    %v1810 = vld [vmem:[#allocation2] sm:$0x30]
    %v1811 = vld [vmem:[#allocation2 + $0x8] sm:$0x30]
    %v1812 = vld [vmem:[#allocation3 + $0x10] sm:$0xc]
    %v1813 = vld [vmem:[#allocation3 + $0x18] sm:$0xc]
    %v1816 = vrot.slane %v1812, 6
    %v1817 = vrot.slane %v1813, 6
    %v1820 = vadd.f32 %v1810, %v1816
    %v1821 = vadd.f32 %v1811, %v1817
    %v1823 = vrot.slane %v1809, 2
    %1824 = vrot.lane.b32.xlu0 %v1823, 64
    %v1825 = vpop.permute.xlu0 %1824
    %v1826 = vsel %vm362, %v1825, 0
    %1828 = vmatprep.subr.mxu0 0.0
    %1829 = vmatpush1.msra.mxu0 0.0
    %1830 = vmatprep.subr.mxu0 0.0
    %1831 = vmatpush1.msra.mxu0 0.0
    %1832 = vmatprep.subr.mxu0 0.0
    %1833 = vmatpush1.msra.mxu0 0.0
    %1834 = vmatprep.subr.mxu0 0.0
    %1835 = vmatpush1.msra.mxu0 0.0
    %1836 = vmatprep.subr.mxu0 0.0
    %1837 = vmatpush1.msra.mxu0 0.0
    %1838 = vmatprep.subr.mxu0 0.0
    %1839 = vmatpush1.msra.mxu0 0.0
    %1840 = vmatprep.subr.mxu0 0.0
    %1841 = vmatpush1.msra.mxu0 0.0
    %1842 = vmatprep.subr.mxu0 0.0
    %1843 = vmatpush1.msra.mxu0 0.0
    %1844 = vmatprep.subr.mxu0 %v1581
    %1845 = vmatpush1.msra.mxu0 %v1580
    %1846 = vmatprep.subr.mxu0 %v1579
    %1847 = vmatpush1.msra.mxu0 %v1578
    %1848 = vmatprep.subr.mxu0 %v1577
    %1849 = vmatpush1.msra.mxu0 %v1576
    %1850 = vmatprep.subr.mxu0 %v1575
    %1851 = vmatpush1.msra.mxu0 %v1574
    %1852 = vmatprep.subr.mxu0 %v1573
    %1853 = vmatpush1.msra.mxu0 %v1572
    %1854 = vmatprep.subr.mxu0 %v1571
    %1855 = vmatpush1.msra.mxu0 %v1570
    %1856 = vmatprep.subr.mxu0 %v1569
    %1857 = vmatpush1.msra.mxu0 %v1568
    %1858 = vmatprep.subr.mxu0 %v1567
    %1859 = vmatpush1.msra.mxu0 %v1566
    %1860 = vmatprep.subr.mxu0 0.0
    %1861 = vmatpush2.msra.mxu0 0.0
    %1862 = vmatprep.subr.mxu0 0.0
    %1863 = vmatpush2.msra.mxu0 0.0
    %1864 = vmatprep.subr.mxu0 0.0
    %1865 = vmatpush2.msra.mxu0 0.0
    %1866 = vmatprep.subr.mxu0 0.0
    %1867 = vmatpush2.msra.mxu0 0.0
    %1868 = vmatprep.subr.mxu0 0.0
    %1869 = vmatpush2.msra.mxu0 0.0
    %1870 = vmatprep.subr.mxu0 0.0
    %1871 = vmatpush2.msra.mxu0 0.0
    %1872 = vmatprep.subr.mxu0 0.0
    %1873 = vmatpush2.msra.mxu0 0.0
    %1874 = vmatprep.subr.mxu0 0.0
    %1875 = vmatpush2.msra.mxu0 0.0
    %1876 = vmatprep.subr.mxu0 0.0
    %1877 = vmatpush2.msra.mxu0 0.0
    %1878 = vmatprep.subr.mxu0 0.0
    %1879 = vmatpush2.msra.mxu0 0.0
    %1880 = vmatprep.subr.mxu0 0.0
    %1881 = vmatpush2.msra.mxu0 0.0
    %1882 = vmatprep.subr.mxu0 0.0
    %1883 = vmatpush2.msra.mxu0 0.0
    %1884 = vmatprep.subr.mxu0 0.0
    %1885 = vmatpush2.msra.mxu0 0.0
    %1886 = vmatprep.subr.mxu0 0.0
    %1887 = vmatpush2.msra.mxu0 0.0
    %1888 = vmatprep.subr.mxu0 0.0
    %1889 = vmatpush2.msra.mxu0 0.0
    %1890 = vmatprep.subr.mxu0 0.0
    %1891 = vmatpush2.msra.mxu0 0.0
    %1892 = vmatprep.mubr.f32.mxu0 0.0
    %1893 = vmatmul.mubr.f32.gmra.mxu0 %v1826
    %v1894 = vpop.f32.mrf.mxu0
    %v1895 = vadd.f32 0.0, %v1894
    %v1896 = vpop.f32.mrf.mxu0
    %v1897 = vadd.f32 0.0, %v1896
    %1898 = vdwg.mxu0
    %v1901 = vrot.slane %v1895, 4
    %v1902 = vrot.slane %v1897, 4
    %v1905 = vadd.f32 %v1820, %v1901
    %v1906 = vadd.f32 %v1821, %v1902
    %v1907 = vxor.u32 %v1905, 2147483648
    %v1908 = vmul.f32 %v1907, 1.442695
    %v1909 = vpow.pop %v1908
    %v1910 = vadd.f32 %v1909, 1.0
    %v1911 = vrcp.pop %v1910
    %v1912 = vmul.f32 1.0, %v1911
    %v1913 = vtanh.pop %v1906
    %v1914 = vxor.u32 %v1906, 2147483648
    %v1915 = vmul.f32 %v1914, 1.442695
    %v1916 = vpow.pop %v1915
    %v1917 = vadd.f32 %v1916, 1.0
    %v1918 = vrcp.pop %v1917
    %v1919 = vmul.f32 1.0, %v1918
    %v1921 = vrot.slane %v1807, 6
    %v1923 = vmul.f32 %v1912, %v1921
    %v1924 = vmul.f32 %v1912, %v1913
    %1926 = vrot.lane.b32.xlu0 %v1924, 64
    %v1927 = vpop.permute.xlu0 %1926
    %v1929 = vadd.f32 %v1923, %v1927
    %v1930 = vtanh.pop %v1929
    %v1931 = vmul.f32 %v1919, %v1930
    %v1932 = vld [vmem:[#allocation2] sm:$0xc0]
    %v1933 = vld [vmem:[#allocation2 + $0x8] sm:$0xc0]
    %v1934 = vld [vmem:[#allocation3 + $0x10] sm:$0x3]
    %v1935 = vld [vmem:[#allocation3 + $0x18] sm:$0x3]
    %v1938 = vrot.slane %v1934, 2
    %v1939 = vrot.slane %v1935, 2
    %v1942 = vadd.f32 %v1932, %v1938
    %v1943 = vadd.f32 %v1933, %v1939
    %v1945 = vrot.slane %v1931, 4
    %1946 = vrot.lane.b32.xlu0 %v1945, 64
    %v1947 = vpop.permute.xlu0 %1946
    %v1948 = vsel %vm362, %v1947, 0
    %1950 = vmatprep.subr.mxu0 0.0
    %1951 = vmatpush1.msra.mxu0 0.0
    %1952 = vmatprep.subr.mxu0 0.0
    %1953 = vmatpush1.msra.mxu0 0.0
    %1954 = vmatprep.subr.mxu0 0.0
    %1955 = vmatpush1.msra.mxu0 0.0
    %1956 = vmatprep.subr.mxu0 0.0
    %1957 = vmatpush1.msra.mxu0 0.0
    %1958 = vmatprep.subr.mxu0 0.0
    %1959 = vmatpush1.msra.mxu0 0.0
    %1960 = vmatprep.subr.mxu0 0.0
    %1961 = vmatpush1.msra.mxu0 0.0
    %1962 = vmatprep.subr.mxu0 0.0
    %1963 = vmatpush1.msra.mxu0 0.0
    %1964 = vmatprep.subr.mxu0 0.0
    %1965 = vmatpush1.msra.mxu0 0.0
    %1966 = vmatprep.subr.mxu0 %v1581
    %1967 = vmatpush1.msra.mxu0 %v1580
    %1968 = vmatprep.subr.mxu0 %v1579
    %1969 = vmatpush1.msra.mxu0 %v1578
    %1970 = vmatprep.subr.mxu0 %v1577
    %1971 = vmatpush1.msra.mxu0 %v1576
    %1972 = vmatprep.subr.mxu0 %v1575
    %1973 = vmatpush1.msra.mxu0 %v1574
    %1974 = vmatprep.subr.mxu0 %v1573
    %1975 = vmatpush1.msra.mxu0 %v1572
    %1976 = vmatprep.subr.mxu0 %v1571
    %1977 = vmatpush1.msra.mxu0 %v1570
    %1978 = vmatprep.subr.mxu0 %v1569
    %1979 = vmatpush1.msra.mxu0 %v1568
    %1980 = vmatprep.subr.mxu0 %v1567
    %1981 = vmatpush1.msra.mxu0 %v1566
    %1982 = vmatprep.subr.mxu0 0.0
    %1983 = vmatpush2.msra.mxu0 0.0
    %1984 = vmatprep.subr.mxu0 0.0
    %1985 = vmatpush2.msra.mxu0 0.0
    %1986 = vmatprep.subr.mxu0 0.0
    %1987 = vmatpush2.msra.mxu0 0.0
    %1988 = vmatprep.subr.mxu0 0.0
    %1989 = vmatpush2.msra.mxu0 0.0
    %1990 = vmatprep.subr.mxu0 0.0
    %1991 = vmatpush2.msra.mxu0 0.0
    %1992 = vmatprep.subr.mxu0 0.0
    %1993 = vmatpush2.msra.mxu0 0.0
    %1994 = vmatprep.subr.mxu0 0.0
    %1995 = vmatpush2.msra.mxu0 0.0
    %1996 = vmatprep.subr.mxu0 0.0
    %1997 = vmatpush2.msra.mxu0 0.0
    %1998 = vmatprep.subr.mxu0 0.0
    %1999 = vmatpush2.msra.mxu0 0.0
    %2000 = vmatprep.subr.mxu0 0.0
    %2001 = vmatpush2.msra.mxu0 0.0
    %2002 = vmatprep.subr.mxu0 0.0
    %2003 = vmatpush2.msra.mxu0 0.0
    %2004 = vmatprep.subr.mxu0 0.0
    %2005 = vmatpush2.msra.mxu0 0.0
    %2006 = vmatprep.subr.mxu0 0.0
    %2007 = vmatpush2.msra.mxu0 0.0
    %2008 = vmatprep.subr.mxu0 0.0
    %2009 = vmatpush2.msra.mxu0 0.0
    %2010 = vmatprep.subr.mxu0 0.0
    %2011 = vmatpush2.msra.mxu0 0.0
    %2012 = vmatprep.subr.mxu0 0.0
    %2013 = vmatpush2.msra.mxu0 0.0
    %2014 = vmatprep.mubr.f32.mxu0 0.0
    %2015 = vmatmul.mubr.f32.gmra.mxu0 %v1948
    %v2016 = vpop.f32.mrf.mxu0
    %v2017 = vadd.f32 0.0, %v2016
    %v2018 = vpop.f32.mrf.mxu0
    %v2019 = vadd.f32 0.0, %v2018
    %2020 = vdwg.mxu0
    %v2023 = vrot.slane %v2017, 2
    %v2024 = vrot.slane %v2019, 2
    %v2027 = vadd.f32 %v1942, %v2023
    %v2028 = vadd.f32 %v1943, %v2024
    %v2029 = vxor.u32 %v2027, 2147483648
    %v2030 = vmul.f32 %v2029, 1.442695
    %v2031 = vpow.pop %v2030
    %v2032 = vadd.f32 %v2031, 1.0
    %v2033 = vrcp.pop %v2032
    %v2034 = vmul.f32 1.0, %v2033
    %v2035 = vtanh.pop %v2028
    %v2036 = vxor.u32 %v2028, 2147483648
    %v2037 = vmul.f32 %v2036, 1.442695
    %v2038 = vpow.pop %v2037
    %v2039 = vadd.f32 %v2038, 1.0
    %v2040 = vrcp.pop %v2039
    %v2041 = vmul.f32 1.0, %v2040
    %v2043 = vrot.slane %v1929, 6
    %v2045 = vmul.f32 %v2034, %v2043
    %v2046 = vmul.f32 %v2034, %v2035
    %2048 = vrot.lane.b32.xlu0 %v2046, 64
    %v2049 = vpop.permute.xlu0 %2048
    %v2051 = vadd.f32 %v2045, %v2049
    %v2052 = vtanh.pop %v2051
    %v2053 = vmul.f32 %v2041, %v2052
    %v2054 = vld [vmem:[#allocation2 + $0x10] sm:$0x3]
    %v2055 = vld [vmem:[#allocation2 + $0x18] sm:$0x3]
    %v2056 = vld [vmem:[#allocation3] sm:$0xc0]
    %v2057 = vld [vmem:[#allocation3 + $0x8] sm:$0xc0]
    %v2060 = vrot.slane %v2056, 6
    %v2061 = vrot.slane %v2057, 6
    %v2064 = vadd.f32 %v2054, %v2060
    %v2065 = vadd.f32 %v2055, %v2061
    %v2067 = vrot.slane %v2053, 6
    %2068 = vrot.lane.b32.xlu0 %v2067, 64
    %v2069 = vpop.permute.xlu0 %2068
    %v2070 = vsel %vm362, %v2069, 0
    %2072 = vmatprep.subr.mxu0 0.0
    %2073 = vmatpush1.msra.mxu0 0.0
    %2074 = vmatprep.subr.mxu0 0.0
    %2075 = vmatpush1.msra.mxu0 0.0
    %2076 = vmatprep.subr.mxu0 0.0
    %2077 = vmatpush1.msra.mxu0 0.0
    %2078 = vmatprep.subr.mxu0 0.0
    %2079 = vmatpush1.msra.mxu0 0.0
    %2080 = vmatprep.subr.mxu0 0.0
    %2081 = vmatpush1.msra.mxu0 0.0
    %2082 = vmatprep.subr.mxu0 0.0
    %2083 = vmatpush1.msra.mxu0 0.0
    %2084 = vmatprep.subr.mxu0 0.0
    %2085 = vmatpush1.msra.mxu0 0.0
    %2086 = vmatprep.subr.mxu0 0.0
    %2087 = vmatpush1.msra.mxu0 0.0
    %2088 = vmatprep.subr.mxu0 %v1581
    %2089 = vmatpush1.msra.mxu0 %v1580
    %2090 = vmatprep.subr.mxu0 %v1579
    %2091 = vmatpush1.msra.mxu0 %v1578
    %2092 = vmatprep.subr.mxu0 %v1577
    %2093 = vmatpush1.msra.mxu0 %v1576
    %2094 = vmatprep.subr.mxu0 %v1575
    %2095 = vmatpush1.msra.mxu0 %v1574
    %2096 = vmatprep.subr.mxu0 %v1573
    %2097 = vmatpush1.msra.mxu0 %v1572
    %2098 = vmatprep.subr.mxu0 %v1571
    %2099 = vmatpush1.msra.mxu0 %v1570
    %2100 = vmatprep.subr.mxu0 %v1569
    %2101 = vmatpush1.msra.mxu0 %v1568
    %2102 = vmatprep.subr.mxu0 %v1567
    %2103 = vmatpush1.msra.mxu0 %v1566
    %2104 = vmatprep.subr.mxu0 0.0
    %2105 = vmatpush2.msra.mxu0 0.0
    %2106 = vmatprep.subr.mxu0 0.0
    %2107 = vmatpush2.msra.mxu0 0.0
    %2108 = vmatprep.subr.mxu0 0.0
    %2109 = vmatpush2.msra.mxu0 0.0
    %2110 = vmatprep.subr.mxu0 0.0
    %2111 = vmatpush2.msra.mxu0 0.0
    %2112 = vmatprep.subr.mxu0 0.0
    %2113 = vmatpush2.msra.mxu0 0.0
    %2114 = vmatprep.subr.mxu0 0.0
    %2115 = vmatpush2.msra.mxu0 0.0
    %2116 = vmatprep.subr.mxu0 0.0
    %2117 = vmatpush2.msra.mxu0 0.0
    %2118 = vmatprep.subr.mxu0 0.0
    %2119 = vmatpush2.msra.mxu0 0.0
    %2120 = vmatprep.subr.mxu0 0.0
    %2121 = vmatpush2.msra.mxu0 0.0
    %2122 = vmatprep.subr.mxu0 0.0
    %2123 = vmatpush2.msra.mxu0 0.0
    %2124 = vmatprep.subr.mxu0 0.0
    %2125 = vmatpush2.msra.mxu0 0.0
    %2126 = vmatprep.subr.mxu0 0.0
    %2127 = vmatpush2.msra.mxu0 0.0
    %2128 = vmatprep.subr.mxu0 0.0
    %2129 = vmatpush2.msra.mxu0 0.0
    %2130 = vmatprep.subr.mxu0 0.0
    %2131 = vmatpush2.msra.mxu0 0.0
    %2132 = vmatprep.subr.mxu0 0.0
    %2133 = vmatpush2.msra.mxu0 0.0
    %2134 = vmatprep.subr.mxu0 0.0
    %2135 = vmatpush2.msra.mxu0 0.0
    %2136 = vmatprep.mubr.f32.mxu0 0.0
    %2137 = vmatmul.mubr.f32.gmra.mxu0 %v2070
    %v2138 = vpop.f32.mrf.mxu0
    %v2139 = vadd.f32 0.0, %v2138
    %v2140 = vpop.f32.mrf.mxu0
    %v2141 = vadd.f32 0.0, %v2140
    %2142 = vdwg.mxu0
    %v2143 = vadd.f32 %v2064, %v2139
    %v2144 = vadd.f32 %v2065, %v2141
    %v2145 = vxor.u32 %v2143, 2147483648
    %v2146 = vmul.f32 %v2145, 1.442695
    %v2147 = vpow.pop %v2146
    %v2148 = vadd.f32 %v2147, 1.0
    %v2149 = vrcp.pop %v2148
    %v2150 = vmul.f32 1.0, %v2149
    %v2151 = vtanh.pop %v2144
    %v2152 = vxor.u32 %v2144, 2147483648
    %v2153 = vmul.f32 %v2152, 1.442695
    %v2154 = vpow.pop %v2153
    %v2155 = vadd.f32 %v2154, 1.0
    %v2156 = vrcp.pop %v2155
    %v2157 = vmul.f32 1.0, %v2156
    %v2159 = vrot.slane %v2051, 6
    %v2161 = vmul.f32 %v2150, %v2159
    %v2162 = vmul.f32 %v2150, %v2151
    %2164 = vrot.lane.b32.xlu0 %v2162, 64
    %v2165 = vpop.permute.xlu0 %2164
    %v2167 = vadd.f32 %v2161, %v2165
    %v2168 = vtanh.pop %v2167
    %v2169 = vmul.f32 %v2157, %v2168
    %v2170 = vld [vmem:[#allocation2 + $0x10] sm:$0xc]
    %v2171 = vld [vmem:[#allocation2 + $0x18] sm:$0xc]
    %v2172 = vld [vmem:[#allocation3] sm:$0x30]
    %v2173 = vld [vmem:[#allocation3 + $0x8] sm:$0x30]
    %v2176 = vrot.slane %v2172, 2
    %v2177 = vrot.slane %v2173, 2
    %v2180 = vadd.f32 %v2170, %v2176
    %v2181 = vadd.f32 %v2171, %v2177
    %2183 = vrot.lane.b32.xlu0 %v2169, 64
    %v2184 = vpop.permute.xlu0 %2183
    %v2185 = vsel %vm362, %v2184, 0
    %2187 = vmatprep.subr.mxu0 0.0
    %2188 = vmatpush1.msra.mxu0 0.0
    %2189 = vmatprep.subr.mxu0 0.0
    %2190 = vmatpush1.msra.mxu0 0.0
    %2191 = vmatprep.subr.mxu0 0.0
    %2192 = vmatpush1.msra.mxu0 0.0
    %2193 = vmatprep.subr.mxu0 0.0
    %2194 = vmatpush1.msra.mxu0 0.0
    %2195 = vmatprep.subr.mxu0 0.0
    %2196 = vmatpush1.msra.mxu0 0.0
    %2197 = vmatprep.subr.mxu0 0.0
    %2198 = vmatpush1.msra.mxu0 0.0
    %2199 = vmatprep.subr.mxu0 0.0
    %2200 = vmatpush1.msra.mxu0 0.0
    %2201 = vmatprep.subr.mxu0 0.0
    %2202 = vmatpush1.msra.mxu0 0.0
    %2203 = vmatprep.subr.mxu0 %v1581
    %2204 = vmatpush1.msra.mxu0 %v1580
    %2205 = vmatprep.subr.mxu0 %v1579
    %2206 = vmatpush1.msra.mxu0 %v1578
    %2207 = vmatprep.subr.mxu0 %v1577
    %2208 = vmatpush1.msra.mxu0 %v1576
    %2209 = vmatprep.subr.mxu0 %v1575
    %2210 = vmatpush1.msra.mxu0 %v1574
    %2211 = vmatprep.subr.mxu0 %v1573
    %2212 = vmatpush1.msra.mxu0 %v1572
    %2213 = vmatprep.subr.mxu0 %v1571
    %2214 = vmatpush1.msra.mxu0 %v1570
    %2215 = vmatprep.subr.mxu0 %v1569
    %2216 = vmatpush1.msra.mxu0 %v1568
    %2217 = vmatprep.subr.mxu0 %v1567
    %2218 = vmatpush1.msra.mxu0 %v1566
    %2219 = vmatprep.subr.mxu0 0.0
    %2220 = vmatpush2.msra.mxu0 0.0
    %2221 = vmatprep.subr.mxu0 0.0
    %2222 = vmatpush2.msra.mxu0 0.0
    %2223 = vmatprep.subr.mxu0 0.0
    %2224 = vmatpush2.msra.mxu0 0.0
    %2225 = vmatprep.subr.mxu0 0.0
    %2226 = vmatpush2.msra.mxu0 0.0
    %2227 = vmatprep.subr.mxu0 0.0
    %2228 = vmatpush2.msra.mxu0 0.0
    %2229 = vmatprep.subr.mxu0 0.0
    %2230 = vmatpush2.msra.mxu0 0.0
    %2231 = vmatprep.subr.mxu0 0.0
    %2232 = vmatpush2.msra.mxu0 0.0
    %2233 = vmatprep.subr.mxu0 0.0
    %2234 = vmatpush2.msra.mxu0 0.0
    %2235 = vmatprep.subr.mxu0 0.0
    %2236 = vmatpush2.msra.mxu0 0.0
    %2237 = vmatprep.subr.mxu0 0.0
    %2238 = vmatpush2.msra.mxu0 0.0
    %2239 = vmatprep.subr.mxu0 0.0
    %2240 = vmatpush2.msra.mxu0 0.0
    %2241 = vmatprep.subr.mxu0 0.0
    %2242 = vmatpush2.msra.mxu0 0.0
    %2243 = vmatprep.subr.mxu0 0.0
    %2244 = vmatpush2.msra.mxu0 0.0
    %2245 = vmatprep.subr.mxu0 0.0
    %2246 = vmatpush2.msra.mxu0 0.0
    %2247 = vmatprep.subr.mxu0 0.0
    %2248 = vmatpush2.msra.mxu0 0.0
    %2249 = vmatprep.subr.mxu0 0.0
    %2250 = vmatpush2.msra.mxu0 0.0
    %2251 = vmatprep.mubr.f32.mxu0 0.0
    %2252 = vmatmul.mubr.f32.gmra.mxu0 %v2185
    %v2253 = vpop.f32.mrf.mxu0
    %v2254 = vadd.f32 0.0, %v2253
    %v2255 = vpop.f32.mrf.mxu0
    %v2256 = vadd.f32 0.0, %v2255
    %2257 = vdwg.mxu0
    %v2260 = vrot.slane %v2254, 6
    %v2261 = vrot.slane %v2256, 6
    %v2264 = vadd.f32 %v2180, %v2260
    %v2265 = vadd.f32 %v2181, %v2261
    %v2266 = vxor.u32 %v2264, 2147483648
    %v2267 = vmul.f32 %v2266, 1.442695
    %v2268 = vpow.pop %v2267
    %v2269 = vadd.f32 %v2268, 1.0
    %v2270 = vrcp.pop %v2269
    %v2271 = vmul.f32 1.0, %v2270
    %v2272 = vtanh.pop %v2265
    %v2273 = vxor.u32 %v2265, 2147483648
    %v2274 = vmul.f32 %v2273, 1.442695
    %v2275 = vpow.pop %v2274
    %v2276 = vadd.f32 %v2275, 1.0
    %v2277 = vrcp.pop %v2276
    %v2278 = vmul.f32 1.0, %v2277
    %v2280 = vrot.slane %v2167, 6
    %v2282 = vmul.f32 %v2271, %v2280
    %v2283 = vmul.f32 %v2271, %v2272
    %2285 = vrot.lane.b32.xlu0 %v2283, 64
    %v2286 = vpop.permute.xlu0 %2285
    %v2288 = vadd.f32 %v2282, %v2286
    %v2289 = vtanh.pop %v2288
    %v2290 = vmul.f32 %v2278, %v2289
    %v2291 = vld [vmem:[#allocation2 + $0x10] sm:$0x30]
    %v2292 = vld [vmem:[#allocation2 + $0x18] sm:$0x30]
    %v2293 = vld [vmem:[#allocation3] sm:$0xc]
    %v2294 = vld [vmem:[#allocation3 + $0x8] sm:$0xc]
    %v2297 = vrot.slane %v2293, 6
    %v2298 = vrot.slane %v2294, 6
    %v2301 = vadd.f32 %v2291, %v2297
    %v2302 = vadd.f32 %v2292, %v2298
    %v2304 = vrot.slane %v2290, 2
    %2305 = vrot.lane.b32.xlu0 %v2304, 64
    %v2306 = vpop.permute.xlu0 %2305
    %v2307 = vsel %vm362, %v2306, 0
    %2309 = vmatprep.subr.mxu0 0.0
    %2310 = vmatpush1.msra.mxu0 0.0
    %2311 = vmatprep.subr.mxu0 0.0
    %2312 = vmatpush1.msra.mxu0 0.0
    %2313 = vmatprep.subr.mxu0 0.0
    %2314 = vmatpush1.msra.mxu0 0.0
    %2315 = vmatprep.subr.mxu0 0.0
    %2316 = vmatpush1.msra.mxu0 0.0
    %2317 = vmatprep.subr.mxu0 0.0
    %2318 = vmatpush1.msra.mxu0 0.0
    %2319 = vmatprep.subr.mxu0 0.0
    %2320 = vmatpush1.msra.mxu0 0.0
    %2321 = vmatprep.subr.mxu0 0.0
    %2322 = vmatpush1.msra.mxu0 0.0
    %2323 = vmatprep.subr.mxu0 0.0
    %2324 = vmatpush1.msra.mxu0 0.0
    %2325 = vmatprep.subr.mxu0 %v1581
    %2326 = vmatpush1.msra.mxu0 %v1580
    %2327 = vmatprep.subr.mxu0 %v1579
    %2328 = vmatpush1.msra.mxu0 %v1578
    %2329 = vmatprep.subr.mxu0 %v1577
    %2330 = vmatpush1.msra.mxu0 %v1576
    %2331 = vmatprep.subr.mxu0 %v1575
    %2332 = vmatpush1.msra.mxu0 %v1574
    %2333 = vmatprep.subr.mxu0 %v1573
    %2334 = vmatpush1.msra.mxu0 %v1572
    %2335 = vmatprep.subr.mxu0 %v1571
    %2336 = vmatpush1.msra.mxu0 %v1570
    %2337 = vmatprep.subr.mxu0 %v1569
    %2338 = vmatpush1.msra.mxu0 %v1568
    %2339 = vmatprep.subr.mxu0 %v1567
    %2340 = vmatpush1.msra.mxu0 %v1566
    %2341 = vmatprep.subr.mxu0 0.0
    %2342 = vmatpush2.msra.mxu0 0.0
    %2343 = vmatprep.subr.mxu0 0.0
    %2344 = vmatpush2.msra.mxu0 0.0
    %2345 = vmatprep.subr.mxu0 0.0
    %2346 = vmatpush2.msra.mxu0 0.0
    %2347 = vmatprep.subr.mxu0 0.0
    %2348 = vmatpush2.msra.mxu0 0.0
    %2349 = vmatprep.subr.mxu0 0.0
    %2350 = vmatpush2.msra.mxu0 0.0
    %2351 = vmatprep.subr.mxu0 0.0
    %2352 = vmatpush2.msra.mxu0 0.0
    %2353 = vmatprep.subr.mxu0 0.0
    %2354 = vmatpush2.msra.mxu0 0.0
    %2355 = vmatprep.subr.mxu0 0.0
    %2356 = vmatpush2.msra.mxu0 0.0
    %2357 = vmatprep.subr.mxu0 0.0
    %2358 = vmatpush2.msra.mxu0 0.0
    %2359 = vmatprep.subr.mxu0 0.0
    %2360 = vmatpush2.msra.mxu0 0.0
    %2361 = vmatprep.subr.mxu0 0.0
    %2362 = vmatpush2.msra.mxu0 0.0
    %2363 = vmatprep.subr.mxu0 0.0
    %2364 = vmatpush2.msra.mxu0 0.0
    %2365 = vmatprep.subr.mxu0 0.0
    %2366 = vmatpush2.msra.mxu0 0.0
    %2367 = vmatprep.subr.mxu0 0.0
    %2368 = vmatpush2.msra.mxu0 0.0
    %2369 = vmatprep.subr.mxu0 0.0
    %2370 = vmatpush2.msra.mxu0 0.0
    %2371 = vmatprep.subr.mxu0 0.0
    %2372 = vmatpush2.msra.mxu0 0.0
    %2373 = vmatprep.mubr.f32.mxu0 0.0
    %2374 = vmatmul.mubr.f32.gmra.mxu0 %v2307
    %v2375 = vpop.f32.mrf.mxu0
    %v2376 = vadd.f32 0.0, %v2375
    %v2377 = vpop.f32.mrf.mxu0
    %v2378 = vadd.f32 0.0, %v2377
    %2379 = vdwg.mxu0
    %v2382 = vrot.slane %v2376, 4
    %v2383 = vrot.slane %v2378, 4
    %v2386 = vadd.f32 %v2301, %v2382
    %v2387 = vadd.f32 %v2302, %v2383
    %v2388 = vxor.u32 %v2386, 2147483648
    %v2389 = vmul.f32 %v2388, 1.442695
    %v2390 = vpow.pop %v2389
    %v2391 = vadd.f32 %v2390, 1.0
    %v2392 = vrcp.pop %v2391
    %v2393 = vmul.f32 1.0, %v2392
    %v2394 = vtanh.pop %v2387
    %v2395 = vxor.u32 %v2387, 2147483648
    %v2396 = vmul.f32 %v2395, 1.442695
    %v2397 = vpow.pop %v2396
    %v2398 = vadd.f32 %v2397, 1.0
    %v2399 = vrcp.pop %v2398
    %v2400 = vmul.f32 1.0, %v2399
    %v2402 = vrot.slane %v2288, 6
    %v2404 = vmul.f32 %v2393, %v2402
    %v2405 = vmul.f32 %v2393, %v2394
    %2407 = vrot.lane.b32.xlu0 %v2405, 64
    %v2408 = vpop.permute.xlu0 %2407
    %v2410 = vadd.f32 %v2404, %v2408
    %v2411 = vtanh.pop %v2410
    %v2412 = vmul.f32 %v2400, %v2411
    %v2413 = vld [vmem:[#allocation2 + $0x10] sm:$0xc0]
    %v2414 = vld [vmem:[#allocation2 + $0x18] sm:$0xc0]
    %v2415 = vld [vmem:[#allocation3] sm:$0x3]
    %v2416 = vld [vmem:[#allocation3 + $0x8] sm:$0x3]
    %v2419 = vrot.slane %v2415, 2
    %v2420 = vrot.slane %v2416, 2
    %v2423 = vadd.f32 %v2413, %v2419
    %v2424 = vadd.f32 %v2414, %v2420
    %v2426 = vrot.slane %v2412, 4
    %2427 = vrot.lane.b32.xlu0 %v2426, 64
    %v2428 = vpop.permute.xlu0 %2427
    %v2429 = vsel %vm362, %v2428, 0
    %2431 = vmatprep.subr.mxu0 0.0
    %2432 = vmatpush1.msra.mxu0 0.0
    %2433 = vmatprep.subr.mxu0 0.0
    %2434 = vmatpush1.msra.mxu0 0.0
    %2435 = vmatprep.subr.mxu0 0.0
    %2436 = vmatpush1.msra.mxu0 0.0
    %2437 = vmatprep.subr.mxu0 0.0
    %2438 = vmatpush1.msra.mxu0 0.0
    %2439 = vmatprep.subr.mxu0 0.0
    %2440 = vmatpush1.msra.mxu0 0.0
    %2441 = vmatprep.subr.mxu0 0.0
    %2442 = vmatpush1.msra.mxu0 0.0
    %2443 = vmatprep.subr.mxu0 0.0
    %2444 = vmatpush1.msra.mxu0 0.0
    %2445 = vmatprep.subr.mxu0 0.0
    %2446 = vmatpush1.msra.mxu0 0.0
    %2447 = vmatprep.subr.mxu0 %v1581
    %2448 = vmatpush1.msra.mxu0 %v1580
    %2449 = vmatprep.subr.mxu0 %v1579
    %2450 = vmatpush1.msra.mxu0 %v1578
    %2451 = vmatprep.subr.mxu0 %v1577
    %2452 = vmatpush1.msra.mxu0 %v1576
    %2453 = vmatprep.subr.mxu0 %v1575
    %2454 = vmatpush1.msra.mxu0 %v1574
    %2455 = vmatprep.subr.mxu0 %v1573
    %2456 = vmatpush1.msra.mxu0 %v1572
    %2457 = vmatprep.subr.mxu0 %v1571
    %2458 = vmatpush1.msra.mxu0 %v1570
    %2459 = vmatprep.subr.mxu0 %v1569
    %2460 = vmatpush1.msra.mxu0 %v1568
    %2461 = vmatprep.subr.mxu0 %v1567
    %2462 = vmatpush1.msra.mxu0 %v1566
    %2463 = vmatprep.subr.mxu0 0.0
    %2464 = vmatpush2.msra.mxu0 0.0
    %2465 = vmatprep.subr.mxu0 0.0
    %2466 = vmatpush2.msra.mxu0 0.0
    %2467 = vmatprep.subr.mxu0 0.0
    %2468 = vmatpush2.msra.mxu0 0.0
    %2469 = vmatprep.subr.mxu0 0.0
    %2470 = vmatpush2.msra.mxu0 0.0
    %2471 = vmatprep.subr.mxu0 0.0
    %2472 = vmatpush2.msra.mxu0 0.0
    %2473 = vmatprep.subr.mxu0 0.0
    %2474 = vmatpush2.msra.mxu0 0.0
    %2475 = vmatprep.subr.mxu0 0.0
    %2476 = vmatpush2.msra.mxu0 0.0
    %2477 = vmatprep.subr.mxu0 0.0
    %2478 = vmatpush2.msra.mxu0 0.0
    %2479 = vmatprep.subr.mxu0 0.0
    %2480 = vmatpush2.msra.mxu0 0.0
    %2481 = vmatprep.subr.mxu0 0.0
    %2482 = vmatpush2.msra.mxu0 0.0
    %2483 = vmatprep.subr.mxu0 0.0
    %2484 = vmatpush2.msra.mxu0 0.0
    %2485 = vmatprep.subr.mxu0 0.0
    %2486 = vmatpush2.msra.mxu0 0.0
    %2487 = vmatprep.subr.mxu0 0.0
    %2488 = vmatpush2.msra.mxu0 0.0
    %2489 = vmatprep.subr.mxu0 0.0
    %2490 = vmatpush2.msra.mxu0 0.0
    %2491 = vmatprep.subr.mxu0 0.0
    %2492 = vmatpush2.msra.mxu0 0.0
    %2493 = vmatprep.subr.mxu0 0.0
    %2494 = vmatpush2.msra.mxu0 0.0
    %2495 = vmatprep.mubr.f32.mxu0 0.0
    %2496 = vmatmul.mubr.f32.gmra.mxu0 %v2429
    %v2497 = vpop.f32.mrf.mxu0
    %v2498 = vadd.f32 0.0, %v2497
    %v2499 = vpop.f32.mrf.mxu0
    %v2500 = vadd.f32 0.0, %v2499
    %2501 = vdwg.mxu0
    %v2504 = vrot.slane %v2498, 2
    %v2505 = vrot.slane %v2500, 2
    %v2508 = vadd.f32 %v2423, %v2504
    %v2509 = vadd.f32 %v2424, %v2505
    %v2510 = vxor.u32 %v2508, 2147483648
    %v2511 = vmul.f32 %v2510, 1.442695
    %v2512 = vpow.pop %v2511
    %v2513 = vadd.f32 %v2512, 1.0
    %v2514 = vrcp.pop %v2513
    %v2515 = vmul.f32 1.0, %v2514
    %v2516 = vtanh.pop %v2509
    %v2517 = vxor.u32 %v2509, 2147483648
    %v2518 = vmul.f32 %v2517, 1.442695
    %v2519 = vpow.pop %v2518
    %v2520 = vadd.f32 %v2519, 1.0
    %v2521 = vrcp.pop %v2520
    %v2522 = vmul.f32 1.0, %v2521
    %v2524 = vrot.slane %v2410, 6
    %v2526 = vmul.f32 %v2515, %v2524
    %v2527 = vmul.f32 %v2515, %v2516
    %2529 = vrot.lane.b32.xlu0 %v2527, 64
    %v2530 = vpop.permute.xlu0 %2529
    %v2532 = vadd.f32 %v2526, %v2530
    %v2533 = vtanh.pop %v2532
    %v2534 = vmul.f32 %v2522, %v2533
    %v2535 = vlaneseq
    %v2536 = vand.u32 %v2535, 127
    %vm2537 = vcmp.lt.s32.totalorder %v2536, 32
    %v2539 = vrot.slane %v2534, 6
    %2540 = vrot.lane.b32.xlu0 %v2539, 64
    %v2541 = vpop.permute.xlu0 %2540
    %v2544 = vsel %vm2537, %v2541, %v1703
    %v2545 = vld [vmem:[%s9] sm:$0x1]
    %v2547 = vlaneseq
    %v2548 = vshrl.u32 %v2547, 7
    %v2549 = vsub.s32 0, %v2548
    %v2550 = vrot.slane %v2545, %v2549
    %v2552 = vmul.f32 %v2544, %v2550
    %vm2553 = vcmask 517120
    %v2554 = vsel %vm2553, %v2552, 0.0
    %2555 = vadd.xlane.f32.xlu0 %v2554
    %v2556 = vpop.xlane.xlu0 %2555
    %v2557 = vld [vmem:[#allocation5] sm:$0x1]
    %v2559 = vlaneseq
    %v2560 = vshrl.u32 %v2559, 7
    %v2561 = vsub.s32 0, %v2560
    %v2562 = vrot.slane %v2557, %v2561
    %v2564 = vadd.f32 %v2556, %v2562
    %v2565 = vxor.u32 %v2564, 2147483648
    %v2566 = vmul.f32 %v2565, 1.442695
    %v2567 = vpow.pop %v2566
    %v2568 = vadd.f32 %v2567, 1.0
    %v2569 = vrcp.pop %v2568
    %v2570 = vmul.f32 1.0, %v2569
    %vm2571 = vcmask 1024
    %2572 = vst.msk [vmem:[%s11] sm:$0x3] %vm2571, %v2570
    // Predicated region
    $region74: #{tpu_custom_call.1} parent=1 // pred_check
      _
    $region75: #{tpu_custom_call.1} parent=1 // pred_check_branch
      %2574 = sbr.rel (0) target = $region77
    $region76: #{tpu_custom_call.1} parent=1 // pred_region
      _
    $region77: #{tpu_custom_call.1} parent=1 // pred_fallthru
      _
    // Predicated region
    $region78: #{tpu_custom_call.1} parent=1 // pred_check
      _
    $region79: #{tpu_custom_call.1} parent=1 // pred_check_branch
      %2576 = sbr.rel (0) target = $region81
    $region80: #{tpu_custom_call.1} parent=1 // pred_region
      _
    $region81: #{tpu_custom_call.1} parent=1 // pred_fallthru
      _
    %2577 = vsyncpa [#allocation7], 1
    %2578 = vsyncpa [#allocation9], 1
    %2579 = vsyncpa [#allocation12], 1
    %2580 = vsyncpa [#allocation15], 1

</llo_original>
